<compile_context>
chip_gen: v5e
topology: v5e:2x2
jax: 0.10.0
libtpu: 0.0.40
codegen_flags: <defaults>
</compile_context>

<pallas_src>
import functools

import jax
import jax.numpy as jnp
from jax import lax
from jax.experimental import pallas as pl
from jax.experimental.pallas import tpu as pltpu


# ----------------------------------------------------------------------------
# Single fused kernel: conv1 -> conv2 -> enc_lin -> [mu | log_var]
# ----------------------------------------------------------------------------
def _encoder_kernel(cols1_ref, w1_ref, b1_ref, s1_ref, t1_ref,
                    w2_ref, b2_ref, s2_ref, t2_ref,
                    w3_ref, b3_ref, s3_ref, t3_ref,
                    wmv_ref, bmv_ref,
                    out_ref,
                    p1_ref, cols2_ref, out2_ref,
                    *, B, F1, H1, KH2, S2, HO2, slope):
    f32 = jnp.float32
    HP = H1 + 2                    # padded conv1 feature-map size (16)
    CHUNK = KH2 * F1               # one conv2 kernel-row of patch data (7*32 = 224)
    NP = HO2 * HO2                 # conv2 output positions per image (9)
    R2 = NP * B                    # conv2 GEMM rows
    F2 = w2_ref.shape[1]
    NODE1 = w3_ref.shape[1]

    def lrelu(v):
        return jnp.where(v >= 0, v, slope * v)

    # -- conv1 as one row-GEMM per image.  The banded weight already emits full
    #    padded rows (zero pad-columns folded in) and the top pad row is wrapped
    #    to index HP-1, so every store is a fully aligned (H1, HP*F1) block.
    #    LeakyReLU + folded eval-BatchNorm applied in-register.
    p1_ref[...] = jnp.zeros_like(p1_ref)
    for b in range(B):
        y1 = jnp.dot(cols1_ref[b * H1:(b + 1) * H1, :], w1_ref[...],
                     preferred_element_type=f32)
        y1 = lrelu(y1 + b1_ref[...]) * s1_ref[...] + t1_ref[...]
        p1_ref[b * HP:b * HP + H1, :] = y1

    # -- conv2 patch gather (stride 4, pad 1): each copy is one padded row slice
    #    of CHUNK lanes starting at a 128-lane-aligned offset (S2*F1 == 128).
    for b in range(B):
        for oh2 in range(HO2):
            for ow2 in range(HO2):
                pos = oh2 * HO2 + ow2
                col0 = ow2 * S2 * F1
                for kh in range(KH2):
                    src = b * HP + (oh2 * S2 + kh - 1) % HP
                    dst = kh * R2 + pos * B + b
                    cols2_ref[dst:dst + 1, :] = p1_ref[src:src + 1,
                                                       col0:col0 + CHUNK]

    # -- conv2 GEMM: 7 accumulated (R2, 224) x (224, F2) matmuls + epilogue.
    acc2 = jnp.zeros((R2, F2), f32)
    for kh in range(KH2):
        acc2 = acc2 + jnp.dot(cols2_ref[kh * R2:(kh + 1) * R2, :],
                              w2_ref[kh * CHUNK:(kh + 1) * CHUNK, :],
                              preferred_element_type=f32)
    out2_ref[...] = lrelu(acc2 + b2_ref[...]) * s2_ref[...] + t2_ref[...]

    # -- enc_lin: consume conv2 output position-by-position (no flatten needed).
    h = jnp.zeros((B, NODE1), f32)
    for pos in range(NP):
        h = h + jnp.dot(out2_ref[pos * B:(pos + 1) * B, :],
                        w3_ref[pos * F2:(pos + 1) * F2, :],
                        preferred_element_type=f32)
    h = lrelu(h + b3_ref[...]) * s3_ref[...] + t3_ref[...]

    # -- mu and log_var fused into a single GEMM (N = 2*latent); K chunked at
    #    128-aligned offsets to keep weight slices register friendly.
    out = jnp.zeros((B, wmv_ref.shape[1]), f32)
    for k0 in range(0, NODE1, 256):
        kw = min(256, NODE1 - k0)
        out = out + jnp.dot(h[:, k0:k0 + kw], wmv_ref[k0:k0 + kw, :],
                            preferred_element_type=f32)
    out_ref[...] = out + bmv_ref[...]


# ----------------------------------------------------------------------------
# Host-side, once-per-model parameter preparation (BN folding + weight relayout)
# ----------------------------------------------------------------------------
def _bn_fold(gamma, beta, mean, var, eps=1e-5):
    scale = gamma / jnp.sqrt(var + eps)
    return scale, beta - mean * scale


def prepare_params(p, h_in):
    f1 = p['w1'].shape[0]
    f2, _, k2, _ = p['w2'].shape
    node1, feat = p['w3'].shape
    npos = feat // f2                      # conv2 output positions (dim*dim)
    wp = h_in + 2                          # padded conv1 input width
    h1 = (wp - 4) // 2 + 1                 # conv1 output size (14)
    hp = h1 + 2                            # padded conv1 output size (16)

    # conv1 as a banded "row GEMM" weight (4*wp, hp*f1): column (pc*f1 + oc) is
    # padded output column pc; pad columns 0 and hp-1 are identically zero so the
    # GEMM emits full, already-padded rows.
    w1_rc = jnp.transpose(p['w1'][:, 0], (1, 2, 0))            # (4, 4, f1)
    w1_big = jnp.zeros((4, wp, hp, f1), jnp.float32)
    for ow in range(h1):
        w1_big = w1_big.at[:, 2 * ow:2 * ow + 4, ow + 1, :].set(w1_rc)
    w1_big = w1_big.reshape(4 * wp, hp * f1)

    sc1, sh1 = _bn_fold(p['g1'], p['be1'], p['m1'], p['v1'])
    sc2, sh2 = _bn_fold(p['g2'], p['be2'], p['m2'], p['v2'])
    sc3, sh3 = _bn_fold(p['g3'], p['be3'], p['m3'], p['v3'])

    zf1 = jnp.zeros((f1,), jnp.float32)
    return {
        'w1': w1_big,
        'b1': jnp.concatenate([zf1, jnp.tile(p['b1'], h1), zf1])[None, :],
        's1': jnp.concatenate([zf1, jnp.tile(sc1, h1), zf1])[None, :],
        't1': jnp.concatenate([zf1, jnp.tile(sh1, h1), zf1])[None, :],
        # conv2 weight, rows ordered (kh, kw, ic) to match the in-kernel gather.
        'w2': jnp.transpose(p['w2'], (2, 3, 1, 0)).reshape(k2 * k2 * f1, f2),
        'b2': p['b2'][None, :], 's2': sc2[None, :], 't2': sh2[None, :],
        # enc_lin weight, rows ordered (pos, channel); PyTorch flatten is
        # (channel, pos), so reorder once here instead of transposing activations.
        'w3': jnp.transpose(p['w3'].reshape(node1, f2, npos),
                            (2, 1, 0)).reshape(feat, node1),
        'b3': p['b3'][None, :], 's3': sc3[None, :], 't3': sh3[None, :],
        # mu / log_var fused: (node1, 2*latent)
        'wmv': jnp.concatenate([p['w_mu'].T, p['w_lv'].T], axis=1),
        'bmv': jnp.concatenate([p['b_mu'], p['b_lv']])[None, :],
    }


def _build_cols1(x):
    """Rows of the conv1 row-GEMM: row (b, oh) = padded input rows [2oh, 2oh+4)
    x all padded columns, flattened (conv1: k=4, s=2, pad=1)."""
    B, _, H, W = x.shape
    h1 = (H + 2 - 4) // 2 + 1
    xp = jnp.pad(x[:, 0], ((0, 0), (1, 1), (1, 1)))            # (B, H+2, W+2)
    xp2 = xp.reshape(B, (H + 2) // 2, 2, W + 2)
    c = jnp.concatenate([xp2[:, :h1], xp2[:, 1:h1 + 1]], axis=2)   # (B, h1, 4, W+2)
    return c.reshape(B * h1, 4 * (W + 2))


# ----------------------------------------------------------------------------
# Encoder forward (eval mode): one pallas_call for the whole network
# ----------------------------------------------------------------------------
@jax.jit
def encoder_forward(prep, x):
    B, _, H, W = x.shape
    K2, S2 = 7, 4
    h1 = (H + 2 - 4) // 2 + 1                 # conv1 output size (14)
    hp = h1 + 2                               # padded (16)
    ho2 = (h1 + 2 - K2) // S2 + 1             # conv2 output size (3)
    npos = ho2 * ho2
    f1 = prep['b1'].shape[1] // hp
    f2 = prep['b2'].shape[1]
    nout = prep['wmv'].shape[1]

    cols1 = _build_cols1(x)

    flops = 2 * (cols1.shape[0] * cols1.shape[1] * prep['w1'].shape[1]
                 + B * npos * prep['w2'].shape[0] * f2
                 + B * prep['w3'].shape[0] * prep['w3'].shape[1]
                 + B * prep['wmv'].shape[0] * nout)
    bytes_accessed = 4 * (cols1.size + sum(v.size for v in prep.values())
                          + B * nout)

    kernel = functools.partial(_encoder_kernel, B=B, F1=f1, H1=h1,
                               KH2=K2, S2=S2, HO2=ho2, slope=0.01)
    out = pl.pallas_call(
        kernel,
        out_shape=jax.ShapeDtypeStruct((B, nout), jnp.float32),
        scratch_shapes=[
            pltpu.VMEM((B * hp, hp * f1), jnp.float32),          # padded conv1 plane
            pltpu.VMEM((K2 * npos * B, K2 * f1), jnp.float32),   # conv2 im2col rows
            pltpu.VMEM((npos * B, f2), jnp.float32),             # conv2 output
        ],
        cost_estimate=pl.CostEstimate(flops=flops, transcendentals=0,
                                      bytes_accessed=bytes_accessed),
    )(cols1, prep['w1'], prep['b1'], prep['s1'], prep['t1'],
      prep['w2'], prep['b2'], prep['s2'], prep['t2'],
      prep['w3'], prep['b3'], prep['s3'], prep['t3'],
      prep['wmv'], prep['bmv'])

    latent = nout // 2
    mu = out[:, :latent]
    log_var = out[:, latent:]
    # TODO(synk): training-mode reparameterize (eps ~ N(0,1)), Dropout and
    # batch-stat BatchNorm are not implemented; eval-mode forward: z = mu.
    z = mu
    return z, mu, log_var


# ----------------------------------------------------------------------------
# Deterministic parameter init (shapes from Encoder.__init__, PyTorch-style bounds)
# ----------------------------------------------------------------------------
def init_params(key, latent=16, dim=3, f1=32, f2=32, node1=800):
    ks = list(jax.random.split(key, 20))

    def uni(k, shape, bound):
        return jax.random.uniform(k, shape, jnp.float32, -bound, bound)

    def bn(k, n):
        k1, k2, k3, k4 = jax.random.split(k, 4)
        gamma = 1.0 + 0.05 * jax.random.uniform(k1, (n,), jnp.float32, -1.0, 1.0)
        beta = 0.05 * jax.random.uniform(k2, (n,), jnp.float32, -1.0, 1.0)
        mean = 0.05 * jax.random.uniform(k3, (n,), jnp.float32, -1.0, 1.0)
        var = 1.0 + 0.1 * jax.random.uniform(k4, (n,), jnp.float32, 0.0, 1.0)
        return gamma, beta, mean, var

    feat = f2 * dim * dim
    b1 = 1.0 / jnp.sqrt(1 * 4 * 4)
    b2 = 1.0 / jnp.sqrt(f1 * 7 * 7)
    b3 = 1.0 / jnp.sqrt(feat)
    b4 = 1.0 / jnp.sqrt(node1)

    g1, be1, m1, v1 = bn(ks[4], f1)
    g2, be2, m2, v2 = bn(ks[5], f2)
    g3, be3, m3, v3 = bn(ks[6], node1)

    return {
        'w1': uni(ks[0], (f1, 1, 4, 4), b1), 'b1': uni(ks[1], (f1,), b1),
        'w2': uni(ks[2], (f2, f1, 7, 7), b2), 'b2': uni(ks[3], (f2,), b2),
        'g1': g1, 'be1': be1, 'm1': m1, 'v1': v1,
        'g2': g2, 'be2': be2, 'm2': m2, 'v2': v2,
        'w3': uni(ks[7], (node1, feat), b3), 'b3': uni(ks[8], (node1,), b3),
        'g3': g3, 'be3': be3, 'm3': m3, 'v3': v3,
        'w_mu': uni(ks[9], (latent, node1), b4), 'b_mu': uni(ks[10], (latent,), b4),
        'w_lv': uni(ks[11], (latent, node1), b4), 'b_lv': uni(ks[12], (latent,), b4),
    }


# ----------------------------------------------------------------------------
# Pure-JAX reference (HIGHEST precision) for a sanity check of the Pallas path
# ----------------------------------------------------------------------------
def _reference_forward(p, x):
    hi = lax.Precision.HIGHEST

    def conv(h, w, b, s, pad):
        y = lax.conv_general_dilated(
            h, w, (s, s), [(pad, pad), (pad, pad)],
            dimension_numbers=('NCHW', 'OIHW', 'NCHW'), precision=hi)
        return y + b.reshape(1, -1, 1, 1)

    def lrelu(y):
        return jnp.where(y >= 0, y, 0.01 * y)

    def bn4(y, g, be, m, v):
        sc, sh = _bn_fold(g, be, m, v)
        return y * sc.reshape(1, -1, 1, 1) + sh.reshape(1, -1, 1, 1)

    h = bn4(lrelu(conv(x, p['w1'], p['b1'], 2, 1)), p['g1'], p['be1'], p['m1'], p['v1'])
    h = bn4(lrelu(conv(h, p['w2'], p['b2'], 4, 1)), p['g2'], p['be2'], p['m2'], p['v2'])
    h = h.reshape(h.shape[0], -1)
    h = lrelu(jnp.dot(h, p['w3'].T, precision=hi) + p['b3'])
    sc3, sh3 = _bn_fold(p['g3'], p['be3'], p['m3'], p['v3'])
    h = h * sc3 + sh3
    mu = jnp.dot(h, p['w_mu'].T, precision=hi) + p['b_mu']
    lv = jnp.dot(h, p['w_lv'].T, precision=hi) + p['b_lv']
    return mu, lv


if __name__ == "__main__":
    key = jax.random.PRNGKey(0)
    kp, kx = jax.random.split(key)

    latent, dim = 16, 3               # Encoder(latent=16, dim=3): 28x28 -> 14x14 -> 3x3
    params = init_params(kp, latent=latent, dim=dim)
    x = jax.random.normal(kx, (2, 1, 28, 28), jnp.float32)

    prep = prepare_params(params, h_in=x.shape[-1])
    z, mu, log_var = encoder_forward(prep, x)
    jax.block_until_ready((z, mu, log_var))

    mu_r, lv_r = _reference_forward(params, x)
    assert z.shape == (2, latent) and mu.shape == (2, latent) and log_var.shape == (2, latent)
    assert jnp.allclose(mu, mu_r, atol=1e-2, rtol=1e-2)
    assert jnp.allclose(log_var, lv_r, atol=1e-2, rtol=1e-2)
    assert jnp.array_equal(z, mu)     # eval-mode reparameterize

    print("KERNEL_OK")
</pallas_src>

<mosaic_0001>
module attributes {stable_mosaic.version = 11 : i64} {
  func.func @_encoder_kernel(%arg0: memref<28x120xf32, #tpu.memory_space<vmem>>, %arg1: memref<120x512xf32, #tpu.memory_space<vmem>>, %arg2: memref<1x512xf32, #tpu.memory_space<vmem>>, %arg3: memref<1x512xf32, #tpu.memory_space<vmem>>, %arg4: memref<1x512xf32, #tpu.memory_space<vmem>>, %arg5: memref<1568x32xf32, #tpu.memory_space<vmem>>, %arg6: memref<1x32xf32, #tpu.memory_space<vmem>>, %arg7: memref<1x32xf32, #tpu.memory_space<vmem>>, %arg8: memref<1x32xf32, #tpu.memory_space<vmem>>, %arg9: memref<288x800xf32, #tpu.memory_space<vmem>>, %arg10: memref<1x800xf32, #tpu.memory_space<vmem>>, %arg11: memref<1x800xf32, #tpu.memory_space<vmem>>, %arg12: memref<1x800xf32, #tpu.memory_space<vmem>>, %arg13: memref<800x32xf32, #tpu.memory_space<vmem>>, %arg14: memref<1x32xf32, #tpu.memory_space<vmem>>, %arg15: memref<2x32xf32, #tpu.memory_space<vmem>>, %arg16: memref<32x512xf32, #tpu.memory_space<vmem>>, %arg17: memref<126x224xf32, #tpu.memory_space<vmem>>, %arg18: memref<18x32xf32, #tpu.memory_space<vmem>>) attributes {dimension_semantics = [], scalar_prefetch = 0 : i64, scratch_operands = 3 : i64, tpu.core_type = #tpu.core_type<tc>} {
    %cst = arith.constant 0.000000e+00 : f32
    %0 = vector.broadcast %cst : f32 to vector<32x512xf32>
    %c0 = arith.constant 0 : index
    %c0_0 = arith.constant 0 : index
    %1 = vector.load %arg16[%c0, %c0_0] : memref<32x512xf32, #tpu.memory_space<vmem>>, vector<32x512xf32>
    tpu.vector_store %arg16[%c0, %c0_0], %0 {strides = array<i32>} : memref<32x512xf32, #tpu.memory_space<vmem>>, vector<32x512xf32>,
    %c0_1 = arith.constant 0 : index
    %c0_2 = arith.constant 0 : index
    %2 = vector.load %arg0[%c0_1, %c0_2] : memref<28x120xf32, #tpu.memory_space<vmem>>, vector<14x120xf32>
    %c0_3 = arith.constant 0 : index
    %c0_4 = arith.constant 0 : index
    %3 = vector.load %arg1[%c0_3, %c0_4] : memref<120x512xf32, #tpu.memory_space<vmem>>, vector<120x512xf32>
    %cst_5 = arith.constant dense<0.000000e+00> : vector<14x512xf32>
    %4 = tpu.matmul %2, %3, %cst_5 {dimension_numbers = #tpu.dot_dimension_numbers<[1], [0], [0], [1], [0, 0, 1, 1], [], []>} : vector<14x120xf32>, vector<120x512xf32>, vector<14x512xf32> -> vector<14x512xf32>
    %c0_6 = arith.constant 0 : index
    %c0_7 = arith.constant 0 : index
    %5 = vector.load %arg2[%c0_6, %c0_7] : memref<1x512xf32, #tpu.memory_space<vmem>>, vector<1x512xf32>
    %6 = vector.broadcast %5 : vector<1x512xf32> to vector<14x512xf32>
    %7 = arith.addf %4, %6 : vector<14x512xf32>
    %cst_8 = arith.constant 0.000000e+00 : f32
    %8 = vector.broadcast %cst_8 : f32 to vector<14x512xf32>
    %9 = arith.cmpf oge, %7, %8 : vector<14x512xf32>
    %cst_9 = arith.constant 0.00999999977 : f32
    %10 = vector.broadcast %cst_9 : f32 to vector<14x512xf32>
    %11 = arith.mulf %10, %7 : vector<14x512xf32>
    %12 = arith.select %9, %7, %11 : vector<14x512xi1>, vector<14x512xf32>
    %c0_10 = arith.constant 0 : index
    %c0_11 = arith.constant 0 : index
    %13 = vector.load %arg3[%c0_10, %c0_11] : memref<1x512xf32, #tpu.memory_space<vmem>>, vector<1x512xf32>
    %14 = vector.broadcast %13 : vector<1x512xf32> to vector<14x512xf32>
    %15 = arith.mulf %12, %14 : vector<14x512xf32>
    %c0_12 = arith.constant 0 : index
    %c0_13 = arith.constant 0 : index
    %16 = vector.load %arg4[%c0_12, %c0_13] : memref<1x512xf32, #tpu.memory_space<vmem>>, vector<1x512xf32>
    %17 = vector.broadcast %16 : vector<1x512xf32> to vector<14x512xf32>
    %18 = arith.addf %15, %17 : vector<14x512xf32>
    %c0_14 = arith.constant 0 : index
    %c0_15 = arith.constant 0 : index
    %19 = vector.load %arg16[%c0_14, %c0_15] : memref<32x512xf32, #tpu.memory_space<vmem>>, vector<14x512xf32>
    tpu.vector_store %arg16[%c0_14, %c0_15], %18 {strides = array<i32>} : memref<32x512xf32, #tpu.memory_space<vmem>>, vector<14x512xf32>,
    %c14 = arith.constant 14 : index
    %c0_16 = arith.constant 0 : index
    %20 = vector.load %arg0[%c14, %c0_16] : memref<28x120xf32, #tpu.memory_space<vmem>>, vector<14x120xf32>
    %c0_17 = arith.constant 0 : index
    %c0_18 = arith.constant 0 : index
    %21 = vector.load %arg1[%c0_17, %c0_18] : memref<120x512xf32, #tpu.memory_space<vmem>>, vector<120x512xf32>
    %cst_19 = arith.constant dense<0.000000e+00> : vector<14x512xf32>
    %22 = tpu.matmul %20, %21, %cst_19 {dimension_numbers = #tpu.dot_dimension_numbers<[1], [0], [0], [1], [0, 0, 1, 1], [], []>} : vector<14x120xf32>, vector<120x512xf32>, vector<14x512xf32> -> vector<14x512xf32>
    %c0_20 = arith.constant 0 : index
    %c0_21 = arith.constant 0 : index
    %23 = vector.load %arg2[%c0_20, %c0_21] : memref<1x512xf32, #tpu.memory_space<vmem>>, vector<1x512xf32>
    %24 = vector.broadcast %23 : vector<1x512xf32> to vector<14x512xf32>
    %25 = arith.addf %22, %24 : vector<14x512xf32>
    %cst_22 = arith.constant 0.000000e+00 : f32
    %26 = vector.broadcast %cst_22 : f32 to vector<14x512xf32>
    %27 = arith.cmpf oge, %25, %26 : vector<14x512xf32>
    %cst_23 = arith.constant 0.00999999977 : f32
    %28 = vector.broadcast %cst_23 : f32 to vector<14x512xf32>
    %29 = arith.mulf %28, %25 : vector<14x512xf32>
    %30 = arith.select %27, %25, %29 : vector<14x512xi1>, vector<14x512xf32>
    %c0_24 = arith.constant 0 : index
    %c0_25 = arith.constant 0 : index
    %31 = vector.load %arg3[%c0_24, %c0_25] : memref<1x512xf32, #tpu.memory_space<vmem>>, vector<1x512xf32>
    %32 = vector.broadcast %31 : vector<1x512xf32> to vector<14x512xf32>
    %33 = arith.mulf %30, %32 : vector<14x512xf32>
    %c0_26 = arith.constant 0 : index
    %c0_27 = arith.constant 0 : index
    %34 = vector.load %arg4[%c0_26, %c0_27] : memref<1x512xf32, #tpu.memory_space<vmem>>, vector<1x512xf32>
    %35 = vector.broadcast %34 : vector<1x512xf32> to vector<14x512xf32>
    %36 = arith.addf %33, %35 : vector<14x512xf32>
    %c16 = arith.constant 16 : index
    %c0_28 = arith.constant 0 : index
    %37 = vector.load %arg16[%c16, %c0_28] : memref<32x512xf32, #tpu.memory_space<vmem>>, vector<14x512xf32>
    tpu.vector_store %arg16[%c16, %c0_28], %36 {strides = array<i32>} : memref<32x512xf32, #tpu.memory_space<vmem>>, vector<14x512xf32>,
    %c15 = arith.constant 15 : index
    %c0_29 = arith.constant 0 : index
    %38 = vector.load %arg16[%c15, %c0_29] : memref<32x512xf32, #tpu.memory_space<vmem>>, vector<1x224xf32>
    %c0_30 = arith.constant 0 : index
    %c0_31 = arith.constant 0 : index
    %39 = vector.load %arg17[%c0_30, %c0_31] : memref<126x224xf32, #tpu.memory_space<vmem>>, vector<1x224xf32>
    tpu.vector_store %arg17[%c0_30, %c0_31], %38 {strides = array<i32>} : memref<126x224xf32, #tpu.memory_space<vmem>>, vector<1x224xf32>,
    %c0_32 = arith.constant 0 : index
    %c0_33 = arith.constant 0 : index
    %40 = vector.load %arg16[%c0_32, %c0_33] : memref<32x512xf32, #tpu.memory_space<vmem>>, vector<1x224xf32>
    %c18 = arith.constant 18 : index
    %c0_34 = arith.constant 0 : index
    %41 = vector.load %arg17[%c18, %c0_34] : memref<126x224xf32, #tpu.memory_space<vmem>>, vector<1x224xf32>
    tpu.vector_store %arg17[%c18, %c0_34], %40 {strides = array<i32>} : memref<126x224xf32, #tpu.memory_space<vmem>>, vector<1x224xf32>,
    %c1 = arith.constant 1 : index
    %c0_35 = arith.constant 0 : index
    %42 = vector.load %arg16[%c1, %c0_35] : memref<32x512xf32, #tpu.memory_space<vmem>>, vector<1x224xf32>
    %c36 = arith.constant 36 : index
    %c0_36 = arith.constant 0 : index
    %43 = vector.load %arg17[%c36, %c0_36] : memref<126x224xf32, #tpu.memory_space<vmem>>, vector<1x224xf32>
    tpu.vector_store %arg17[%c36, %c0_36], %42 {strides = array<i32>} : memref<126x224xf32, #tpu.memory_space<vmem>>, vector<1x224xf32>,
    %c2 = arith.constant 2 : index
    %c0_37 = arith.constant 0 : index
    %44 = vector.load %arg16[%c2, %c0_37] : memref<32x512xf32, #tpu.memory_space<vmem>>, vector<1x224xf32>
    %c54 = arith.constant 54 : index
    %c0_38 = arith.constant 0 : index
    %45 = vector.load %arg17[%c54, %c0_38] : memref<126x224xf32, #tpu.memory_space<vmem>>, vector<1x224xf32>
    tpu.vector_store %arg17[%c54, %c0_38], %44 {strides = array<i32>} : memref<126x224xf32, #tpu.memory_space<vmem>>, vector<1x224xf32>,
    %c3 = arith.constant 3 : index
    %c0_39 = arith.constant 0 : index
    %46 = vector.load %arg16[%c3, %c0_39] : memref<32x512xf32, #tpu.memory_space<vmem>>, vector<1x224xf32>
    %c72 = arith.constant 72 : index
    %c0_40 = arith.constant 0 : index
    %47 = vector.load %arg17[%c72, %c0_40] : memref<126x224xf32, #tpu.memory_space<vmem>>, vector<1x224xf32>
    tpu.vector_store %arg17[%c72, %c0_40], %46 {strides = array<i32>} : memref<126x224xf32, #tpu.memory_space<vmem>>, vector<1x224xf32>,
    %c4 = arith.constant 4 : index
    %c0_41 = arith.constant 0 : index
    %48 = vector.load %arg16[%c4, %c0_41] : memref<32x512xf32, #tpu.memory_space<vmem>>, vector<1x224xf32>
    %c90 = arith.constant 90 : index
    %c0_42 = arith.constant 0 : index
    %49 = vector.load %arg17[%c90, %c0_42] : memref<126x224xf32, #tpu.memory_space<vmem>>, vector<1x224xf32>
    tpu.vector_store %arg17[%c90, %c0_42], %48 {strides = array<i32>} : memref<126x224xf32, #tpu.memory_space<vmem>>, vector<1x224xf32>,
    %c5 = arith.constant 5 : index
    %c0_43 = arith.constant 0 : index
    %50 = vector.load %arg16[%c5, %c0_43] : memref<32x512xf32, #tpu.memory_space<vmem>>, vector<1x224xf32>
    %c108 = arith.constant 108 : index
    %c0_44 = arith.constant 0 : index
    %51 = vector.load %arg17[%c108, %c0_44] : memref<126x224xf32, #tpu.memory_space<vmem>>, vector<1x224xf32>
    tpu.vector_store %arg17[%c108, %c0_44], %50 {strides = array<i32>} : memref<126x224xf32, #tpu.memory_space<vmem>>, vector<1x224xf32>,
    %c15_45 = arith.constant 15 : index
    %c128 = arith.constant 128 : index
    %52 = vector.load %arg16[%c15_45, %c128] : memref<32x512xf32, #tpu.memory_space<vmem>>, vector<1x224xf32>
    %c2_46 = arith.constant 2 : index
    %c0_47 = arith.constant 0 : index
    %53 = vector.load %arg17[%c2_46, %c0_47] : memref<126x224xf32, #tpu.memory_space<vmem>>, vector<1x224xf32>
    tpu.vector_store %arg17[%c2_46, %c0_47], %52 {strides = array<i32>} : memref<126x224xf32, #tpu.memory_space<vmem>>, vector<1x224xf32>,
    %c0_48 = arith.constant 0 : index
    %c128_49 = arith.constant 128 : index
    %54 = vector.load %arg16[%c0_48, %c128_49] : memref<32x512xf32, #tpu.memory_space<vmem>>, vector<1x224xf32>
    %c20 = arith.constant 20 : index
    %c0_50 = arith.constant 0 : index
    %55 = vector.load %arg17[%c20, %c0_50] : memref<126x224xf32, #tpu.memory_space<vmem>>, vector<1x224xf32>
    tpu.vector_store %arg17[%c20, %c0_50], %54 {strides = array<i32>} : memref<126x224xf32, #tpu.memory_space<vmem>>, vector<1x224xf32>,
    %c1_51 = arith.constant 1 : index
    %c128_52 = arith.constant 128 : index
    %56 = vector.load %arg16[%c1_51, %c128_52] : memref<32x512xf32, #tpu.memory_space<vmem>>, vector<1x224xf32>
    %c38 = arith.constant 38 : index
    %c0_53 = arith.constant 0 : index
    %57 = vector.load %arg17[%c38, %c0_53] : memref<126x224xf32, #tpu.memory_space<vmem>>, vector<1x224xf32>
    tpu.vector_store %arg17[%c38, %c0_53], %56 {strides = array<i32>} : memref<126x224xf32, #tpu.memory_space<vmem>>, vector<1x224xf32>,
    %c2_54 = arith.constant 2 : index
    %c128_55 = arith.constant 128 : index
    %58 = vector.load %arg16[%c2_54, %c128_55] : memref<32x512xf32, #tpu.memory_space<vmem>>, vector<1x224xf32>
    %c56 = arith.constant 56 : index
    %c0_56 = arith.constant 0 : index
    %59 = vector.load %arg17[%c56, %c0_56] : memref<126x224xf32, #tpu.memory_space<vmem>>, vector<1x224xf32>
    tpu.vector_store %arg17[%c56, %c0_56], %58 {strides = array<i32>} : memref<126x224xf32, #tpu.memory_space<vmem>>, vector<1x224xf32>,
    %c3_57 = arith.constant 3 : index
    %c128_58 = arith.constant 128 : index
    %60 = vector.load %arg16[%c3_57, %c128_58] : memref<32x512xf32, #tpu.memory_space<vmem>>, vector<1x224xf32>
    %c74 = arith.constant 74 : index
    %c0_59 = arith.constant 0 : index
    %61 = vector.load %arg17[%c74, %c0_59] : memref<126x224xf32, #tpu.memory_space<vmem>>, vector<1x224xf32>
    tpu.vector_store %arg17[%c74, %c0_59], %60 {strides = array<i32>} : memref<126x224xf32, #tpu.memory_space<vmem>>, vector<1x224xf32>,
    %c4_60 = arith.constant 4 : index
    %c128_61 = arith.constant 128 : index
    %62 = vector.load %arg16[%c4_60, %c128_61] : memref<32x512xf32, #tpu.memory_space<vmem>>, vector<1x224xf32>
    %c92 = arith.constant 92 : index
    %c0_62 = arith.constant 0 : index
    %63 = vector.load %arg17[%c92, %c0_62] : memref<126x224xf32, #tpu.memory_space<vmem>>, vector<1x224xf32>
    tpu.vector_store %arg17[%c92, %c0_62], %62 {strides = array<i32>} : memref<126x224xf32, #tpu.memory_space<vmem>>, vector<1x224xf32>,
    %c5_63 = arith.constant 5 : index
    %c128_64 = arith.constant 128 : index
    %64 = vector.load %arg16[%c5_63, %c128_64] : memref<32x512xf32, #tpu.memory_space<vmem>>, vector<1x224xf32>
    %c110 = arith.constant 110 : index
    %c0_65 = arith.constant 0 : index
    %65 = vector.load %arg17[%c110, %c0_65] : memref<126x224xf32, #tpu.memory_space<vmem>>, vector<1x224xf32>
    tpu.vector_store %arg17[%c110, %c0_65], %64 {strides = array<i32>} : memref<126x224xf32, #tpu.memory_space<vmem>>, vector<1x224xf32>,
    %c15_66 = arith.constant 15 : index
    %c256 = arith.constant 256 : index
    %66 = vector.load %arg16[%c15_66, %c256] : memref<32x512xf32, #tpu.memory_space<vmem>>, vector<1x224xf32>
    %c4_67 = arith.constant 4 : index
    %c0_68 = arith.constant 0 : index
    %67 = vector.load %arg17[%c4_67, %c0_68] : memref<126x224xf32, #tpu.memory_space<vmem>>, vector<1x224xf32>
    tpu.vector_store %arg17[%c4_67, %c0_68], %66 {strides = array<i32>} : memref<126x224xf32, #tpu.memory_space<vmem>>, vector<1x224xf32>,
    %c0_69 = arith.constant 0 : index
    %c256_70 = arith.constant 256 : index
    %68 = vector.load %arg16[%c0_69, %c256_70] : memref<32x512xf32, #tpu.memory_space<vmem>>, vector<1x224xf32>
    %c22 = arith.constant 22 : index
    %c0_71 = arith.constant 0 : index
    %69 = vector.load %arg17[%c22, %c0_71] : memref<126x224xf32, #tpu.memory_space<vmem>>, vector<1x224xf32>
    tpu.vector_store %arg17[%c22, %c0_71], %68 {strides = array<i32>} : memref<126x224xf32, #tpu.memory_space<vmem>>, vector<1x224xf32>,
    %c1_72 = arith.constant 1 : index
    %c256_73 = arith.constant 256 : index
    %70 = vector.load %arg16[%c1_72, %c256_73] : memref<32x512xf32, #tpu.memory_space<vmem>>, vector<1x224xf32>
    %c40 = arith.constant 40 : index
    %c0_74 = arith.constant 0 : index
    %71 = vector.load %arg17[%c40, %c0_74] : memref<126x224xf32, #tpu.memory_space<vmem>>, vector<1x224xf32>
    tpu.vector_store %arg17[%c40, %c0_74], %70 {strides = array<i32>} : memref<126x224xf32, #tpu.memory_space<vmem>>, vector<1x224xf32>,
    %c2_75 = arith.constant 2 : index
    %c256_76 = arith.constant 256 : index
    %72 = vector.load %arg16[%c2_75, %c256_76] : memref<32x512xf32, #tpu.memory_space<vmem>>, vector<1x224xf32>
    %c58 = arith.constant 58 : index
    %c0_77 = arith.constant 0 : index
    %73 = vector.load %arg17[%c58, %c0_77] : memref<126x224xf32, #tpu.memory_space<vmem>>, vector<1x224xf32>
    tpu.vector_store %arg17[%c58, %c0_77], %72 {strides = array<i32>} : memref<126x224xf32, #tpu.memory_space<vmem>>, vector<1x224xf32>,
    %c3_78 = arith.constant 3 : index
    %c256_79 = arith.constant 256 : index
    %74 = vector.load %arg16[%c3_78, %c256_79] : memref<32x512xf32, #tpu.memory_space<vmem>>, vector<1x224xf32>
    %c76 = arith.constant 76 : index
    %c0_80 = arith.constant 0 : index
    %75 = vector.load %arg17[%c76, %c0_80] : memref<126x224xf32, #tpu.memory_space<vmem>>, vector<1x224xf32>
    tpu.vector_store %arg17[%c76, %c0_80], %74 {strides = array<i32>} : memref<126x224xf32, #tpu.memory_space<vmem>>, vector<1x224xf32>,
    %c4_81 = arith.constant 4 : index
    %c256_82 = arith.constant 256 : index
    %76 = vector.load %arg16[%c4_81, %c256_82] : memref<32x512xf32, #tpu.memory_space<vmem>>, vector<1x224xf32>
    %c94 = arith.constant 94 : index
    %c0_83 = arith.constant 0 : index
    %77 = vector.load %arg17[%c94, %c0_83] : memref<126x224xf32, #tpu.memory_space<vmem>>, vector<1x224xf32>
    tpu.vector_store %arg17[%c94, %c0_83], %76 {strides = array<i32>} : memref<126x224xf32, #tpu.memory_space<vmem>>, vector<1x224xf32>,
    %c5_84 = arith.constant 5 : index
    %c256_85 = arith.constant 256 : index
    %78 = vector.load %arg16[%c5_84, %c256_85] : memref<32x512xf32, #tpu.memory_space<vmem>>, vector<1x224xf32>
    %c112 = arith.constant 112 : index
    %c0_86 = arith.constant 0 : index
    %79 = vector.load %arg17[%c112, %c0_86] : memref<126x224xf32, #tpu.memory_space<vmem>>, vector<1x224xf32>
    tpu.vector_store %arg17[%c112, %c0_86], %78 {strides = array<i32>} : memref<126x224xf32, #tpu.memory_space<vmem>>, vector<1x224xf32>,
    %c3_87 = arith.constant 3 : index
    %c0_88 = arith.constant 0 : index
    %80 = vector.load %arg16[%c3_87, %c0_88] : memref<32x512xf32, #tpu.memory_space<vmem>>, vector<1x224xf32>
    %c6 = arith.constant 6 : index
    %c0_89 = arith.constant 0 : index
    %81 = vector.load %arg17[%c6, %c0_89] : memref<126x224xf32, #tpu.memory_space<vmem>>, vector<1x224xf32>
    tpu.vector_store %arg17[%c6, %c0_89], %80 {strides = array<i32>} : memref<126x224xf32, #tpu.memory_space<vmem>>, vector<1x224xf32>,
    %c4_90 = arith.constant 4 : index
    %c0_91 = arith.constant 0 : index
    %82 = vector.load %arg16[%c4_90, %c0_91] : memref<32x512xf32, #tpu.memory_space<vmem>>, vector<1x224xf32>
    %c24 = arith.constant 24 : index
    %c0_92 = arith.constant 0 : index
    %83 = vector.load %arg17[%c24, %c0_92] : memref<126x224xf32, #tpu.memory_space<vmem>>, vector<1x224xf32>
    tpu.vector_store %arg17[%c24, %c0_92], %82 {strides = array<i32>} : memref<126x224xf32, #tpu.memory_space<vmem>>, vector<1x224xf32>,
    %c5_93 = arith.constant 5 : index
    %c0_94 = arith.constant 0 : index
    %84 = vector.load %arg16[%c5_93, %c0_94] : memref<32x512xf32, #tpu.memory_space<vmem>>, vector<1x224xf32>
    %c42 = arith.constant 42 : index
    %c0_95 = arith.constant 0 : index
    %85 = vector.load %arg17[%c42, %c0_95] : memref<126x224xf32, #tpu.memory_space<vmem>>, vector<1x224xf32>
    tpu.vector_store %arg17[%c42, %c0_95], %84 {strides = array<i32>} : memref<126x224xf32, #tpu.memory_space<vmem>>, vector<1x224xf32>,
    %c6_96 = arith.constant 6 : index
    %c0_97 = arith.constant 0 : index
    %86 = vector.load %arg16[%c6_96, %c0_97] : memref<32x512xf32, #tpu.memory_space<vmem>>, vector<1x224xf32>
    %c60 = arith.constant 60 : index
    %c0_98 = arith.constant 0 : index
    %87 = vector.load %arg17[%c60, %c0_98] : memref<126x224xf32, #tpu.memory_space<vmem>>, vector<1x224xf32>
    tpu.vector_store %arg17[%c60, %c0_98], %86 {strides = array<i32>} : memref<126x224xf32, #tpu.memory_space<vmem>>, vector<1x224xf32>,
    %c7 = arith.constant 7 : index
    %c0_99 = arith.constant 0 : index
    %88 = vector.load %arg16[%c7, %c0_99] : memref<32x512xf32, #tpu.memory_space<vmem>>, vector<1x224xf32>
    %c78 = arith.constant 78 : index
    %c0_100 = arith.constant 0 : index
    %89 = vector.load %arg17[%c78, %c0_100] : memref<126x224xf32, #tpu.memory_space<vmem>>, vector<1x224xf32>
    tpu.vector_store %arg17[%c78, %c0_100], %88 {strides = array<i32>} : memref<126x224xf32, #tpu.memory_space<vmem>>, vector<1x224xf32>,
    %c8 = arith.constant 8 : index
    %c0_101 = arith.constant 0 : index
    %90 = vector.load %arg16[%c8, %c0_101] : memref<32x512xf32, #tpu.memory_space<vmem>>, vector<1x224xf32>
    %c96 = arith.constant 96 : index
    %c0_102 = arith.constant 0 : index
    %91 = vector.load %arg17[%c96, %c0_102] : memref<126x224xf32, #tpu.memory_space<vmem>>, vector<1x224xf32>
    tpu.vector_store %arg17[%c96, %c0_102], %90 {strides = array<i32>} : memref<126x224xf32, #tpu.memory_space<vmem>>, vector<1x224xf32>,
    %c9 = arith.constant 9 : index
    %c0_103 = arith.constant 0 : index
    %92 = vector.load %arg16[%c9, %c0_103] : memref<32x512xf32, #tpu.memory_space<vmem>>, vector<1x224xf32>
    %c114 = arith.constant 114 : index
    %c0_104 = arith.constant 0 : index
    %93 = vector.load %arg17[%c114, %c0_104] : memref<126x224xf32, #tpu.memory_space<vmem>>, vector<1x224xf32>
    tpu.vector_store %arg17[%c114, %c0_104], %92 {strides = array<i32>} : memref<126x224xf32, #tpu.memory_space<vmem>>, vector<1x224xf32>,
    %c3_105 = arith.constant 3 : index
    %c128_106 = arith.constant 128 : index
    %94 = vector.load %arg16[%c3_105, %c128_106] : memref<32x512xf32, #tpu.memory_space<vmem>>, vector<1x224xf32>
    %c8_107 = arith.constant 8 : index
    %c0_108 = arith.constant 0 : index
    %95 = vector.load %arg17[%c8_107, %c0_108] : memref<126x224xf32, #tpu.memory_space<vmem>>, vector<1x224xf32>
    tpu.vector_store %arg17[%c8_107, %c0_108], %94 {strides = array<i32>} : memref<126x224xf32, #tpu.memory_space<vmem>>, vector<1x224xf32>,
    %c4_109 = arith.constant 4 : index
    %c128_110 = arith.constant 128 : index
    %96 = vector.load %arg16[%c4_109, %c128_110] : memref<32x512xf32, #tpu.memory_space<vmem>>, vector<1x224xf32>
    %c26 = arith.constant 26 : index
    %c0_111 = arith.constant 0 : index
    %97 = vector.load %arg17[%c26, %c0_111] : memref<126x224xf32, #tpu.memory_space<vmem>>, vector<1x224xf32>
    tpu.vector_store %arg17[%c26, %c0_111], %96 {strides = array<i32>} : memref<126x224xf32, #tpu.memory_space<vmem>>, vector<1x224xf32>,
    %c5_112 = arith.constant 5 : index
    %c128_113 = arith.constant 128 : index
    %98 = vector.load %arg16[%c5_112, %c128_113] : memref<32x512xf32, #tpu.memory_space<vmem>>, vector<1x224xf32>
    %c44 = arith.constant 44 : index
    %c0_114 = arith.constant 0 : index
    %99 = vector.load %arg17[%c44, %c0_114] : memref<126x224xf32, #tpu.memory_space<vmem>>, vector<1x224xf32>
    tpu.vector_store %arg17[%c44, %c0_114], %98 {strides = array<i32>} : memref<126x224xf32, #tpu.memory_space<vmem>>, vector<1x224xf32>,
    %c6_115 = arith.constant 6 : index
    %c128_116 = arith.constant 128 : index
    %100 = vector.load %arg16[%c6_115, %c128_116] : memref<32x512xf32, #tpu.memory_space<vmem>>, vector<1x224xf32>
    %c62 = arith.constant 62 : index
    %c0_117 = arith.constant 0 : index
    %101 = vector.load %arg17[%c62, %c0_117] : memref<126x224xf32, #tpu.memory_space<vmem>>, vector<1x224xf32>
    tpu.vector_store %arg17[%c62, %c0_117], %100 {strides = array<i32>} : memref<126x224xf32, #tpu.memory_space<vmem>>, vector<1x224xf32>,
    %c7_118 = arith.constant 7 : index
    %c128_119 = arith.constant 128 : index
    %102 = vector.load %arg16[%c7_118, %c128_119] : memref<32x512xf32, #tpu.memory_space<vmem>>, vector<1x224xf32>
    %c80 = arith.constant 80 : index
    %c0_120 = arith.constant 0 : index
    %103 = vector.load %arg17[%c80, %c0_120] : memref<126x224xf32, #tpu.memory_space<vmem>>, vector<1x224xf32>
    tpu.vector_store %arg17[%c80, %c0_120], %102 {strides = array<i32>} : memref<126x224xf32, #tpu.memory_space<vmem>>, vector<1x224xf32>,
    %c8_121 = arith.constant 8 : index
    %c128_122 = arith.constant 128 : index
    %104 = vector.load %arg16[%c8_121, %c128_122] : memref<32x512xf32, #tpu.memory_space<vmem>>, vector<1x224xf32>
    %c98 = arith.constant 98 : index
    %c0_123 = arith.constant 0 : index
    %105 = vector.load %arg17[%c98, %c0_123] : memref<126x224xf32, #tpu.memory_space<vmem>>, vector<1x224xf32>
    tpu.vector_store %arg17[%c98, %c0_123], %104 {strides = array<i32>} : memref<126x224xf32, #tpu.memory_space<vmem>>, vector<1x224xf32>,
    %c9_124 = arith.constant 9 : index
    %c128_125 = arith.constant 128 : index
    %106 = vector.load %arg16[%c9_124, %c128_125] : memref<32x512xf32, #tpu.memory_space<vmem>>, vector<1x224xf32>
    %c116 = arith.constant 116 : index
    %c0_126 = arith.constant 0 : index
    %107 = vector.load %arg17[%c116, %c0_126] : memref<126x224xf32, #tpu.memory_space<vmem>>, vector<1x224xf32>
    tpu.vector_store %arg17[%c116, %c0_126], %106 {strides = array<i32>} : memref<126x224xf32, #tpu.memory_space<vmem>>, vector<1x224xf32>,
    %c3_127 = arith.constant 3 : index
    %c256_128 = arith.constant 256 : index
    %108 = vector.load %arg16[%c3_127, %c256_128] : memref<32x512xf32, #tpu.memory_space<vmem>>, vector<1x224xf32>
    %c10 = arith.constant 10 : index
    %c0_129 = arith.constant 0 : index
    %109 = vector.load %arg17[%c10, %c0_129] : memref<126x224xf32, #tpu.memory_space<vmem>>, vector<1x224xf32>
    tpu.vector_store %arg17[%c10, %c0_129], %108 {strides = array<i32>} : memref<126x224xf32, #tpu.memory_space<vmem>>, vector<1x224xf32>,
    %c4_130 = arith.constant 4 : index
    %c256_131 = arith.constant 256 : index
    %110 = vector.load %arg16[%c4_130, %c256_131] : memref<32x512xf32, #tpu.memory_space<vmem>>, vector<1x224xf32>
    %c28 = arith.constant 28 : index
    %c0_132 = arith.constant 0 : index
    %111 = vector.load %arg17[%c28, %c0_132] : memref<126x224xf32, #tpu.memory_space<vmem>>, vector<1x224xf32>
    tpu.vector_store %arg17[%c28, %c0_132], %110 {strides = array<i32>} : memref<126x224xf32, #tpu.memory_space<vmem>>, vector<1x224xf32>,
    %c5_133 = arith.constant 5 : index
    %c256_134 = arith.constant 256 : index
    %112 = vector.load %arg16[%c5_133, %c256_134] : memref<32x512xf32, #tpu.memory_space<vmem>>, vector<1x224xf32>
    %c46 = arith.constant 46 : index
    %c0_135 = arith.constant 0 : index
    %113 = vector.load %arg17[%c46, %c0_135] : memref<126x224xf32, #tpu.memory_space<vmem>>, vector<1x224xf32>
    tpu.vector_store %arg17[%c46, %c0_135], %112 {strides = array<i32>} : memref<126x224xf32, #tpu.memory_space<vmem>>, vector<1x224xf32>,
    %c6_136 = arith.constant 6 : index
    %c256_137 = arith.constant 256 : index
    %114 = vector.load %arg16[%c6_136, %c256_137] : memref<32x512xf32, #tpu.memory_space<vmem>>, vector<1x224xf32>
    %c64 = arith.constant 64 : index
    %c0_138 = arith.constant 0 : index
    %115 = vector.load %arg17[%c64, %c0_138] : memref<126x224xf32, #tpu.memory_space<vmem>>, vector<1x224xf32>
    tpu.vector_store %arg17[%c64, %c0_138], %114 {strides = array<i32>} : memref<126x224xf32, #tpu.memory_space<vmem>>, vector<1x224xf32>,
    %c7_139 = arith.constant 7 : index
    %c256_140 = arith.constant 256 : index
    %116 = vector.load %arg16[%c7_139, %c256_140] : memref<32x512xf32, #tpu.memory_space<vmem>>, vector<1x224xf32>
    %c82 = arith.constant 82 : index
    %c0_141 = arith.constant 0 : index
    %117 = vector.load %arg17[%c82, %c0_141] : memref<126x224xf32, #tpu.memory_space<vmem>>, vector<1x224xf32>
    tpu.vector_store %arg17[%c82, %c0_141], %116 {strides = array<i32>} : memref<126x224xf32, #tpu.memory_space<vmem>>, vector<1x224xf32>,
    %c8_142 = arith.constant 8 : index
    %c256_143 = arith.constant 256 : index
    %118 = vector.load %arg16[%c8_142, %c256_143] : memref<32x512xf32, #tpu.memory_space<vmem>>, vector<1x224xf32>
    %c100 = arith.constant 100 : index
    %c0_144 = arith.constant 0 : index
    %119 = vector.load %arg17[%c100, %c0_144] : memref<126x224xf32, #tpu.memory_space<vmem>>, vector<1x224xf32>
    tpu.vector_store %arg17[%c100, %c0_144], %118 {strides = array<i32>} : memref<126x224xf32, #tpu.memory_space<vmem>>, vector<1x224xf32>,
    %c9_145 = arith.constant 9 : index
    %c256_146 = arith.constant 256 : index
    %120 = vector.load %arg16[%c9_145, %c256_146] : memref<32x512xf32, #tpu.memory_space<vmem>>, vector<1x224xf32>
    %c118 = arith.constant 118 : index
    %c0_147 = arith.constant 0 : index
    %121 = vector.load %arg17[%c118, %c0_147] : memref<126x224xf32, #tpu.memory_space<vmem>>, vector<1x224xf32>
    tpu.vector_store %arg17[%c118, %c0_147], %120 {strides = array<i32>} : memref<126x224xf32, #tpu.memory_space<vmem>>, vector<1x224xf32>,
    %c7_148 = arith.constant 7 : index
    %c0_149 = arith.constant 0 : index
    %122 = vector.load %arg16[%c7_148, %c0_149] : memref<32x512xf32, #tpu.memory_space<vmem>>, vector<1x224xf32>
    %c12 = arith.constant 12 : index
    %c0_150 = arith.constant 0 : index
    %123 = vector.load %arg17[%c12, %c0_150] : memref<126x224xf32, #tpu.memory_space<vmem>>, vector<1x224xf32>
    tpu.vector_store %arg17[%c12, %c0_150], %122 {strides = array<i32>} : memref<126x224xf32, #tpu.memory_space<vmem>>, vector<1x224xf32>,
    %c8_151 = arith.constant 8 : index
    %c0_152 = arith.constant 0 : index
    %124 = vector.load %arg16[%c8_151, %c0_152] : memref<32x512xf32, #tpu.memory_space<vmem>>, vector<1x224xf32>
    %c30 = arith.constant 30 : index
    %c0_153 = arith.constant 0 : index
    %125 = vector.load %arg17[%c30, %c0_153] : memref<126x224xf32, #tpu.memory_space<vmem>>, vector<1x224xf32>
    tpu.vector_store %arg17[%c30, %c0_153], %124 {strides = array<i32>} : memref<126x224xf32, #tpu.memory_space<vmem>>, vector<1x224xf32>,
    %c9_154 = arith.constant 9 : index
    %c0_155 = arith.constant 0 : index
    %126 = vector.load %arg16[%c9_154, %c0_155] : memref<32x512xf32, #tpu.memory_space<vmem>>, vector<1x224xf32>
    %c48 = arith.constant 48 : index
    %c0_156 = arith.constant 0 : index
    %127 = vector.load %arg17[%c48, %c0_156] : memref<126x224xf32, #tpu.memory_space<vmem>>, vector<1x224xf32>
    tpu.vector_store %arg17[%c48, %c0_156], %126 {strides = array<i32>} : memref<126x224xf32, #tpu.memory_space<vmem>>, vector<1x224xf32>,
    %c10_157 = arith.constant 10 : index
    %c0_158 = arith.constant 0 : index
    %128 = vector.load %arg16[%c10_157, %c0_158] : memref<32x512xf32, #tpu.memory_space<vmem>>, vector<1x224xf32>
    %c66 = arith.constant 66 : index
    %c0_159 = arith.constant 0 : index
    %129 = vector.load %arg17[%c66, %c0_159] : memref<126x224xf32, #tpu.memory_space<vmem>>, vector<1x224xf32>
    tpu.vector_store %arg17[%c66, %c0_159], %128 {strides = array<i32>} : memref<126x224xf32, #tpu.memory_space<vmem>>, vector<1x224xf32>,
    %c11 = arith.constant 11 : index
    %c0_160 = arith.constant 0 : index
    %130 = vector.load %arg16[%c11, %c0_160] : memref<32x512xf32, #tpu.memory_space<vmem>>, vector<1x224xf32>
    %c84 = arith.constant 84 : index
    %c0_161 = arith.constant 0 : index
    %131 = vector.load %arg17[%c84, %c0_161] : memref<126x224xf32, #tpu.memory_space<vmem>>, vector<1x224xf32>
    tpu.vector_store %arg17[%c84, %c0_161], %130 {strides = array<i32>} : memref<126x224xf32, #tpu.memory_space<vmem>>, vector<1x224xf32>,
    %c12_162 = arith.constant 12 : index
    %c0_163 = arith.constant 0 : index
    %132 = vector.load %arg16[%c12_162, %c0_163] : memref<32x512xf32, #tpu.memory_space<vmem>>, vector<1x224xf32>
    %c102 = arith.constant 102 : index
    %c0_164 = arith.constant 0 : index
    %133 = vector.load %arg17[%c102, %c0_164] : memref<126x224xf32, #tpu.memory_space<vmem>>, vector<1x224xf32>
    tpu.vector_store %arg17[%c102, %c0_164], %132 {strides = array<i32>} : memref<126x224xf32, #tpu.memory_space<vmem>>, vector<1x224xf32>,
    %c13 = arith.constant 13 : index
    %c0_165 = arith.constant 0 : index
    %134 = vector.load %arg16[%c13, %c0_165] : memref<32x512xf32, #tpu.memory_space<vmem>>, vector<1x224xf32>
    %c120 = arith.constant 120 : index
    %c0_166 = arith.constant 0 : index
    %135 = vector.load %arg17[%c120, %c0_166] : memref<126x224xf32, #tpu.memory_space<vmem>>, vector<1x224xf32>
    tpu.vector_store %arg17[%c120, %c0_166], %134 {strides = array<i32>} : memref<126x224xf32, #tpu.memory_space<vmem>>, vector<1x224xf32>,
    %c7_167 = arith.constant 7 : index
    %c128_168 = arith.constant 128 : index
    %136 = vector.load %arg16[%c7_167, %c128_168] : memref<32x512xf32, #tpu.memory_space<vmem>>, vector<1x224xf32>
    %c14_169 = arith.constant 14 : index
    %c0_170 = arith.constant 0 : index
    %137 = vector.load %arg17[%c14_169, %c0_170] : memref<126x224xf32, #tpu.memory_space<vmem>>, vector<1x224xf32>
    tpu.vector_store %arg17[%c14_169, %c0_170], %136 {strides = array<i32>} : memref<126x224xf32, #tpu.memory_space<vmem>>, vector<1x224xf32>,
    %c8_171 = arith.constant 8 : index
    %c128_172 = arith.constant 128 : index
    %138 = vector.load %arg16[%c8_171, %c128_172] : memref<32x512xf32, #tpu.memory_space<vmem>>, vector<1x224xf32>
    %c32 = arith.constant 32 : index
    %c0_173 = arith.constant 0 : index
    %139 = vector.load %arg17[%c32, %c0_173] : memref<126x224xf32, #tpu.memory_space<vmem>>, vector<1x224xf32>
    tpu.vector_store %arg17[%c32, %c0_173], %138 {strides = array<i32>} : memref<126x224xf32, #tpu.memory_space<vmem>>, vector<1x224xf32>,
    %c9_174 = arith.constant 9 : index
    %c128_175 = arith.constant 128 : index
    %140 = vector.load %arg16[%c9_174, %c128_175] : memref<32x512xf32, #tpu.memory_space<vmem>>, vector<1x224xf32>
    %c50 = arith.constant 50 : index
    %c0_176 = arith.constant 0 : index
    %141 = vector.load %arg17[%c50, %c0_176] : memref<126x224xf32, #tpu.memory_space<vmem>>, vector<1x224xf32>
    tpu.vector_store %arg17[%c50, %c0_176], %140 {strides = array<i32>} : memref<126x224xf32, #tpu.memory_space<vmem>>, vector<1x224xf32>,
    %c10_177 = arith.constant 10 : index
    %c128_178 = arith.constant 128 : index
    %142 = vector.load %arg16[%c10_177, %c128_178] : memref<32x512xf32, #tpu.memory_space<vmem>>, vector<1x224xf32>
    %c68 = arith.constant 68 : index
    %c0_179 = arith.constant 0 : index
    %143 = vector.load %arg17[%c68, %c0_179] : memref<126x224xf32, #tpu.memory_space<vmem>>, vector<1x224xf32>
    tpu.vector_store %arg17[%c68, %c0_179], %142 {strides = array<i32>} : memref<126x224xf32, #tpu.memory_space<vmem>>, vector<1x224xf32>,
    %c11_180 = arith.constant 11 : index
    %c128_181 = arith.constant 128 : index
    %144 = vector.load %arg16[%c11_180, %c128_181] : memref<32x512xf32, #tpu.memory_space<vmem>>, vector<1x224xf32>
    %c86 = arith.constant 86 : index
    %c0_182 = arith.constant 0 : index
    %145 = vector.load %arg17[%c86, %c0_182] : memref<126x224xf32, #tpu.memory_space<vmem>>, vector<1x224xf32>
    tpu.vector_store %arg17[%c86, %c0_182], %144 {strides = array<i32>} : memref<126x224xf32, #tpu.memory_space<vmem>>, vector<1x224xf32>,
    %c12_183 = arith.constant 12 : index
    %c128_184 = arith.constant 128 : index
    %146 = vector.load %arg16[%c12_183, %c128_184] : memref<32x512xf32, #tpu.memory_space<vmem>>, vector<1x224xf32>
    %c104 = arith.constant 104 : index
    %c0_185 = arith.constant 0 : index
    %147 = vector.load %arg17[%c104, %c0_185] : memref<126x224xf32, #tpu.memory_space<vmem>>, vector<1x224xf32>
    tpu.vector_store %arg17[%c104, %c0_185], %146 {strides = array<i32>} : memref<126x224xf32, #tpu.memory_space<vmem>>, vector<1x224xf32>,
    %c13_186 = arith.constant 13 : index
    %c128_187 = arith.constant 128 : index
    %148 = vector.load %arg16[%c13_186, %c128_187] : memref<32x512xf32, #tpu.memory_space<vmem>>, vector<1x224xf32>
    %c122 = arith.constant 122 : index
    %c0_188 = arith.constant 0 : index
    %149 = vector.load %arg17[%c122, %c0_188] : memref<126x224xf32, #tpu.memory_space<vmem>>, vector<1x224xf32>
    tpu.vector_store %arg17[%c122, %c0_188], %148 {strides = array<i32>} : memref<126x224xf32, #tpu.memory_space<vmem>>, vector<1x224xf32>,
    %c7_189 = arith.constant 7 : index
    %c256_190 = arith.constant 256 : index
    %150 = vector.load %arg16[%c7_189, %c256_190] : memref<32x512xf32, #tpu.memory_space<vmem>>, vector<1x224xf32>
    %c16_191 = arith.constant 16 : index
    %c0_192 = arith.constant 0 : index
    %151 = vector.load %arg17[%c16_191, %c0_192] : memref<126x224xf32, #tpu.memory_space<vmem>>, vector<1x224xf32>
    tpu.vector_store %arg17[%c16_191, %c0_192], %150 {strides = array<i32>} : memref<126x224xf32, #tpu.memory_space<vmem>>, vector<1x224xf32>,
    %c8_193 = arith.constant 8 : index
    %c256_194 = arith.constant 256 : index
    %152 = vector.load %arg16[%c8_193, %c256_194] : memref<32x512xf32, #tpu.memory_space<vmem>>, vector<1x224xf32>
    %c34 = arith.constant 34 : index
    %c0_195 = arith.constant 0 : index
    %153 = vector.load %arg17[%c34, %c0_195] : memref<126x224xf32, #tpu.memory_space<vmem>>, vector<1x224xf32>
    tpu.vector_store %arg17[%c34, %c0_195], %152 {strides = array<i32>} : memref<126x224xf32, #tpu.memory_space<vmem>>, vector<1x224xf32>,
    %c9_196 = arith.constant 9 : index
    %c256_197 = arith.constant 256 : index
    %154 = vector.load %arg16[%c9_196, %c256_197] : memref<32x512xf32, #tpu.memory_space<vmem>>, vector<1x224xf32>
    %c52 = arith.constant 52 : index
    %c0_198 = arith.constant 0 : index
    %155 = vector.load %arg17[%c52, %c0_198] : memref<126x224xf32, #tpu.memory_space<vmem>>, vector<1x224xf32>
    tpu.vector_store %arg17[%c52, %c0_198], %154 {strides = array<i32>} : memref<126x224xf32, #tpu.memory_space<vmem>>, vector<1x224xf32>,
    %c10_199 = arith.constant 10 : index
    %c256_200 = arith.constant 256 : index
    %156 = vector.load %arg16[%c10_199, %c256_200] : memref<32x512xf32, #tpu.memory_space<vmem>>, vector<1x224xf32>
    %c70 = arith.constant 70 : index
    %c0_201 = arith.constant 0 : index
    %157 = vector.load %arg17[%c70, %c0_201] : memref<126x224xf32, #tpu.memory_space<vmem>>, vector<1x224xf32>
    tpu.vector_store %arg17[%c70, %c0_201], %156 {strides = array<i32>} : memref<126x224xf32, #tpu.memory_space<vmem>>, vector<1x224xf32>,
    %c11_202 = arith.constant 11 : index
    %c256_203 = arith.constant 256 : index
    %158 = vector.load %arg16[%c11_202, %c256_203] : memref<32x512xf32, #tpu.memory_space<vmem>>, vector<1x224xf32>
    %c88 = arith.constant 88 : index
    %c0_204 = arith.constant 0 : index
    %159 = vector.load %arg17[%c88, %c0_204] : memref<126x224xf32, #tpu.memory_space<vmem>>, vector<1x224xf32>
    tpu.vector_store %arg17[%c88, %c0_204], %158 {strides = array<i32>} : memref<126x224xf32, #tpu.memory_space<vmem>>, vector<1x224xf32>,
    %c12_205 = arith.constant 12 : index
    %c256_206 = arith.constant 256 : index
    %160 = vector.load %arg16[%c12_205, %c256_206] : memref<32x512xf32, #tpu.memory_space<vmem>>, vector<1x224xf32>
    %c106 = arith.constant 106 : index
    %c0_207 = arith.constant 0 : index
    %161 = vector.load %arg17[%c106, %c0_207] : memref<126x224xf32, #tpu.memory_space<vmem>>, vector<1x224xf32>
    tpu.vector_store %arg17[%c106, %c0_207], %160 {strides = array<i32>} : memref<126x224xf32, #tpu.memory_space<vmem>>, vector<1x224xf32>,
    %c13_208 = arith.constant 13 : index
    %c256_209 = arith.constant 256 : index
    %162 = vector.load %arg16[%c13_208, %c256_209] : memref<32x512xf32, #tpu.memory_space<vmem>>, vector<1x224xf32>
    %c124 = arith.constant 124 : index
    %c0_210 = arith.constant 0 : index
    %163 = vector.load %arg17[%c124, %c0_210] : memref<126x224xf32, #tpu.memory_space<vmem>>, vector<1x224xf32>
    tpu.vector_store %arg17[%c124, %c0_210], %162 {strides = array<i32>} : memref<126x224xf32, #tpu.memory_space<vmem>>, vector<1x224xf32>,
    %c31 = arith.constant 31 : index
    %c0_211 = arith.constant 0 : index
    %164 = vector.load %arg16[%c31, %c0_211] : memref<32x512xf32, #tpu.memory_space<vmem>>, vector<1x224xf32>
    %c1_212 = arith.constant 1 : index
    %c0_213 = arith.constant 0 : index
    %165 = vector.load %arg17[%c1_212, %c0_213] : memref<126x224xf32, #tpu.memory_space<vmem>>, vector<1x224xf32>
    tpu.vector_store %arg17[%c1_212, %c0_213], %164 {strides = array<i32>} : memref<126x224xf32, #tpu.memory_space<vmem>>, vector<1x224xf32>,
    %c16_214 = arith.constant 16 : index
    %c0_215 = arith.constant 0 : index
    %166 = vector.load %arg16[%c16_214, %c0_215] : memref<32x512xf32, #tpu.memory_space<vmem>>, vector<1x224xf32>
    %c19 = arith.constant 19 : index
    %c0_216 = arith.constant 0 : index
    %167 = vector.load %arg17[%c19, %c0_216] : memref<126x224xf32, #tpu.memory_space<vmem>>, vector<1x224xf32>
    tpu.vector_store %arg17[%c19, %c0_216], %166 {strides = array<i32>} : memref<126x224xf32, #tpu.memory_space<vmem>>, vector<1x224xf32>,
    %c17 = arith.constant 17 : index
    %c0_217 = arith.constant 0 : index
    %168 = vector.load %arg16[%c17, %c0_217] : memref<32x512xf32, #tpu.memory_space<vmem>>, vector<1x224xf32>
    %c37 = arith.constant 37 : index
    %c0_218 = arith.constant 0 : index
    %169 = vector.load %arg17[%c37, %c0_218] : memref<126x224xf32, #tpu.memory_space<vmem>>, vector<1x224xf32>
    tpu.vector_store %arg17[%c37, %c0_218], %168 {strides = array<i32>} : memref<126x224xf32, #tpu.memory_space<vmem>>, vector<1x224xf32>,
    %c18_219 = arith.constant 18 : index
    %c0_220 = arith.constant 0 : index
    %170 = vector.load %arg16[%c18_219, %c0_220] : memref<32x512xf32, #tpu.memory_space<vmem>>, vector<1x224xf32>
    %c55 = arith.constant 55 : index
    %c0_221 = arith.constant 0 : index
    %171 = vector.load %arg17[%c55, %c0_221] : memref<126x224xf32, #tpu.memory_space<vmem>>, vector<1x224xf32>
    tpu.vector_store %arg17[%c55, %c0_221], %170 {strides = array<i32>} : memref<126x224xf32, #tpu.memory_space<vmem>>, vector<1x224xf32>,
    %c19_222 = arith.constant 19 : index
    %c0_223 = arith.constant 0 : index
    %172 = vector.load %arg16[%c19_222, %c0_223] : memref<32x512xf32, #tpu.memory_space<vmem>>, vector<1x224xf32>
    %c73 = arith.constant 73 : index
    %c0_224 = arith.constant 0 : index
    %173 = vector.load %arg17[%c73, %c0_224] : memref<126x224xf32, #tpu.memory_space<vmem>>, vector<1x224xf32>
    tpu.vector_store %arg17[%c73, %c0_224], %172 {strides = array<i32>} : memref<126x224xf32, #tpu.memory_space<vmem>>, vector<1x224xf32>,
    %c20_225 = arith.constant 20 : index
    %c0_226 = arith.constant 0 : index
    %174 = vector.load %arg16[%c20_225, %c0_226] : memref<32x512xf32, #tpu.memory_space<vmem>>, vector<1x224xf32>
    %c91 = arith.constant 91 : index
    %c0_227 = arith.constant 0 : index
    %175 = vector.load %arg17[%c91, %c0_227] : memref<126x224xf32, #tpu.memory_space<vmem>>, vector<1x224xf32>
    tpu.vector_store %arg17[%c91, %c0_227], %174 {strides = array<i32>} : memref<126x224xf32, #tpu.memory_space<vmem>>, vector<1x224xf32>,
    %c21 = arith.constant 21 : index
    %c0_228 = arith.constant 0 : index
    %176 = vector.load %arg16[%c21, %c0_228] : memref<32x512xf32, #tpu.memory_space<vmem>>, vector<1x224xf32>
    %c109 = arith.constant 109 : index
    %c0_229 = arith.constant 0 : index
    %177 = vector.load %arg17[%c109, %c0_229] : memref<126x224xf32, #tpu.memory_space<vmem>>, vector<1x224xf32>
    tpu.vector_store %arg17[%c109, %c0_229], %176 {strides = array<i32>} : memref<126x224xf32, #tpu.memory_space<vmem>>, vector<1x224xf32>,
    %c31_230 = arith.constant 31 : index
    %c128_231 = arith.constant 128 : index
    %178 = vector.load %arg16[%c31_230, %c128_231] : memref<32x512xf32, #tpu.memory_space<vmem>>, vector<1x224xf32>
    %c3_232 = arith.constant 3 : index
    %c0_233 = arith.constant 0 : index
    %179 = vector.load %arg17[%c3_232, %c0_233] : memref<126x224xf32, #tpu.memory_space<vmem>>, vector<1x224xf32>
    tpu.vector_store %arg17[%c3_232, %c0_233], %178 {strides = array<i32>} : memref<126x224xf32, #tpu.memory_space<vmem>>, vector<1x224xf32>,
    %c16_234 = arith.constant 16 : index
    %c128_235 = arith.constant 128 : index
    %180 = vector.load %arg16[%c16_234, %c128_235] : memref<32x512xf32, #tpu.memory_space<vmem>>, vector<1x224xf32>
    %c21_236 = arith.constant 21 : index
    %c0_237 = arith.constant 0 : index
    %181 = vector.load %arg17[%c21_236, %c0_237] : memref<126x224xf32, #tpu.memory_space<vmem>>, vector<1x224xf32>
    tpu.vector_store %arg17[%c21_236, %c0_237], %180 {strides = array<i32>} : memref<126x224xf32, #tpu.memory_space<vmem>>, vector<1x224xf32>,
    %c17_238 = arith.constant 17 : index
    %c128_239 = arith.constant 128 : index
    %182 = vector.load %arg16[%c17_238, %c128_239] : memref<32x512xf32, #tpu.memory_space<vmem>>, vector<1x224xf32>
    %c39 = arith.constant 39 : index
    %c0_240 = arith.constant 0 : index
    %183 = vector.load %arg17[%c39, %c0_240] : memref<126x224xf32, #tpu.memory_space<vmem>>, vector<1x224xf32>
    tpu.vector_store %arg17[%c39, %c0_240], %182 {strides = array<i32>} : memref<126x224xf32, #tpu.memory_space<vmem>>, vector<1x224xf32>,
    %c18_241 = arith.constant 18 : index
    %c128_242 = arith.constant 128 : index
    %184 = vector.load %arg16[%c18_241, %c128_242] : memref<32x512xf32, #tpu.memory_space<vmem>>, vector<1x224xf32>
    %c57 = arith.constant 57 : index
    %c0_243 = arith.constant 0 : index
    %185 = vector.load %arg17[%c57, %c0_243] : memref<126x224xf32, #tpu.memory_space<vmem>>, vector<1x224xf32>
    tpu.vector_store %arg17[%c57, %c0_243], %184 {strides = array<i32>} : memref<126x224xf32, #tpu.memory_space<vmem>>, vector<1x224xf32>,
    %c19_244 = arith.constant 19 : index
    %c128_245 = arith.constant 128 : index
    %186 = vector.load %arg16[%c19_244, %c128_245] : memref<32x512xf32, #tpu.memory_space<vmem>>, vector<1x224xf32>
    %c75 = arith.constant 75 : index
    %c0_246 = arith.constant 0 : index
    %187 = vector.load %arg17[%c75, %c0_246] : memref<126x224xf32, #tpu.memory_space<vmem>>, vector<1x224xf32>
    tpu.vector_store %arg17[%c75, %c0_246], %186 {strides = array<i32>} : memref<126x224xf32, #tpu.memory_space<vmem>>, vector<1x224xf32>,
    %c20_247 = arith.constant 20 : index
    %c128_248 = arith.constant 128 : index
    %188 = vector.load %arg16[%c20_247, %c128_248] : memref<32x512xf32, #tpu.memory_space<vmem>>, vector<1x224xf32>
    %c93 = arith.constant 93 : index
    %c0_249 = arith.constant 0 : index
    %189 = vector.load %arg17[%c93, %c0_249] : memref<126x224xf32, #tpu.memory_space<vmem>>, vector<1x224xf32>
    tpu.vector_store %arg17[%c93, %c0_249], %188 {strides = array<i32>} : memref<126x224xf32, #tpu.memory_space<vmem>>, vector<1x224xf32>,
    %c21_250 = arith.constant 21 : index
    %c128_251 = arith.constant 128 : index
    %190 = vector.load %arg16[%c21_250, %c128_251] : memref<32x512xf32, #tpu.memory_space<vmem>>, vector<1x224xf32>
    %c111 = arith.constant 111 : index
    %c0_252 = arith.constant 0 : index
    %191 = vector.load %arg17[%c111, %c0_252] : memref<126x224xf32, #tpu.memory_space<vmem>>, vector<1x224xf32>
    tpu.vector_store %arg17[%c111, %c0_252], %190 {strides = array<i32>} : memref<126x224xf32, #tpu.memory_space<vmem>>, vector<1x224xf32>,
    %c31_253 = arith.constant 31 : index
    %c256_254 = arith.constant 256 : index
    %192 = vector.load %arg16[%c31_253, %c256_254] : memref<32x512xf32, #tpu.memory_space<vmem>>, vector<1x224xf32>
    %c5_255 = arith.constant 5 : index
    %c0_256 = arith.constant 0 : index
    %193 = vector.load %arg17[%c5_255, %c0_256] : memref<126x224xf32, #tpu.memory_space<vmem>>, vector<1x224xf32>
    tpu.vector_store %arg17[%c5_255, %c0_256], %192 {strides = array<i32>} : memref<126x224xf32, #tpu.memory_space<vmem>>, vector<1x224xf32>,
    %c16_257 = arith.constant 16 : index
    %c256_258 = arith.constant 256 : index
    %194 = vector.load %arg16[%c16_257, %c256_258] : memref<32x512xf32, #tpu.memory_space<vmem>>, vector<1x224xf32>
    %c23 = arith.constant 23 : index
    %c0_259 = arith.constant 0 : index
    %195 = vector.load %arg17[%c23, %c0_259] : memref<126x224xf32, #tpu.memory_space<vmem>>, vector<1x224xf32>
    tpu.vector_store %arg17[%c23, %c0_259], %194 {strides = array<i32>} : memref<126x224xf32, #tpu.memory_space<vmem>>, vector<1x224xf32>,
    %c17_260 = arith.constant 17 : index
    %c256_261 = arith.constant 256 : index
    %196 = vector.load %arg16[%c17_260, %c256_261] : memref<32x512xf32, #tpu.memory_space<vmem>>, vector<1x224xf32>
    %c41 = arith.constant 41 : index
    %c0_262 = arith.constant 0 : index
    %197 = vector.load %arg17[%c41, %c0_262] : memref<126x224xf32, #tpu.memory_space<vmem>>, vector<1x224xf32>
    tpu.vector_store %arg17[%c41, %c0_262], %196 {strides = array<i32>} : memref<126x224xf32, #tpu.memory_space<vmem>>, vector<1x224xf32>,
    %c18_263 = arith.constant 18 : index
    %c256_264 = arith.constant 256 : index
    %198 = vector.load %arg16[%c18_263, %c256_264] : memref<32x512xf32, #tpu.memory_space<vmem>>, vector<1x224xf32>
    %c59 = arith.constant 59 : index
    %c0_265 = arith.constant 0 : index
    %199 = vector.load %arg17[%c59, %c0_265] : memref<126x224xf32, #tpu.memory_space<vmem>>, vector<1x224xf32>
    tpu.vector_store %arg17[%c59, %c0_265], %198 {strides = array<i32>} : memref<126x224xf32, #tpu.memory_space<vmem>>, vector<1x224xf32>,
    %c19_266 = arith.constant 19 : index
    %c256_267 = arith.constant 256 : index
    %200 = vector.load %arg16[%c19_266, %c256_267] : memref<32x512xf32, #tpu.memory_space<vmem>>, vector<1x224xf32>
    %c77 = arith.constant 77 : index
    %c0_268 = arith.constant 0 : index
    %201 = vector.load %arg17[%c77, %c0_268] : memref<126x224xf32, #tpu.memory_space<vmem>>, vector<1x224xf32>
    tpu.vector_store %arg17[%c77, %c0_268], %200 {strides = array<i32>} : memref<126x224xf32, #tpu.memory_space<vmem>>, vector<1x224xf32>,
    %c20_269 = arith.constant 20 : index
    %c256_270 = arith.constant 256 : index
    %202 = vector.load %arg16[%c20_269, %c256_270] : memref<32x512xf32, #tpu.memory_space<vmem>>, vector<1x224xf32>
    %c95 = arith.constant 95 : index
    %c0_271 = arith.constant 0 : index
    %203 = vector.load %arg17[%c95, %c0_271] : memref<126x224xf32, #tpu.memory_space<vmem>>, vector<1x224xf32>
    tpu.vector_store %arg17[%c95, %c0_271], %202 {strides = array<i32>} : memref<126x224xf32, #tpu.memory_space<vmem>>, vector<1x224xf32>,
    %c21_272 = arith.constant 21 : index
    %c256_273 = arith.constant 256 : index
    %204 = vector.load %arg16[%c21_272, %c256_273] : memref<32x512xf32, #tpu.memory_space<vmem>>, vector<1x224xf32>
    %c113 = arith.constant 113 : index
    %c0_274 = arith.constant 0 : index
    %205 = vector.load %arg17[%c113, %c0_274] : memref<126x224xf32, #tpu.memory_space<vmem>>, vector<1x224xf32>
    tpu.vector_store %arg17[%c113, %c0_274], %204 {strides = array<i32>} : memref<126x224xf32, #tpu.memory_space<vmem>>, vector<1x224xf32>,
    %c19_275 = arith.constant 19 : index
    %c0_276 = arith.constant 0 : index
    %206 = vector.load %arg16[%c19_275, %c0_276] : memref<32x512xf32, #tpu.memory_space<vmem>>, vector<1x224xf32>
    %c7_277 = arith.constant 7 : index
    %c0_278 = arith.constant 0 : index
    %207 = vector.load %arg17[%c7_277, %c0_278] : memref<126x224xf32, #tpu.memory_space<vmem>>, vector<1x224xf32>
    tpu.vector_store %arg17[%c7_277, %c0_278], %206 {strides = array<i32>} : memref<126x224xf32, #tpu.memory_space<vmem>>, vector<1x224xf32>,
    %c20_279 = arith.constant 20 : index
    %c0_280 = arith.constant 0 : index
    %208 = vector.load %arg16[%c20_279, %c0_280] : memref<32x512xf32, #tpu.memory_space<vmem>>, vector<1x224xf32>
    %c25 = arith.constant 25 : index
    %c0_281 = arith.constant 0 : index
    %209 = vector.load %arg17[%c25, %c0_281] : memref<126x224xf32, #tpu.memory_space<vmem>>, vector<1x224xf32>
    tpu.vector_store %arg17[%c25, %c0_281], %208 {strides = array<i32>} : memref<126x224xf32, #tpu.memory_space<vmem>>, vector<1x224xf32>,
    %c21_282 = arith.constant 21 : index
    %c0_283 = arith.constant 0 : index
    %210 = vector.load %arg16[%c21_282, %c0_283] : memref<32x512xf32, #tpu.memory_space<vmem>>, vector<1x224xf32>
    %c43 = arith.constant 43 : index
    %c0_284 = arith.constant 0 : index
    %211 = vector.load %arg17[%c43, %c0_284] : memref<126x224xf32, #tpu.memory_space<vmem>>, vector<1x224xf32>
    tpu.vector_store %arg17[%c43, %c0_284], %210 {strides = array<i32>} : memref<126x224xf32, #tpu.memory_space<vmem>>, vector<1x224xf32>,
    %c22_285 = arith.constant 22 : index
    %c0_286 = arith.constant 0 : index
    %212 = vector.load %arg16[%c22_285, %c0_286] : memref<32x512xf32, #tpu.memory_space<vmem>>, vector<1x224xf32>
    %c61 = arith.constant 61 : index
    %c0_287 = arith.constant 0 : index
    %213 = vector.load %arg17[%c61, %c0_287] : memref<126x224xf32, #tpu.memory_space<vmem>>, vector<1x224xf32>
    tpu.vector_store %arg17[%c61, %c0_287], %212 {strides = array<i32>} : memref<126x224xf32, #tpu.memory_space<vmem>>, vector<1x224xf32>,
    %c23_288 = arith.constant 23 : index
    %c0_289 = arith.constant 0 : index
    %214 = vector.load %arg16[%c23_288, %c0_289] : memref<32x512xf32, #tpu.memory_space<vmem>>, vector<1x224xf32>
    %c79 = arith.constant 79 : index
    %c0_290 = arith.constant 0 : index
    %215 = vector.load %arg17[%c79, %c0_290] : memref<126x224xf32, #tpu.memory_space<vmem>>, vector<1x224xf32>
    tpu.vector_store %arg17[%c79, %c0_290], %214 {strides = array<i32>} : memref<126x224xf32, #tpu.memory_space<vmem>>, vector<1x224xf32>,
    %c24_291 = arith.constant 24 : index
    %c0_292 = arith.constant 0 : index
    %216 = vector.load %arg16[%c24_291, %c0_292] : memref<32x512xf32, #tpu.memory_space<vmem>>, vector<1x224xf32>
    %c97 = arith.constant 97 : index
    %c0_293 = arith.constant 0 : index
    %217 = vector.load %arg17[%c97, %c0_293] : memref<126x224xf32, #tpu.memory_space<vmem>>, vector<1x224xf32>
    tpu.vector_store %arg17[%c97, %c0_293], %216 {strides = array<i32>} : memref<126x224xf32, #tpu.memory_space<vmem>>, vector<1x224xf32>,
    %c25_294 = arith.constant 25 : index
    %c0_295 = arith.constant 0 : index
    %218 = vector.load %arg16[%c25_294, %c0_295] : memref<32x512xf32, #tpu.memory_space<vmem>>, vector<1x224xf32>
    %c115 = arith.constant 115 : index
    %c0_296 = arith.constant 0 : index
    %219 = vector.load %arg17[%c115, %c0_296] : memref<126x224xf32, #tpu.memory_space<vmem>>, vector<1x224xf32>
    tpu.vector_store %arg17[%c115, %c0_296], %218 {strides = array<i32>} : memref<126x224xf32, #tpu.memory_space<vmem>>, vector<1x224xf32>,
    %c19_297 = arith.constant 19 : index
    %c128_298 = arith.constant 128 : index
    %220 = vector.load %arg16[%c19_297, %c128_298] : memref<32x512xf32, #tpu.memory_space<vmem>>, vector<1x224xf32>
    %c9_299 = arith.constant 9 : index
    %c0_300 = arith.constant 0 : index
    %221 = vector.load %arg17[%c9_299, %c0_300] : memref<126x224xf32, #tpu.memory_space<vmem>>, vector<1x224xf32>
    tpu.vector_store %arg17[%c9_299, %c0_300], %220 {strides = array<i32>} : memref<126x224xf32, #tpu.memory_space<vmem>>, vector<1x224xf32>,
    %c20_301 = arith.constant 20 : index
    %c128_302 = arith.constant 128 : index
    %222 = vector.load %arg16[%c20_301, %c128_302] : memref<32x512xf32, #tpu.memory_space<vmem>>, vector<1x224xf32>
    %c27 = arith.constant 27 : index
    %c0_303 = arith.constant 0 : index
    %223 = vector.load %arg17[%c27, %c0_303] : memref<126x224xf32, #tpu.memory_space<vmem>>, vector<1x224xf32>
    tpu.vector_store %arg17[%c27, %c0_303], %222 {strides = array<i32>} : memref<126x224xf32, #tpu.memory_space<vmem>>, vector<1x224xf32>,
    %c21_304 = arith.constant 21 : index
    %c128_305 = arith.constant 128 : index
    %224 = vector.load %arg16[%c21_304, %c128_305] : memref<32x512xf32, #tpu.memory_space<vmem>>, vector<1x224xf32>
    %c45 = arith.constant 45 : index
    %c0_306 = arith.constant 0 : index
    %225 = vector.load %arg17[%c45, %c0_306] : memref<126x224xf32, #tpu.memory_space<vmem>>, vector<1x224xf32>
    tpu.vector_store %arg17[%c45, %c0_306], %224 {strides = array<i32>} : memref<126x224xf32, #tpu.memory_space<vmem>>, vector<1x224xf32>,
    %c22_307 = arith.constant 22 : index
    %c128_308 = arith.constant 128 : index
    %226 = vector.load %arg16[%c22_307, %c128_308] : memref<32x512xf32, #tpu.memory_space<vmem>>, vector<1x224xf32>
    %c63 = arith.constant 63 : index
    %c0_309 = arith.constant 0 : index
    %227 = vector.load %arg17[%c63, %c0_309] : memref<126x224xf32, #tpu.memory_space<vmem>>, vector<1x224xf32>
    tpu.vector_store %arg17[%c63, %c0_309], %226 {strides = array<i32>} : memref<126x224xf32, #tpu.memory_space<vmem>>, vector<1x224xf32>,
    %c23_310 = arith.constant 23 : index
    %c128_311 = arith.constant 128 : index
    %228 = vector.load %arg16[%c23_310, %c128_311] : memref<32x512xf32, #tpu.memory_space<vmem>>, vector<1x224xf32>
    %c81 = arith.constant 81 : index
    %c0_312 = arith.constant 0 : index
    %229 = vector.load %arg17[%c81, %c0_312] : memref<126x224xf32, #tpu.memory_space<vmem>>, vector<1x224xf32>
    tpu.vector_store %arg17[%c81, %c0_312], %228 {strides = array<i32>} : memref<126x224xf32, #tpu.memory_space<vmem>>, vector<1x224xf32>,
    %c24_313 = arith.constant 24 : index
    %c128_314 = arith.constant 128 : index
    %230 = vector.load %arg16[%c24_313, %c128_314] : memref<32x512xf32, #tpu.memory_space<vmem>>, vector<1x224xf32>
    %c99 = arith.constant 99 : index
    %c0_315 = arith.constant 0 : index
    %231 = vector.load %arg17[%c99, %c0_315] : memref<126x224xf32, #tpu.memory_space<vmem>>, vector<1x224xf32>
    tpu.vector_store %arg17[%c99, %c0_315], %230 {strides = array<i32>} : memref<126x224xf32, #tpu.memory_space<vmem>>, vector<1x224xf32>,
    %c25_316 = arith.constant 25 : index
    %c128_317 = arith.constant 128 : index
    %232 = vector.load %arg16[%c25_316, %c128_317] : memref<32x512xf32, #tpu.memory_space<vmem>>, vector<1x224xf32>
    %c117 = arith.constant 117 : index
    %c0_318 = arith.constant 0 : index
    %233 = vector.load %arg17[%c117, %c0_318] : memref<126x224xf32, #tpu.memory_space<vmem>>, vector<1x224xf32>
    tpu.vector_store %arg17[%c117, %c0_318], %232 {strides = array<i32>} : memref<126x224xf32, #tpu.memory_space<vmem>>, vector<1x224xf32>,
    %c19_319 = arith.constant 19 : index
    %c256_320 = arith.constant 256 : index
    %234 = vector.load %arg16[%c19_319, %c256_320] : memref<32x512xf32, #tpu.memory_space<vmem>>, vector<1x224xf32>
    %c11_321 = arith.constant 11 : index
    %c0_322 = arith.constant 0 : index
    %235 = vector.load %arg17[%c11_321, %c0_322] : memref<126x224xf32, #tpu.memory_space<vmem>>, vector<1x224xf32>
    tpu.vector_store %arg17[%c11_321, %c0_322], %234 {strides = array<i32>} : memref<126x224xf32, #tpu.memory_space<vmem>>, vector<1x224xf32>,
    %c20_323 = arith.constant 20 : index
    %c256_324 = arith.constant 256 : index
    %236 = vector.load %arg16[%c20_323, %c256_324] : memref<32x512xf32, #tpu.memory_space<vmem>>, vector<1x224xf32>
    %c29 = arith.constant 29 : index
    %c0_325 = arith.constant 0 : index
    %237 = vector.load %arg17[%c29, %c0_325] : memref<126x224xf32, #tpu.memory_space<vmem>>, vector<1x224xf32>
    tpu.vector_store %arg17[%c29, %c0_325], %236 {strides = array<i32>} : memref<126x224xf32, #tpu.memory_space<vmem>>, vector<1x224xf32>,
    %c21_326 = arith.constant 21 : index
    %c256_327 = arith.constant 256 : index
    %238 = vector.load %arg16[%c21_326, %c256_327] : memref<32x512xf32, #tpu.memory_space<vmem>>, vector<1x224xf32>
    %c47 = arith.constant 47 : index
    %c0_328 = arith.constant 0 : index
    %239 = vector.load %arg17[%c47, %c0_328] : memref<126x224xf32, #tpu.memory_space<vmem>>, vector<1x224xf32>
    tpu.vector_store %arg17[%c47, %c0_328], %238 {strides = array<i32>} : memref<126x224xf32, #tpu.memory_space<vmem>>, vector<1x224xf32>,
    %c22_329 = arith.constant 22 : index
    %c256_330 = arith.constant 256 : index
    %240 = vector.load %arg16[%c22_329, %c256_330] : memref<32x512xf32, #tpu.memory_space<vmem>>, vector<1x224xf32>
    %c65 = arith.constant 65 : index
    %c0_331 = arith.constant 0 : index
    %241 = vector.load %arg17[%c65, %c0_331] : memref<126x224xf32, #tpu.memory_space<vmem>>, vector<1x224xf32>
    tpu.vector_store %arg17[%c65, %c0_331], %240 {strides = array<i32>} : memref<126x224xf32, #tpu.memory_space<vmem>>, vector<1x224xf32>,
    %c23_332 = arith.constant 23 : index
    %c256_333 = arith.constant 256 : index
    %242 = vector.load %arg16[%c23_332, %c256_333] : memref<32x512xf32, #tpu.memory_space<vmem>>, vector<1x224xf32>
    %c83 = arith.constant 83 : index
    %c0_334 = arith.constant 0 : index
    %243 = vector.load %arg17[%c83, %c0_334] : memref<126x224xf32, #tpu.memory_space<vmem>>, vector<1x224xf32>
    tpu.vector_store %arg17[%c83, %c0_334], %242 {strides = array<i32>} : memref<126x224xf32, #tpu.memory_space<vmem>>, vector<1x224xf32>,
    %c24_335 = arith.constant 24 : index
    %c256_336 = arith.constant 256 : index
    %244 = vector.load %arg16[%c24_335, %c256_336] : memref<32x512xf32, #tpu.memory_space<vmem>>, vector<1x224xf32>
    %c101 = arith.constant 101 : index
    %c0_337 = arith.constant 0 : index
    %245 = vector.load %arg17[%c101, %c0_337] : memref<126x224xf32, #tpu.memory_space<vmem>>, vector<1x224xf32>
    tpu.vector_store %arg17[%c101, %c0_337], %244 {strides = array<i32>} : memref<126x224xf32, #tpu.memory_space<vmem>>, vector<1x224xf32>,
    %c25_338 = arith.constant 25 : index
    %c256_339 = arith.constant 256 : index
    %246 = vector.load %arg16[%c25_338, %c256_339] : memref<32x512xf32, #tpu.memory_space<vmem>>, vector<1x224xf32>
    %c119 = arith.constant 119 : index
    %c0_340 = arith.constant 0 : index
    %247 = vector.load %arg17[%c119, %c0_340] : memref<126x224xf32, #tpu.memory_space<vmem>>, vector<1x224xf32>
    tpu.vector_store %arg17[%c119, %c0_340], %246 {strides = array<i32>} : memref<126x224xf32, #tpu.memory_space<vmem>>, vector<1x224xf32>,
    %c23_341 = arith.constant 23 : index
    %c0_342 = arith.constant 0 : index
    %248 = vector.load %arg16[%c23_341, %c0_342] : memref<32x512xf32, #tpu.memory_space<vmem>>, vector<1x224xf32>
    %c13_343 = arith.constant 13 : index
    %c0_344 = arith.constant 0 : index
    %249 = vector.load %arg17[%c13_343, %c0_344] : memref<126x224xf32, #tpu.memory_space<vmem>>, vector<1x224xf32>
    tpu.vector_store %arg17[%c13_343, %c0_344], %248 {strides = array<i32>} : memref<126x224xf32, #tpu.memory_space<vmem>>, vector<1x224xf32>,
    %c24_345 = arith.constant 24 : index
    %c0_346 = arith.constant 0 : index
    %250 = vector.load %arg16[%c24_345, %c0_346] : memref<32x512xf32, #tpu.memory_space<vmem>>, vector<1x224xf32>
    %c31_347 = arith.constant 31 : index
    %c0_348 = arith.constant 0 : index
    %251 = vector.load %arg17[%c31_347, %c0_348] : memref<126x224xf32, #tpu.memory_space<vmem>>, vector<1x224xf32>
    tpu.vector_store %arg17[%c31_347, %c0_348], %250 {strides = array<i32>} : memref<126x224xf32, #tpu.memory_space<vmem>>, vector<1x224xf32>,
    %c25_349 = arith.constant 25 : index
    %c0_350 = arith.constant 0 : index
    %252 = vector.load %arg16[%c25_349, %c0_350] : memref<32x512xf32, #tpu.memory_space<vmem>>, vector<1x224xf32>
    %c49 = arith.constant 49 : index
    %c0_351 = arith.constant 0 : index
    %253 = vector.load %arg17[%c49, %c0_351] : memref<126x224xf32, #tpu.memory_space<vmem>>, vector<1x224xf32>
    tpu.vector_store %arg17[%c49, %c0_351], %252 {strides = array<i32>} : memref<126x224xf32, #tpu.memory_space<vmem>>, vector<1x224xf32>,
    %c26_352 = arith.constant 26 : index
    %c0_353 = arith.constant 0 : index
    %254 = vector.load %arg16[%c26_352, %c0_353] : memref<32x512xf32, #tpu.memory_space<vmem>>, vector<1x224xf32>
    %c67 = arith.constant 67 : index
    %c0_354 = arith.constant 0 : index
    %255 = vector.load %arg17[%c67, %c0_354] : memref<126x224xf32, #tpu.memory_space<vmem>>, vector<1x224xf32>
    tpu.vector_store %arg17[%c67, %c0_354], %254 {strides = array<i32>} : memref<126x224xf32, #tpu.memory_space<vmem>>, vector<1x224xf32>,
    %c27_355 = arith.constant 27 : index
    %c0_356 = arith.constant 0 : index
    %256 = vector.load %arg16[%c27_355, %c0_356] : memref<32x512xf32, #tpu.memory_space<vmem>>, vector<1x224xf32>
    %c85 = arith.constant 85 : index
    %c0_357 = arith.constant 0 : index
    %257 = vector.load %arg17[%c85, %c0_357] : memref<126x224xf32, #tpu.memory_space<vmem>>, vector<1x224xf32>
    tpu.vector_store %arg17[%c85, %c0_357], %256 {strides = array<i32>} : memref<126x224xf32, #tpu.memory_space<vmem>>, vector<1x224xf32>,
    %c28_358 = arith.constant 28 : index
    %c0_359 = arith.constant 0 : index
    %258 = vector.load %arg16[%c28_358, %c0_359] : memref<32x512xf32, #tpu.memory_space<vmem>>, vector<1x224xf32>
    %c103 = arith.constant 103 : index
    %c0_360 = arith.constant 0 : index
    %259 = vector.load %arg17[%c103, %c0_360] : memref<126x224xf32, #tpu.memory_space<vmem>>, vector<1x224xf32>
    tpu.vector_store %arg17[%c103, %c0_360], %258 {strides = array<i32>} : memref<126x224xf32, #tpu.memory_space<vmem>>, vector<1x224xf32>,
    %c29_361 = arith.constant 29 : index
    %c0_362 = arith.constant 0 : index
    %260 = vector.load %arg16[%c29_361, %c0_362] : memref<32x512xf32, #tpu.memory_space<vmem>>, vector<1x224xf32>
    %c121 = arith.constant 121 : index
    %c0_363 = arith.constant 0 : index
    %261 = vector.load %arg17[%c121, %c0_363] : memref<126x224xf32, #tpu.memory_space<vmem>>, vector<1x224xf32>
    tpu.vector_store %arg17[%c121, %c0_363], %260 {strides = array<i32>} : memref<126x224xf32, #tpu.memory_space<vmem>>, vector<1x224xf32>,
    %c23_364 = arith.constant 23 : index
    %c128_365 = arith.constant 128 : index
    %262 = vector.load %arg16[%c23_364, %c128_365] : memref<32x512xf32, #tpu.memory_space<vmem>>, vector<1x224xf32>
    %c15_366 = arith.constant 15 : index
    %c0_367 = arith.constant 0 : index
    %263 = vector.load %arg17[%c15_366, %c0_367] : memref<126x224xf32, #tpu.memory_space<vmem>>, vector<1x224xf32>
    tpu.vector_store %arg17[%c15_366, %c0_367], %262 {strides = array<i32>} : memref<126x224xf32, #tpu.memory_space<vmem>>, vector<1x224xf32>,
    %c24_368 = arith.constant 24 : index
    %c128_369 = arith.constant 128 : index
    %264 = vector.load %arg16[%c24_368, %c128_369] : memref<32x512xf32, #tpu.memory_space<vmem>>, vector<1x224xf32>
    %c33 = arith.constant 33 : index
    %c0_370 = arith.constant 0 : index
    %265 = vector.load %arg17[%c33, %c0_370] : memref<126x224xf32, #tpu.memory_space<vmem>>, vector<1x224xf32>
    tpu.vector_store %arg17[%c33, %c0_370], %264 {strides = array<i32>} : memref<126x224xf32, #tpu.memory_space<vmem>>, vector<1x224xf32>,
    %c25_371 = arith.constant 25 : index
    %c128_372 = arith.constant 128 : index
    %266 = vector.load %arg16[%c25_371, %c128_372] : memref<32x512xf32, #tpu.memory_space<vmem>>, vector<1x224xf32>
    %c51 = arith.constant 51 : index
    %c0_373 = arith.constant 0 : index
    %267 = vector.load %arg17[%c51, %c0_373] : memref<126x224xf32, #tpu.memory_space<vmem>>, vector<1x224xf32>
    tpu.vector_store %arg17[%c51, %c0_373], %266 {strides = array<i32>} : memref<126x224xf32, #tpu.memory_space<vmem>>, vector<1x224xf32>,
    %c26_374 = arith.constant 26 : index
    %c128_375 = arith.constant 128 : index
    %268 = vector.load %arg16[%c26_374, %c128_375] : memref<32x512xf32, #tpu.memory_space<vmem>>, vector<1x224xf32>
    %c69 = arith.constant 69 : index
    %c0_376 = arith.constant 0 : index
    %269 = vector.load %arg17[%c69, %c0_376] : memref<126x224xf32, #tpu.memory_space<vmem>>, vector<1x224xf32>
    tpu.vector_store %arg17[%c69, %c0_376], %268 {strides = array<i32>} : memref<126x224xf32, #tpu.memory_space<vmem>>, vector<1x224xf32>,
    %c27_377 = arith.constant 27 : index
    %c128_378 = arith.constant 128 : index
    %270 = vector.load %arg16[%c27_377, %c128_378] : memref<32x512xf32, #tpu.memory_space<vmem>>, vector<1x224xf32>
    %c87 = arith.constant 87 : index
    %c0_379 = arith.constant 0 : index
    %271 = vector.load %arg17[%c87, %c0_379] : memref<126x224xf32, #tpu.memory_space<vmem>>, vector<1x224xf32>
    tpu.vector_store %arg17[%c87, %c0_379], %270 {strides = array<i32>} : memref<126x224xf32, #tpu.memory_space<vmem>>, vector<1x224xf32>,
    %c28_380 = arith.constant 28 : index
    %c128_381 = arith.constant 128 : index
    %272 = vector.load %arg16[%c28_380, %c128_381] : memref<32x512xf32, #tpu.memory_space<vmem>>, vector<1x224xf32>
    %c105 = arith.constant 105 : index
    %c0_382 = arith.constant 0 : index
    %273 = vector.load %arg17[%c105, %c0_382] : memref<126x224xf32, #tpu.memory_space<vmem>>, vector<1x224xf32>
    tpu.vector_store %arg17[%c105, %c0_382], %272 {strides = array<i32>} : memref<126x224xf32, #tpu.memory_space<vmem>>, vector<1x224xf32>,
    %c29_383 = arith.constant 29 : index
    %c128_384 = arith.constant 128 : index
    %274 = vector.load %arg16[%c29_383, %c128_384] : memref<32x512xf32, #tpu.memory_space<vmem>>, vector<1x224xf32>
    %c123 = arith.constant 123 : index
    %c0_385 = arith.constant 0 : index
    %275 = vector.load %arg17[%c123, %c0_385] : memref<126x224xf32, #tpu.memory_space<vmem>>, vector<1x224xf32>
    tpu.vector_store %arg17[%c123, %c0_385], %274 {strides = array<i32>} : memref<126x224xf32, #tpu.memory_space<vmem>>, vector<1x224xf32>,
    %c23_386 = arith.constant 23 : index
    %c256_387 = arith.constant 256 : index
    %276 = vector.load %arg16[%c23_386, %c256_387] : memref<32x512xf32, #tpu.memory_space<vmem>>, vector<1x224xf32>
    %c17_388 = arith.constant 17 : index
    %c0_389 = arith.constant 0 : index
    %277 = vector.load %arg17[%c17_388, %c0_389] : memref<126x224xf32, #tpu.memory_space<vmem>>, vector<1x224xf32>
    tpu.vector_store %arg17[%c17_388, %c0_389], %276 {strides = array<i32>} : memref<126x224xf32, #tpu.memory_space<vmem>>, vector<1x224xf32>,
    %c24_390 = arith.constant 24 : index
    %c256_391 = arith.constant 256 : index
    %278 = vector.load %arg16[%c24_390, %c256_391] : memref<32x512xf32, #tpu.memory_space<vmem>>, vector<1x224xf32>
    %c35 = arith.constant 35 : index
    %c0_392 = arith.constant 0 : index
    %279 = vector.load %arg17[%c35, %c0_392] : memref<126x224xf32, #tpu.memory_space<vmem>>, vector<1x224xf32>
    tpu.vector_store %arg17[%c35, %c0_392], %278 {strides = array<i32>} : memref<126x224xf32, #tpu.memory_space<vmem>>, vector<1x224xf32>,
    %c25_393 = arith.constant 25 : index
    %c256_394 = arith.constant 256 : index
    %280 = vector.load %arg16[%c25_393, %c256_394] : memref<32x512xf32, #tpu.memory_space<vmem>>, vector<1x224xf32>
    %c53 = arith.constant 53 : index
    %c0_395 = arith.constant 0 : index
    %281 = vector.load %arg17[%c53, %c0_395] : memref<126x224xf32, #tpu.memory_space<vmem>>, vector<1x224xf32>
    tpu.vector_store %arg17[%c53, %c0_395], %280 {strides = array<i32>} : memref<126x224xf32, #tpu.memory_space<vmem>>, vector<1x224xf32>,
    %c26_396 = arith.constant 26 : index
    %c256_397 = arith.constant 256 : index
    %282 = vector.load %arg16[%c26_396, %c256_397] : memref<32x512xf32, #tpu.memory_space<vmem>>, vector<1x224xf32>
    %c71 = arith.constant 71 : index
    %c0_398 = arith.constant 0 : index
    %283 = vector.load %arg17[%c71, %c0_398] : memref<126x224xf32, #tpu.memory_space<vmem>>, vector<1x224xf32>
    tpu.vector_store %arg17[%c71, %c0_398], %282 {strides = array<i32>} : memref<126x224xf32, #tpu.memory_space<vmem>>, vector<1x224xf32>,
    %c27_399 = arith.constant 27 : index
    %c256_400 = arith.constant 256 : index
    %284 = vector.load %arg16[%c27_399, %c256_400] : memref<32x512xf32, #tpu.memory_space<vmem>>, vector<1x224xf32>
    %c89 = arith.constant 89 : index
    %c0_401 = arith.constant 0 : index
    %285 = vector.load %arg17[%c89, %c0_401] : memref<126x224xf32, #tpu.memory_space<vmem>>, vector<1x224xf32>
    tpu.vector_store %arg17[%c89, %c0_401], %284 {strides = array<i32>} : memref<126x224xf32, #tpu.memory_space<vmem>>, vector<1x224xf32>,
    %c28_402 = arith.constant 28 : index
    %c256_403 = arith.constant 256 : index
    %286 = vector.load %arg16[%c28_402, %c256_403] : memref<32x512xf32, #tpu.memory_space<vmem>>, vector<1x224xf32>
    %c107 = arith.constant 107 : index
    %c0_404 = arith.constant 0 : index
    %287 = vector.load %arg17[%c107, %c0_404] : memref<126x224xf32, #tpu.memory_space<vmem>>, vector<1x224xf32>
    tpu.vector_store %arg17[%c107, %c0_404], %286 {strides = array<i32>} : memref<126x224xf32, #tpu.memory_space<vmem>>, vector<1x224xf32>,
    %c29_405 = arith.constant 29 : index
    %c256_406 = arith.constant 256 : index
    %288 = vector.load %arg16[%c29_405, %c256_406] : memref<32x512xf32, #tpu.memory_space<vmem>>, vector<1x224xf32>
    %c125 = arith.constant 125 : index
    %c0_407 = arith.constant 0 : index
    %289 = vector.load %arg17[%c125, %c0_407] : memref<126x224xf32, #tpu.memory_space<vmem>>, vector<1x224xf32>
    tpu.vector_store %arg17[%c125, %c0_407], %288 {strides = array<i32>} : memref<126x224xf32, #tpu.memory_space<vmem>>, vector<1x224xf32>,
    %cst_408 = arith.constant 0.000000e+00 : f32
    %290 = vector.broadcast %cst_408 : f32 to vector<18x32xf32>
    %c0_409 = arith.constant 0 : index
    %c0_410 = arith.constant 0 : index
    %291 = vector.load %arg17[%c0_409, %c0_410] : memref<126x224xf32, #tpu.memory_space<vmem>>, vector<18x224xf32>
    %c0_411 = arith.constant 0 : index
    %c0_412 = arith.constant 0 : index
    %292 = vector.load %arg5[%c0_411, %c0_412] : memref<1568x32xf32, #tpu.memory_space<vmem>>, vector<224x32xf32>
    %cst_413 = arith.constant dense<0.000000e+00> : vector<18x32xf32>
    %293 = tpu.matmul %291, %292, %cst_413 {dimension_numbers = #tpu.dot_dimension_numbers<[1], [0], [0], [1], [0, 0, 1, 1], [], []>} : vector<18x224xf32>, vector<224x32xf32>, vector<18x32xf32> -> vector<18x32xf32>
    %294 = arith.addf %290, %293 : vector<18x32xf32>
    %c18_414 = arith.constant 18 : index
    %c0_415 = arith.constant 0 : index
    %295 = vector.load %arg17[%c18_414, %c0_415] : memref<126x224xf32, #tpu.memory_space<vmem>>, vector<18x224xf32>
    %c224 = arith.constant 224 : index
    %c0_416 = arith.constant 0 : index
    %296 = vector.load %arg5[%c224, %c0_416] : memref<1568x32xf32, #tpu.memory_space<vmem>>, vector<224x32xf32>
    %cst_417 = arith.constant dense<0.000000e+00> : vector<18x32xf32>
    %297 = tpu.matmul %295, %296, %cst_417 {dimension_numbers = #tpu.dot_dimension_numbers<[1], [0], [0], [1], [0, 0, 1, 1], [], []>} : vector<18x224xf32>, vector<224x32xf32>, vector<18x32xf32> -> vector<18x32xf32>
    %298 = arith.addf %294, %297 : vector<18x32xf32>
    %c36_418 = arith.constant 36 : index
    %c0_419 = arith.constant 0 : index
    %299 = vector.load %arg17[%c36_418, %c0_419] : memref<126x224xf32, #tpu.memory_space<vmem>>, vector<18x224xf32>
    %c448 = arith.constant 448 : index
    %c0_420 = arith.constant 0 : index
    %300 = vector.load %arg5[%c448, %c0_420] : memref<1568x32xf32, #tpu.memory_space<vmem>>, vector<224x32xf32>
    %cst_421 = arith.constant dense<0.000000e+00> : vector<18x32xf32>
    %301 = tpu.matmul %299, %300, %cst_421 {dimension_numbers = #tpu.dot_dimension_numbers<[1], [0], [0], [1], [0, 0, 1, 1], [], []>} : vector<18x224xf32>, vector<224x32xf32>, vector<18x32xf32> -> vector<18x32xf32>
    %302 = arith.addf %298, %301 : vector<18x32xf32>
    %c54_422 = arith.constant 54 : index
    %c0_423 = arith.constant 0 : index
    %303 = vector.load %arg17[%c54_422, %c0_423] : memref<126x224xf32, #tpu.memory_space<vmem>>, vector<18x224xf32>
    %c672 = arith.constant 672 : index
    %c0_424 = arith.constant 0 : index
    %304 = vector.load %arg5[%c672, %c0_424] : memref<1568x32xf32, #tpu.memory_space<vmem>>, vector<224x32xf32>
    %cst_425 = arith.constant dense<0.000000e+00> : vector<18x32xf32>
    %305 = tpu.matmul %303, %304, %cst_425 {dimension_numbers = #tpu.dot_dimension_numbers<[1], [0], [0], [1], [0, 0, 1, 1], [], []>} : vector<18x224xf32>, vector<224x32xf32>, vector<18x32xf32> -> vector<18x32xf32>
    %306 = arith.addf %302, %305 : vector<18x32xf32>
    %c72_426 = arith.constant 72 : index
    %c0_427 = arith.constant 0 : index
    %307 = vector.load %arg17[%c72_426, %c0_427] : memref<126x224xf32, #tpu.memory_space<vmem>>, vector<18x224xf32>
    %c896 = arith.constant 896 : index
    %c0_428 = arith.constant 0 : index
    %308 = vector.load %arg5[%c896, %c0_428] : memref<1568x32xf32, #tpu.memory_space<vmem>>, vector<224x32xf32>
    %cst_429 = arith.constant dense<0.000000e+00> : vector<18x32xf32>
    %309 = tpu.matmul %307, %308, %cst_429 {dimension_numbers = #tpu.dot_dimension_numbers<[1], [0], [0], [1], [0, 0, 1, 1], [], []>} : vector<18x224xf32>, vector<224x32xf32>, vector<18x32xf32> -> vector<18x32xf32>
    %310 = arith.addf %306, %309 : vector<18x32xf32>
    %c90_430 = arith.constant 90 : index
    %c0_431 = arith.constant 0 : index
    %311 = vector.load %arg17[%c90_430, %c0_431] : memref<126x224xf32, #tpu.memory_space<vmem>>, vector<18x224xf32>
    %c1120 = arith.constant 1120 : index
    %c0_432 = arith.constant 0 : index
    %312 = vector.load %arg5[%c1120, %c0_432] : memref<1568x32xf32, #tpu.memory_space<vmem>>, vector<224x32xf32>
    %cst_433 = arith.constant dense<0.000000e+00> : vector<18x32xf32>
    %313 = tpu.matmul %311, %312, %cst_433 {dimension_numbers = #tpu.dot_dimension_numbers<[1], [0], [0], [1], [0, 0, 1, 1], [], []>} : vector<18x224xf32>, vector<224x32xf32>, vector<18x32xf32> -> vector<18x32xf32>
    %314 = arith.addf %310, %313 : vector<18x32xf32>
    %c108_434 = arith.constant 108 : index
    %c0_435 = arith.constant 0 : index
    %315 = vector.load %arg17[%c108_434, %c0_435] : memref<126x224xf32, #tpu.memory_space<vmem>>, vector<18x224xf32>
    %c1344 = arith.constant 1344 : index
    %c0_436 = arith.constant 0 : index
    %316 = vector.load %arg5[%c1344, %c0_436] : memref<1568x32xf32, #tpu.memory_space<vmem>>, vector<224x32xf32>
    %cst_437 = arith.constant dense<0.000000e+00> : vector<18x32xf32>
    %317 = tpu.matmul %315, %316, %cst_437 {dimension_numbers = #tpu.dot_dimension_numbers<[1], [0], [0], [1], [0, 0, 1, 1], [], []>} : vector<18x224xf32>, vector<224x32xf32>, vector<18x32xf32> -> vector<18x32xf32>
    %318 = arith.addf %314, %317 : vector<18x32xf32>
    %c0_438 = arith.constant 0 : index
    %c0_439 = arith.constant 0 : index
    %319 = vector.load %arg6[%c0_438, %c0_439] : memref<1x32xf32, #tpu.memory_space<vmem>>, vector<1x32xf32>
    %320 = vector.broadcast %319 : vector<1x32xf32> to vector<18x32xf32>
    %321 = arith.addf %318, %320 : vector<18x32xf32>
    %cst_440 = arith.constant 0.000000e+00 : f32
    %322 = vector.broadcast %cst_440 : f32 to vector<18x32xf32>
    %323 = arith.cmpf oge, %321, %322 : vector<18x32xf32>
    %cst_441 = arith.constant 0.00999999977 : f32
    %324 = vector.broadcast %cst_441 : f32 to vector<18x32xf32>
    %325 = arith.mulf %324, %321 : vector<18x32xf32>
    %326 = arith.select %323, %321, %325 : vector<18x32xi1>, vector<18x32xf32>
    %c0_442 = arith.constant 0 : index
    %c0_443 = arith.constant 0 : index
    %327 = vector.load %arg7[%c0_442, %c0_443] : memref<1x32xf32, #tpu.memory_space<vmem>>, vector<1x32xf32>
    %328 = vector.broadcast %327 : vector<1x32xf32> to vector<18x32xf32>
    %329 = arith.mulf %326, %328 : vector<18x32xf32>
    %c0_444 = arith.constant 0 : index
    %c0_445 = arith.constant 0 : index
    %330 = vector.load %arg8[%c0_444, %c0_445] : memref<1x32xf32, #tpu.memory_space<vmem>>, vector<1x32xf32>
    %331 = vector.broadcast %330 : vector<1x32xf32> to vector<18x32xf32>
    %332 = arith.addf %329, %331 : vector<18x32xf32>
    %c0_446 = arith.constant 0 : index
    %c0_447 = arith.constant 0 : index
    %333 = vector.load %arg18[%c0_446, %c0_447] : memref<18x32xf32, #tpu.memory_space<vmem>>, vector<18x32xf32>
    tpu.vector_store %arg18[%c0_446, %c0_447], %332 {strides = array<i32>} : memref<18x32xf32, #tpu.memory_space<vmem>>, vector<18x32xf32>,
    %cst_448 = arith.constant 0.000000e+00 : f32
    %334 = vector.broadcast %cst_448 : f32 to vector<2x800xf32>
    %c0_449 = arith.constant 0 : index
    %c0_450 = arith.constant 0 : index
    %335 = vector.load %arg18[%c0_449, %c0_450] : memref<18x32xf32, #tpu.memory_space<vmem>>, vector<2x32xf32>
    %c0_451 = arith.constant 0 : index
    %c0_452 = arith.constant 0 : index
    %336 = vector.load %arg9[%c0_451, %c0_452] : memref<288x800xf32, #tpu.memory_space<vmem>>, vector<32x800xf32>
    %cst_453 = arith.constant dense<0.000000e+00> : vector<2x800xf32>
    %337 = tpu.matmul %335, %336, %cst_453 {dimension_numbers = #tpu.dot_dimension_numbers<[1], [0], [0], [1], [0, 0, 1, 1], [], []>} : vector<2x32xf32>, vector<32x800xf32>, vector<2x800xf32> -> vector<2x800xf32>
    %338 = arith.addf %334, %337 : vector<2x800xf32>
    %c2_454 = arith.constant 2 : index
    %c0_455 = arith.constant 0 : index
    %339 = vector.load %arg18[%c2_454, %c0_455] : memref<18x32xf32, #tpu.memory_space<vmem>>, vector<2x32xf32>
    %c32_456 = arith.constant 32 : index
    %c0_457 = arith.constant 0 : index
    %340 = vector.load %arg9[%c32_456, %c0_457] : memref<288x800xf32, #tpu.memory_space<vmem>>, vector<32x800xf32>
    %cst_458 = arith.constant dense<0.000000e+00> : vector<2x800xf32>
    %341 = tpu.matmul %339, %340, %cst_458 {dimension_numbers = #tpu.dot_dimension_numbers<[1], [0], [0], [1], [0, 0, 1, 1], [], []>} : vector<2x32xf32>, vector<32x800xf32>, vector<2x800xf32> -> vector<2x800xf32>
    %342 = arith.addf %338, %341 : vector<2x800xf32>
    %c4_459 = arith.constant 4 : index
    %c0_460 = arith.constant 0 : index
    %343 = vector.load %arg18[%c4_459, %c0_460] : memref<18x32xf32, #tpu.memory_space<vmem>>, vector<2x32xf32>
    %c64_461 = arith.constant 64 : index
    %c0_462 = arith.constant 0 : index
    %344 = vector.load %arg9[%c64_461, %c0_462] : memref<288x800xf32, #tpu.memory_space<vmem>>, vector<32x800xf32>
    %cst_463 = arith.constant dense<0.000000e+00> : vector<2x800xf32>
    %345 = tpu.matmul %343, %344, %cst_463 {dimension_numbers = #tpu.dot_dimension_numbers<[1], [0], [0], [1], [0, 0, 1, 1], [], []>} : vector<2x32xf32>, vector<32x800xf32>, vector<2x800xf32> -> vector<2x800xf32>
    %346 = arith.addf %342, %345 : vector<2x800xf32>
    %c6_464 = arith.constant 6 : index
    %c0_465 = arith.constant 0 : index
    %347 = vector.load %arg18[%c6_464, %c0_465] : memref<18x32xf32, #tpu.memory_space<vmem>>, vector<2x32xf32>
    %c96_466 = arith.constant 96 : index
    %c0_467 = arith.constant 0 : index
    %348 = vector.load %arg9[%c96_466, %c0_467] : memref<288x800xf32, #tpu.memory_space<vmem>>, vector<32x800xf32>
    %cst_468 = arith.constant dense<0.000000e+00> : vector<2x800xf32>
    %349 = tpu.matmul %347, %348, %cst_468 {dimension_numbers = #tpu.dot_dimension_numbers<[1], [0], [0], [1], [0, 0, 1, 1], [], []>} : vector<2x32xf32>, vector<32x800xf32>, vector<2x800xf32> -> vector<2x800xf32>
    %350 = arith.addf %346, %349 : vector<2x800xf32>
    %c8_469 = arith.constant 8 : index
    %c0_470 = arith.constant 0 : index
    %351 = vector.load %arg18[%c8_469, %c0_470] : memref<18x32xf32, #tpu.memory_space<vmem>>, vector<2x32xf32>
    %c128_471 = arith.constant 128 : index
    %c0_472 = arith.constant 0 : index
    %352 = vector.load %arg9[%c128_471, %c0_472] : memref<288x800xf32, #tpu.memory_space<vmem>>, vector<32x800xf32>
    %cst_473 = arith.constant dense<0.000000e+00> : vector<2x800xf32>
    %353 = tpu.matmul %351, %352, %cst_473 {dimension_numbers = #tpu.dot_dimension_numbers<[1], [0], [0], [1], [0, 0, 1, 1], [], []>} : vector<2x32xf32>, vector<32x800xf32>, vector<2x800xf32> -> vector<2x800xf32>
    %354 = arith.addf %350, %353 : vector<2x800xf32>
    %c10_474 = arith.constant 10 : index
    %c0_475 = arith.constant 0 : index
    %355 = vector.load %arg18[%c10_474, %c0_475] : memref<18x32xf32, #tpu.memory_space<vmem>>, vector<2x32xf32>
    %c160 = arith.constant 160 : index
    %c0_476 = arith.constant 0 : index
    %356 = vector.load %arg9[%c160, %c0_476] : memref<288x800xf32, #tpu.memory_space<vmem>>, vector<32x800xf32>
    %cst_477 = arith.constant dense<0.000000e+00> : vector<2x800xf32>
    %357 = tpu.matmul %355, %356, %cst_477 {dimension_numbers = #tpu.dot_dimension_numbers<[1], [0], [0], [1], [0, 0, 1, 1], [], []>} : vector<2x32xf32>, vector<32x800xf32>, vector<2x800xf32> -> vector<2x800xf32>
    %358 = arith.addf %354, %357 : vector<2x800xf32>
    %c12_478 = arith.constant 12 : index
    %c0_479 = arith.constant 0 : index
    %359 = vector.load %arg18[%c12_478, %c0_479] : memref<18x32xf32, #tpu.memory_space<vmem>>, vector<2x32xf32>
    %c192 = arith.constant 192 : index
    %c0_480 = arith.constant 0 : index
    %360 = vector.load %arg9[%c192, %c0_480] : memref<288x800xf32, #tpu.memory_space<vmem>>, vector<32x800xf32>
    %cst_481 = arith.constant dense<0.000000e+00> : vector<2x800xf32>
    %361 = tpu.matmul %359, %360, %cst_481 {dimension_numbers = #tpu.dot_dimension_numbers<[1], [0], [0], [1], [0, 0, 1, 1], [], []>} : vector<2x32xf32>, vector<32x800xf32>, vector<2x800xf32> -> vector<2x800xf32>
    %362 = arith.addf %358, %361 : vector<2x800xf32>
    %c14_482 = arith.constant 14 : index
    %c0_483 = arith.constant 0 : index
    %363 = vector.load %arg18[%c14_482, %c0_483] : memref<18x32xf32, #tpu.memory_space<vmem>>, vector<2x32xf32>
    %c224_484 = arith.constant 224 : index
    %c0_485 = arith.constant 0 : index
    %364 = vector.load %arg9[%c224_484, %c0_485] : memref<288x800xf32, #tpu.memory_space<vmem>>, vector<32x800xf32>
    %cst_486 = arith.constant dense<0.000000e+00> : vector<2x800xf32>
    %365 = tpu.matmul %363, %364, %cst_486 {dimension_numbers = #tpu.dot_dimension_numbers<[1], [0], [0], [1], [0, 0, 1, 1], [], []>} : vector<2x32xf32>, vector<32x800xf32>, vector<2x800xf32> -> vector<2x800xf32>
    %366 = arith.addf %362, %365 : vector<2x800xf32>
    %c16_487 = arith.constant 16 : index
    %c0_488 = arith.constant 0 : index
    %367 = vector.load %arg18[%c16_487, %c0_488] : memref<18x32xf32, #tpu.memory_space<vmem>>, vector<2x32xf32>
    %c256_489 = arith.constant 256 : index
    %c0_490 = arith.constant 0 : index
    %368 = vector.load %arg9[%c256_489, %c0_490] : memref<288x800xf32, #tpu.memory_space<vmem>>, vector<32x800xf32>
    %cst_491 = arith.constant dense<0.000000e+00> : vector<2x800xf32>
    %369 = tpu.matmul %367, %368, %cst_491 {dimension_numbers = #tpu.dot_dimension_numbers<[1], [0], [0], [1], [0, 0, 1, 1], [], []>} : vector<2x32xf32>, vector<32x800xf32>, vector<2x800xf32> -> vector<2x800xf32>
    %370 = arith.addf %366, %369 : vector<2x800xf32>
    %c0_492 = arith.constant 0 : index
    %c0_493 = arith.constant 0 : index
    %371 = vector.load %arg10[%c0_492, %c0_493] : memref<1x800xf32, #tpu.memory_space<vmem>>, vector<1x800xf32>
    %372 = vector.broadcast %371 : vector<1x800xf32> to vector<2x800xf32>
    %373 = arith.addf %370, %372 : vector<2x800xf32>
    %cst_494 = arith.constant 0.000000e+00 : f32
    %374 = vector.broadcast %cst_494 : f32 to vector<2x800xf32>
    %375 = arith.cmpf oge, %373, %374 : vector<2x800xf32>
    %cst_495 = arith.constant 0.00999999977 : f32
    %376 = vector.broadcast %cst_495 : f32 to vector<2x800xf32>
    %377 = arith.mulf %376, %373 : vector<2x800xf32>
    %378 = arith.select %375, %373, %377 : vector<2x800xi1>, vector<2x800xf32>
    %c0_496 = arith.constant 0 : index
    %c0_497 = arith.constant 0 : index
    %379 = vector.load %arg11[%c0_496, %c0_497] : memref<1x800xf32, #tpu.memory_space<vmem>>, vector<1x800xf32>
    %380 = vector.broadcast %379 : vector<1x800xf32> to vector<2x800xf32>
    %381 = arith.mulf %378, %380 : vector<2x800xf32>
    %c0_498 = arith.constant 0 : index
    %c0_499 = arith.constant 0 : index
    %382 = vector.load %arg12[%c0_498, %c0_499] : memref<1x800xf32, #tpu.memory_space<vmem>>, vector<1x800xf32>
    %383 = vector.broadcast %382 : vector<1x800xf32> to vector<2x800xf32>
    %384 = arith.addf %381, %383 : vector<2x800xf32>
    %cst_500 = arith.constant 0.000000e+00 : f32
    %385 = vector.broadcast %cst_500 : f32 to vector<2x32xf32>
    %386 = vector.extract_strided_slice %384 {offsets = [0, 0], sizes = [2, 256], strides = [1, 1]} : vector<2x800xf32> to vector<2x256xf32>
    %c0_501 = arith.constant 0 : index
    %c0_502 = arith.constant 0 : index
    %387 = vector.load %arg13[%c0_501, %c0_502] : memref<800x32xf32, #tpu.memory_space<vmem>>, vector<256x32xf32>
    %cst_503 = arith.constant dense<0.000000e+00> : vector<2x32xf32>
    %388 = tpu.matmul %386, %387, %cst_503 {dimension_numbers = #tpu.dot_dimension_numbers<[1], [0], [0], [1], [0, 0, 1, 1], [], []>} : vector<2x256xf32>, vector<256x32xf32>, vector<2x32xf32> -> vector<2x32xf32>
    %389 = arith.addf %385, %388 : vector<2x32xf32>
    %390 = vector.extract_strided_slice %384 {offsets = [0, 256], sizes = [2, 256], strides = [1, 1]} : vector<2x800xf32> to vector<2x256xf32>
    %c256_504 = arith.constant 256 : index
    %c0_505 = arith.constant 0 : index
    %391 = vector.load %arg13[%c256_504, %c0_505] : memref<800x32xf32, #tpu.memory_space<vmem>>, vector<256x32xf32>
    %cst_506 = arith.constant dense<0.000000e+00> : vector<2x32xf32>
    %392 = tpu.matmul %390, %391, %cst_506 {dimension_numbers = #tpu.dot_dimension_numbers<[1], [0], [0], [1], [0, 0, 1, 1], [], []>} : vector<2x256xf32>, vector<256x32xf32>, vector<2x32xf32> -> vector<2x32xf32>
    %393 = arith.addf %389, %392 : vector<2x32xf32>
    %394 = vector.extract_strided_slice %384 {offsets = [0, 512], sizes = [2, 256], strides = [1, 1]} : vector<2x800xf32> to vector<2x256xf32>
    %c512 = arith.constant 512 : index
    %c0_507 = arith.constant 0 : index
    %395 = vector.load %arg13[%c512, %c0_507] : memref<800x32xf32, #tpu.memory_space<vmem>>, vector<256x32xf32>
    %cst_508 = arith.constant dense<0.000000e+00> : vector<2x32xf32>
    %396 = tpu.matmul %394, %395, %cst_508 {dimension_numbers = #tpu.dot_dimension_numbers<[1], [0], [0], [1], [0, 0, 1, 1], [], []>} : vector<2x256xf32>, vector<256x32xf32>, vector<2x32xf32> -> vector<2x32xf32>
    %397 = arith.addf %393, %396 : vector<2x32xf32>
    %398 = vector.extract_strided_slice %384 {offsets = [0, 768], sizes = [2, 32], strides = [1, 1]} : vector<2x800xf32> to vector<2x32xf32>
    %c768 = arith.constant 768 : index
    %c0_509 = arith.constant 0 : index
    %399 = vector.load %arg13[%c768, %c0_509] : memref<800x32xf32, #tpu.memory_space<vmem>>, vector<32x32xf32>
    %cst_510 = arith.constant dense<0.000000e+00> : vector<2x32xf32>
    %400 = tpu.matmul %398, %399, %cst_510 {dimension_numbers = #tpu.dot_dimension_numbers<[1], [0], [0], [1], [0, 0, 1, 1], [], []>} : vector<2x32xf32>, vector<32x32xf32>, vector<2x32xf32> -> vector<2x32xf32>
    %401 = arith.addf %397, %400 : vector<2x32xf32>
    %c0_511 = arith.constant 0 : index
    %c0_512 = arith.constant 0 : index
    %402 = vector.load %arg14[%c0_511, %c0_512] : memref<1x32xf32, #tpu.memory_space<vmem>>, vector<1x32xf32>
    %403 = vector.broadcast %402 : vector<1x32xf32> to vector<2x32xf32>
    %404 = arith.addf %401, %403 : vector<2x32xf32>
    %c0_513 = arith.constant 0 : index
    %c0_514 = arith.constant 0 : index
    %405 = vector.load %arg15[%c0_513, %c0_514] : memref<2x32xf32, #tpu.memory_space<vmem>>, vector<2x32xf32>
    tpu.vector_store %arg15[%c0_513, %c0_514], %404 {strides = array<i32>} : memref<2x32xf32, #tpu.memory_space<vmem>>, vector<2x32xf32>,
    return
  }
}

</mosaic_0001>

<llo_original>
// kernel: encoder_forward.1
$region0: #{encoder_forward.1}
  #allocation0 [shape = 'u32[]', space=smem, size = 0x4, offset = 0x4, fixed_abs, tag = 'smem constant byte address 0x4 - core index']
  #allocation1 [shape = 'u32[72,128]{1,0:T(1,128)}', space=vmem, size = 0x9000, scoped, tag = 'internal scratch']
  #allocation2 [shape = 'f32[32,512]{1,0:T(8,128)}', space=vmem, size = 0x10000, scoped, tag = 'scratch operand']
  #allocation3 [shape = 'f32[126,224]{1,0:T(8,128)}', space=vmem, size = 0x20000, scoped, tag = 'scratch operand']
  #allocation4 [shape = 'f32[18,32]{1,0:T(8,128)}', space=vmem, size = 0x3000, scoped, tag = 'scratch operand']
  %s0 = inlined_call_operand.vmem [shape: f32[28,120], index: 0, kind: input, shape index: {}]
  %s1 = inlined_call_operand.vmem [shape: f32[120,512], index: 1, kind: input, shape index: {}]
  %s2 = inlined_call_operand.vmem [shape: f32[1,512], index: 2, kind: input, shape index: {}]
  %s3 = inlined_call_operand.vmem [shape: f32[1,512], index: 3, kind: input, shape index: {}]
  %s4 = inlined_call_operand.vmem [shape: f32[1,512], index: 4, kind: input, shape index: {}]
  %s5 = inlined_call_operand.vmem [shape: f32[1568,32], index: 5, kind: input, shape index: {}]
  %s6 = inlined_call_operand.vmem [shape: f32[1,32], index: 6, kind: input, shape index: {}]
  %s7 = inlined_call_operand.vmem [shape: f32[1,32], index: 7, kind: input, shape index: {}]
  %s8 = inlined_call_operand.vmem [shape: f32[1,32], index: 8, kind: input, shape index: {}]
  %s9 = inlined_call_operand.vmem [shape: f32[288,800], index: 9, kind: input, shape index: {}]
  %s10 = inlined_call_operand.vmem [shape: f32[1,800], index: 10, kind: input, shape index: {}]
  %s11 = inlined_call_operand.vmem [shape: f32[1,800], index: 11, kind: input, shape index: {}]
  %s12 = inlined_call_operand.vmem [shape: f32[1,800], index: 12, kind: input, shape index: {}]
  %s13 = inlined_call_operand.vmem [shape: f32[800,32], index: 13, kind: input, shape index: {}]
  %s14 = inlined_call_operand.vmem [shape: f32[1,32], index: 14, kind: input, shape index: {}]
  %s15 = inlined_call_operand.vmem [shape: f32[2,32], index: 15, kind: output, shape index: {}]
  %s16 = sld [smem:[#allocation0]]
  $region70: #{encoder_forward.1} parent=0
    _
  %s18 = ssub.s32 1, %s16
  %s19 = scalar_select 0, %s18, %s16
  // Predicated region
  $region2: #{encoder_forward.1} parent=0 // pred_check
    _
  $region3: #{encoder_forward.1} parent=0 // pred_check_branch
    %21 = sbr.rel (0) target = $region5
  $region4: #{encoder_forward.1} parent=0 // pred_region
    _
  $region5: #{encoder_forward.1} parent=0 // pred_fallthru
    _
  // Predicated region
  $region6: #{encoder_forward.1} parent=0 // pred_check
    _
  $region7: #{encoder_forward.1} parent=0 // pred_check_branch
    %23 = sbr.rel (0) target = $region9
  $region8: #{encoder_forward.1} parent=0 // pred_region
    _
  $region9: #{encoder_forward.1} parent=0 // pred_fallthru
    _
  // Predicated region
  $region10: #{encoder_forward.1} parent=0 // pred_check
    _
  $region11: #{encoder_forward.1} parent=0 // pred_check_branch
    %25 = sbr.rel (0) target = $region13
  $region12: #{encoder_forward.1} parent=0 // pred_region
    _
  $region13: #{encoder_forward.1} parent=0 // pred_fallthru
    _
  // Predicated region
  $region14: #{encoder_forward.1} parent=0 // pred_check
    _
  $region15: #{encoder_forward.1} parent=0 // pred_check_branch
    %27 = sbr.rel (0) target = $region17
  $region16: #{encoder_forward.1} parent=0 // pred_region
    _
  $region17: #{encoder_forward.1} parent=0 // pred_fallthru
    _
  // Predicated region
  $region18: #{encoder_forward.1} parent=0 // pred_check
    _
  $region19: #{encoder_forward.1} parent=0 // pred_check_branch
    %29 = sbr.rel (0) target = $region21
  $region20: #{encoder_forward.1} parent=0 // pred_region
    _
  $region21: #{encoder_forward.1} parent=0 // pred_fallthru
    _
  // Predicated region
  $region22: #{encoder_forward.1} parent=0 // pred_check
    _
  $region23: #{encoder_forward.1} parent=0 // pred_check_branch
    %31 = sbr.rel (0) target = $region25
  $region24: #{encoder_forward.1} parent=0 // pred_region
    _
  $region25: #{encoder_forward.1} parent=0 // pred_fallthru
    _
  // Predicated region
  $region26: #{encoder_forward.1} parent=0 // pred_check
    _
  $region27: #{encoder_forward.1} parent=0 // pred_check_branch
    %33 = sbr.rel (0) target = $region29
  $region28: #{encoder_forward.1} parent=0 // pred_region
    _
  $region29: #{encoder_forward.1} parent=0 // pred_fallthru
    _
  // Predicated region
  $region30: #{encoder_forward.1} parent=0 // pred_check
    _
  $region31: #{encoder_forward.1} parent=0 // pred_check_branch
    %35 = sbr.rel (0) target = $region33
  $region32: #{encoder_forward.1} parent=0 // pred_region
    _
  $region33: #{encoder_forward.1} parent=0 // pred_fallthru
    _
  // Predicated region
  $region34: #{encoder_forward.1} parent=0 // pred_check
    _
  $region35: #{encoder_forward.1} parent=0 // pred_check_branch
    %37 = sbr.rel (0) target = $region37
  $region36: #{encoder_forward.1} parent=0 // pred_region
    _
  $region37: #{encoder_forward.1} parent=0 // pred_fallthru
    _
  // Predicated region
  $region38: #{encoder_forward.1} parent=0 // pred_check
    _
  $region39: #{encoder_forward.1} parent=0 // pred_check_branch
    %39 = sbr.rel (0) target = $region41
  $region40: #{encoder_forward.1} parent=0 // pred_region
    _
  $region41: #{encoder_forward.1} parent=0 // pred_fallthru
    _
  // Predicated region
  $region42: #{encoder_forward.1} parent=0 // pred_check
    _
  $region43: #{encoder_forward.1} parent=0 // pred_check_branch
    %41 = sbr.rel (0) target = $region45
  $region44: #{encoder_forward.1} parent=0 // pred_region
    _
  $region45: #{encoder_forward.1} parent=0 // pred_fallthru
    _
  // Predicated region
  $region46: #{encoder_forward.1} parent=0 // pred_check
    _
  $region47: #{encoder_forward.1} parent=0 // pred_check_branch
    %43 = sbr.rel (0) target = $region49
  $region48: #{encoder_forward.1} parent=0 // pred_region
    _
  $region49: #{encoder_forward.1} parent=0 // pred_fallthru
    _
  // Predicated region
  $region50: #{encoder_forward.1} parent=0 // pred_check
    _
  $region51: #{encoder_forward.1} parent=0 // pred_check_branch
    %45 = sbr.rel (0) target = $region53
  $region52: #{encoder_forward.1} parent=0 // pred_region
    _
  $region53: #{encoder_forward.1} parent=0 // pred_fallthru
    _
  // Predicated region
  $region54: #{encoder_forward.1} parent=0 // pred_check
    _
  $region55: #{encoder_forward.1} parent=0 // pred_check_branch
    %47 = sbr.rel (0) target = $region57
  $region56: #{encoder_forward.1} parent=0 // pred_region
    _
  $region57: #{encoder_forward.1} parent=0 // pred_fallthru
    _
  // Predicated region
  $region58: #{encoder_forward.1} parent=0 // pred_check
    _
  $region59: #{encoder_forward.1} parent=0 // pred_check_branch
    %49 = sbr.rel (0) target = $region61
  $region60: #{encoder_forward.1} parent=0 // pred_region
    _
  $region61: #{encoder_forward.1} parent=0 // pred_fallthru
    _
  %50 = vst [vmem:[#allocation2] sm:$0xff] 0.0
  %51 = vst [vmem:[#allocation2 + $0x8] sm:$0xff] 0.0
  %52 = vst [vmem:[#allocation2 + $0x10] sm:$0xff] 0.0
  %53 = vst [vmem:[#allocation2 + $0x18] sm:$0xff] 0.0
  %54 = vst [vmem:[#allocation2 + $0x20] sm:$0xff] 0.0
  %55 = vst [vmem:[#allocation2 + $0x28] sm:$0xff] 0.0
  %56 = vst [vmem:[#allocation2 + $0x30] sm:$0xff] 0.0
  %57 = vst [vmem:[#allocation2 + $0x38] sm:$0xff] 0.0
  %58 = vst [vmem:[#allocation2 + $0x40] sm:$0xff] 0.0
  %59 = vst [vmem:[#allocation2 + $0x48] sm:$0xff] 0.0
  %60 = vst [vmem:[#allocation2 + $0x50] sm:$0xff] 0.0
  %61 = vst [vmem:[#allocation2 + $0x58] sm:$0xff] 0.0
  %62 = vst [vmem:[#allocation2 + $0x60] sm:$0xff] 0.0
  %63 = vst [vmem:[#allocation2 + $0x68] sm:$0xff] 0.0
  %64 = vst [vmem:[#allocation2 + $0x70] sm:$0xff] 0.0
  %65 = vst [vmem:[#allocation2 + $0x78] sm:$0xff] 0.0
  %v66 = vld [vmem:[%s0] sm:$0xff]
  %v67 = vld [vmem:[%s0 + $0x8] sm:$0x3f]
  %v68 = vld [vmem:[%s1] sm:$0xff]
  %v69 = vld [vmem:[%s1 + $0x8] sm:$0xff]
  %v70 = vld [vmem:[%s1 + $0x10] sm:$0xff]
  %v71 = vld [vmem:[%s1 + $0x18] sm:$0xff]
  %v72 = vld [vmem:[%s1 + $0x20] sm:$0xff]
  %v73 = vld [vmem:[%s1 + $0x28] sm:$0xff]
  %v74 = vld [vmem:[%s1 + $0x30] sm:$0xff]
  %v75 = vld [vmem:[%s1 + $0x38] sm:$0xff]
  %v76 = vld [vmem:[%s1 + $0x40] sm:$0xff]
  %v77 = vld [vmem:[%s1 + $0x48] sm:$0xff]
  %v78 = vld [vmem:[%s1 + $0x50] sm:$0xff]
  %v79 = vld [vmem:[%s1 + $0x58] sm:$0xff]
  %v80 = vld [vmem:[%s1 + $0x60] sm:$0xff]
  %v81 = vld [vmem:[%s1 + $0x68] sm:$0xff]
  %v82 = vld [vmem:[%s1 + $0x70] sm:$0xff]
  %v83 = vld [vmem:[%s1 + $0x78] sm:$0xff]
  %v84 = vld [vmem:[%s1 + $0x80] sm:$0xff]
  %v85 = vld [vmem:[%s1 + $0x88] sm:$0xff]
  %v86 = vld [vmem:[%s1 + $0x90] sm:$0xff]
  %v87 = vld [vmem:[%s1 + $0x98] sm:$0xff]
  %v88 = vld [vmem:[%s1 + $0xa0] sm:$0xff]
  %v89 = vld [vmem:[%s1 + $0xa8] sm:$0xff]
  %v90 = vld [vmem:[%s1 + $0xb0] sm:$0xff]
  %v91 = vld [vmem:[%s1 + $0xb8] sm:$0xff]
  %v92 = vld [vmem:[%s1 + $0xc0] sm:$0xff]
  %v93 = vld [vmem:[%s1 + $0xc8] sm:$0xff]
  %v94 = vld [vmem:[%s1 + $0xd0] sm:$0xff]
  %v95 = vld [vmem:[%s1 + $0xd8] sm:$0xff]
  %v96 = vld [vmem:[%s1 + $0xe0] sm:$0xff]
  %v97 = vld [vmem:[%s1 + $0xe8] sm:$0xff]
  %v98 = vld [vmem:[%s1 + $0xf0] sm:$0xff]
  %v99 = vld [vmem:[%s1 + $0xf8] sm:$0xff]
  %v100 = vld [vmem:[%s1 + $0x100] sm:$0xff]
  %v101 = vld [vmem:[%s1 + $0x108] sm:$0xff]
  %v102 = vld [vmem:[%s1 + $0x110] sm:$0xff]
  %v103 = vld [vmem:[%s1 + $0x118] sm:$0xff]
  %v104 = vld [vmem:[%s1 + $0x120] sm:$0xff]
  %v105 = vld [vmem:[%s1 + $0x128] sm:$0xff]
  %v106 = vld [vmem:[%s1 + $0x130] sm:$0xff]
  %v107 = vld [vmem:[%s1 + $0x138] sm:$0xff]
  %v108 = vld [vmem:[%s1 + $0x140] sm:$0xff]
  %v109 = vld [vmem:[%s1 + $0x148] sm:$0xff]
  %v110 = vld [vmem:[%s1 + $0x150] sm:$0xff]
  %v111 = vld [vmem:[%s1 + $0x158] sm:$0xff]
  %v112 = vld [vmem:[%s1 + $0x160] sm:$0xff]
  %v113 = vld [vmem:[%s1 + $0x168] sm:$0xff]
  %v114 = vld [vmem:[%s1 + $0x170] sm:$0xff]
  %v115 = vld [vmem:[%s1 + $0x178] sm:$0xff]
  %v116 = vld [vmem:[%s1 + $0x180] sm:$0xff]
  %v117 = vld [vmem:[%s1 + $0x188] sm:$0xff]
  %v118 = vld [vmem:[%s1 + $0x190] sm:$0xff]
  %v119 = vld [vmem:[%s1 + $0x198] sm:$0xff]
  %v120 = vld [vmem:[%s1 + $0x1a0] sm:$0xff]
  %v121 = vld [vmem:[%s1 + $0x1a8] sm:$0xff]
  %v122 = vld [vmem:[%s1 + $0x1b0] sm:$0xff]
  %v123 = vld [vmem:[%s1 + $0x1b8] sm:$0xff]
  %v124 = vld [vmem:[%s1 + $0x1c0] sm:$0xff]
  %v125 = vld [vmem:[%s1 + $0x1c8] sm:$0xff]
  %v126 = vld [vmem:[%s1 + $0x1d0] sm:$0xff]
  %v127 = vld [vmem:[%s1 + $0x1d8] sm:$0xff]
  %v128 = vld [vmem:[%s2] sm:$0xf]
  %v130 = vperm.slane %v128, 0
  %v131 = vperm.slane %v128, 1
  %v132 = vperm.slane %v128, 2
  %v133 = vperm.slane %v128, 3
  %vm138 = vcmask 982016
  %v140 = vsel %vm138, %v66, 0
  %v143 = vsel %vm138, %v67, 0
  %145 = vmatpush.msra.mxu0 0.0
  %146 = vmatpush.msra.mxu0 %v124
  %147 = vmatpush.msra.mxu0 %v120
  %148 = vmatpush.msra.mxu0 %v116
  %149 = vmatpush.msra.mxu0 %v112
  %150 = vmatpush.msra.mxu0 %v108
  %151 = vmatpush.msra.mxu0 %v104
  %152 = vmatpush.msra.mxu0 %v100
  %153 = vmatpush.msra.mxu0 %v96
  %154 = vmatpush.msra.mxu0 %v92
  %155 = vmatpush.msra.mxu0 %v88
  %156 = vmatpush.msra.mxu0 %v84
  %157 = vmatpush.msra.mxu0 %v80
  %158 = vmatpush.msra.mxu0 %v76
  %159 = vmatpush.msra.mxu0 %v72
  %160 = vmatpush.msra.mxu0 %v68
  %161 = vmatmul.f32.gmra.mxu0 %v140
  %v162 = vpop.f32.mrf.mxu0
  %v163 = vadd.f32 %v130, %v162
  %164 = vmatmul.f32.gmra.mxu0 %v143
  %v165 = vpop.f32.mrf.mxu0
  %v166 = vadd.f32 %v130, %v165
  %167 = vdwg.mxu0
  %168 = vmatpush.msra.mxu0 0.0
  %169 = vmatpush.msra.mxu0 %v125
  %170 = vmatpush.msra.mxu0 %v121
  %171 = vmatpush.msra.mxu0 %v117
  %172 = vmatpush.msra.mxu0 %v113
  %173 = vmatpush.msra.mxu0 %v109
  %174 = vmatpush.msra.mxu0 %v105
  %175 = vmatpush.msra.mxu0 %v101
  %176 = vmatpush.msra.mxu0 %v97
  %177 = vmatpush.msra.mxu0 %v93
  %178 = vmatpush.msra.mxu0 %v89
  %179 = vmatpush.msra.mxu0 %v85
  %180 = vmatpush.msra.mxu0 %v81
  %181 = vmatpush.msra.mxu0 %v77
  %182 = vmatpush.msra.mxu0 %v73
  %183 = vmatpush.msra.mxu0 %v69
  %184 = vmatmul.f32.gmra.mxu0 %v140
  %v185 = vpop.f32.mrf.mxu0
  %v186 = vadd.f32 %v131, %v185
  %187 = vmatmul.f32.gmra.mxu0 %v143
  %v188 = vpop.f32.mrf.mxu0
  %v189 = vadd.f32 %v131, %v188
  %190 = vdwg.mxu0
  %191 = vmatpush.msra.mxu0 0.0
  %192 = vmatpush.msra.mxu0 %v126
  %193 = vmatpush.msra.mxu0 %v122
  %194 = vmatpush.msra.mxu0 %v118
  %195 = vmatpush.msra.mxu0 %v114
  %196 = vmatpush.msra.mxu0 %v110
  %197 = vmatpush.msra.mxu0 %v106
  %198 = vmatpush.msra.mxu0 %v102
  %199 = vmatpush.msra.mxu0 %v98
  %200 = vmatpush.msra.mxu0 %v94
  %201 = vmatpush.msra.mxu0 %v90
  %202 = vmatpush.msra.mxu0 %v86
  %203 = vmatpush.msra.mxu0 %v82
  %204 = vmatpush.msra.mxu0 %v78
  %205 = vmatpush.msra.mxu0 %v74
  %206 = vmatpush.msra.mxu0 %v70
  %207 = vmatmul.f32.gmra.mxu0 %v140
  %v208 = vpop.f32.mrf.mxu0
  %v209 = vadd.f32 %v132, %v208
  %210 = vmatmul.f32.gmra.mxu0 %v143
  %v211 = vpop.f32.mrf.mxu0
  %v212 = vadd.f32 %v132, %v211
  %213 = vdwg.mxu0
  %214 = vmatpush.msra.mxu0 0.0
  %215 = vmatpush.msra.mxu0 %v127
  %216 = vmatpush.msra.mxu0 %v123
  %217 = vmatpush.msra.mxu0 %v119
  %218 = vmatpush.msra.mxu0 %v115
  %219 = vmatpush.msra.mxu0 %v111
  %220 = vmatpush.msra.mxu0 %v107
  %221 = vmatpush.msra.mxu0 %v103
  %222 = vmatpush.msra.mxu0 %v99
  %223 = vmatpush.msra.mxu0 %v95
  %224 = vmatpush.msra.mxu0 %v91
  %225 = vmatpush.msra.mxu0 %v87
  %226 = vmatpush.msra.mxu0 %v83
  %227 = vmatpush.msra.mxu0 %v79
  %228 = vmatpush.msra.mxu0 %v75
  %229 = vmatpush.msra.mxu0 %v71
  %230 = vmatmul.f32.gmra.mxu0 %v140
  %v231 = vpop.f32.mrf.mxu0
  %v232 = vadd.f32 %v133, %v231
  %233 = vmatmul.f32.gmra.mxu0 %v143
  %v234 = vpop.f32.mrf.mxu0
  %v235 = vadd.f32 %v133, %v234
  %236 = vdwg.mxu0
  %vm237 = vcmp.ge.f32.partialorder %v163, 0.0
  %vm238 = vcmp.ge.f32.partialorder %v186, 0.0
  %vm239 = vcmp.ge.f32.partialorder %v209, 0.0
  %vm240 = vcmp.ge.f32.partialorder %v232, 0.0
  %vm241 = vcmp.ge.f32.partialorder %v166, 0.0
  %vm242 = vcmp.ge.f32.partialorder %v189, 0.0
  %vm243 = vcmp.ge.f32.partialorder %v212, 0.0
  %vm244 = vcmp.ge.f32.partialorder %v235, 0.0
  %v245 = vmul.f32 %v163, 0.01
  %v246 = vmul.f32 %v186, 0.01
  %v247 = vmul.f32 %v209, 0.01
  %v248 = vmul.f32 %v232, 0.01
  %v249 = vmul.f32 %v166, 0.01
  %v250 = vmul.f32 %v189, 0.01
  %v251 = vmul.f32 %v212, 0.01
  %v252 = vmul.f32 %v235, 0.01
  %v253 = vsel %vm237, %v163, %v245
  %v254 = vsel %vm238, %v186, %v246
  %v255 = vsel %vm239, %v209, %v247
  %v256 = vsel %vm240, %v232, %v248
  %v257 = vsel %vm241, %v166, %v249
  %v258 = vsel %vm242, %v189, %v250
  %v259 = vsel %vm243, %v212, %v251
  %v260 = vsel %vm244, %v235, %v252
  %v261 = vld [vmem:[%s3] sm:$0xf]
  %v263 = vperm.slane %v261, 0
  %v264 = vperm.slane %v261, 1
  %v265 = vperm.slane %v261, 2
  %v266 = vperm.slane %v261, 3
  %v271 = vmul.f32 %v253, %v263
  %v272 = vmul.f32 %v254, %v264
  %v273 = vmul.f32 %v255, %v265
  %v274 = vmul.f32 %v256, %v266
  %v275 = vmul.f32 %v257, %v263
  %v276 = vmul.f32 %v258, %v264
  %v277 = vmul.f32 %v259, %v265
  %v278 = vmul.f32 %v260, %v266
  %v279 = vld [vmem:[%s4] sm:$0xf]
  %v281 = vperm.slane %v279, 0
  %v282 = vperm.slane %v279, 1
  %v283 = vperm.slane %v279, 2
  %v284 = vperm.slane %v279, 3
  %v289 = vadd.f32 %v271, %v281
  %v290 = vadd.f32 %v272, %v282
  %v291 = vadd.f32 %v273, %v283
  %v292 = vadd.f32 %v274, %v284
  %v293 = vadd.f32 %v275, %v281
  %v294 = vadd.f32 %v276, %v282
  %v295 = vadd.f32 %v277, %v283
  %v296 = vadd.f32 %v278, %v284
  %297 = vst [vmem:[#allocation2] sm:$0xff] %v289
  %298 = vst [vmem:[#allocation2 + $0x8] sm:$0xff] %v290
  %299 = vst [vmem:[#allocation2 + $0x10] sm:$0xff] %v291
  %300 = vst [vmem:[#allocation2 + $0x18] sm:$0xff] %v292
  %301 = vst [vmem:[#allocation2 + $0x20] sm:$0x3f] %v293
  %302 = vst [vmem:[#allocation2 + $0x28] sm:$0x3f] %v294
  %303 = vst [vmem:[#allocation2 + $0x30] sm:$0x3f] %v295
  %304 = vst [vmem:[#allocation2 + $0x38] sm:$0x3f] %v296
  %v305 = vld [vmem:[%s0 + $0xe] sm:$0xff]
  %v306 = vld [vmem:[%s0 + $0x16] sm:$0x3f]
  %v307 = vld [vmem:[%s1] sm:$0xff]
  %v308 = vld [vmem:[%s1 + $0x8] sm:$0xff]
  %v309 = vld [vmem:[%s1 + $0x10] sm:$0xff]
  %v310 = vld [vmem:[%s1 + $0x18] sm:$0xff]
  %v311 = vld [vmem:[%s1 + $0x20] sm:$0xff]
  %v312 = vld [vmem:[%s1 + $0x28] sm:$0xff]
  %v313 = vld [vmem:[%s1 + $0x30] sm:$0xff]
  %v314 = vld [vmem:[%s1 + $0x38] sm:$0xff]
  %v315 = vld [vmem:[%s1 + $0x40] sm:$0xff]
  %v316 = vld [vmem:[%s1 + $0x48] sm:$0xff]
  %v317 = vld [vmem:[%s1 + $0x50] sm:$0xff]
  %v318 = vld [vmem:[%s1 + $0x58] sm:$0xff]
  %v319 = vld [vmem:[%s1 + $0x60] sm:$0xff]
  %v320 = vld [vmem:[%s1 + $0x68] sm:$0xff]
  %v321 = vld [vmem:[%s1 + $0x70] sm:$0xff]
  %v322 = vld [vmem:[%s1 + $0x78] sm:$0xff]
  %v323 = vld [vmem:[%s1 + $0x80] sm:$0xff]
  %v324 = vld [vmem:[%s1 + $0x88] sm:$0xff]
  %v325 = vld [vmem:[%s1 + $0x90] sm:$0xff]
  %v326 = vld [vmem:[%s1 + $0x98] sm:$0xff]
  %v327 = vld [vmem:[%s1 + $0xa0] sm:$0xff]
  %v328 = vld [vmem:[%s1 + $0xa8] sm:$0xff]
  %v329 = vld [vmem:[%s1 + $0xb0] sm:$0xff]
  %v330 = vld [vmem:[%s1 + $0xb8] sm:$0xff]
  %v331 = vld [vmem:[%s1 + $0xc0] sm:$0xff]
  %v332 = vld [vmem:[%s1 + $0xc8] sm:$0xff]
  %v333 = vld [vmem:[%s1 + $0xd0] sm:$0xff]
  %v334 = vld [vmem:[%s1 + $0xd8] sm:$0xff]
  %v335 = vld [vmem:[%s1 + $0xe0] sm:$0xff]
  %v336 = vld [vmem:[%s1 + $0xe8] sm:$0xff]
  %v337 = vld [vmem:[%s1 + $0xf0] sm:$0xff]
  %v338 = vld [vmem:[%s1 + $0xf8] sm:$0xff]
  %v339 = vld [vmem:[%s1 + $0x100] sm:$0xff]
  %v340 = vld [vmem:[%s1 + $0x108] sm:$0xff]
  %v341 = vld [vmem:[%s1 + $0x110] sm:$0xff]
  %v342 = vld [vmem:[%s1 + $0x118] sm:$0xff]
  %v343 = vld [vmem:[%s1 + $0x120] sm:$0xff]
  %v344 = vld [vmem:[%s1 + $0x128] sm:$0xff]
  %v345 = vld [vmem:[%s1 + $0x130] sm:$0xff]
  %v346 = vld [vmem:[%s1 + $0x138] sm:$0xff]
  %v347 = vld [vmem:[%s1 + $0x140] sm:$0xff]
  %v348 = vld [vmem:[%s1 + $0x148] sm:$0xff]
  %v349 = vld [vmem:[%s1 + $0x150] sm:$0xff]
  %v350 = vld [vmem:[%s1 + $0x158] sm:$0xff]
  %v351 = vld [vmem:[%s1 + $0x160] sm:$0xff]
  %v352 = vld [vmem:[%s1 + $0x168] sm:$0xff]
  %v353 = vld [vmem:[%s1 + $0x170] sm:$0xff]
  %v354 = vld [vmem:[%s1 + $0x178] sm:$0xff]
  %v355 = vld [vmem:[%s1 + $0x180] sm:$0xff]
  %v356 = vld [vmem:[%s1 + $0x188] sm:$0xff]
  %v357 = vld [vmem:[%s1 + $0x190] sm:$0xff]
  %v358 = vld [vmem:[%s1 + $0x198] sm:$0xff]
  %v359 = vld [vmem:[%s1 + $0x1a0] sm:$0xff]
  %v360 = vld [vmem:[%s1 + $0x1a8] sm:$0xff]
  %v361 = vld [vmem:[%s1 + $0x1b0] sm:$0xff]
  %v362 = vld [vmem:[%s1 + $0x1b8] sm:$0xff]
  %v363 = vld [vmem:[%s1 + $0x1c0] sm:$0xff]
  %v364 = vld [vmem:[%s1 + $0x1c8] sm:$0xff]
  %v365 = vld [vmem:[%s1 + $0x1d0] sm:$0xff]
  %v366 = vld [vmem:[%s1 + $0x1d8] sm:$0xff]
  %v367 = vld [vmem:[%s2] sm:$0xf]
  %v369 = vperm.slane %v367, 0
  %v370 = vperm.slane %v367, 1
  %v371 = vperm.slane %v367, 2
  %v372 = vperm.slane %v367, 3
  %v378 = vsel %vm138, %v305, 0
  %v381 = vsel %vm138, %v306, 0
  %383 = vmatpush.msra.mxu0 0.0
  %384 = vmatpush.msra.mxu0 %v363
  %385 = vmatpush.msra.mxu0 %v359
  %386 = vmatpush.msra.mxu0 %v355
  %387 = vmatpush.msra.mxu0 %v351
  %388 = vmatpush.msra.mxu0 %v347
  %389 = vmatpush.msra.mxu0 %v343
  %390 = vmatpush.msra.mxu0 %v339
  %391 = vmatpush.msra.mxu0 %v335
  %392 = vmatpush.msra.mxu0 %v331
  %393 = vmatpush.msra.mxu0 %v327
  %394 = vmatpush.msra.mxu0 %v323
  %395 = vmatpush.msra.mxu0 %v319
  %396 = vmatpush.msra.mxu0 %v315
  %397 = vmatpush.msra.mxu0 %v311
  %398 = vmatpush.msra.mxu0 %v307
  %399 = vmatmul.f32.gmra.mxu0 %v378
  %v400 = vpop.f32.mrf.mxu0
  %v401 = vadd.f32 %v369, %v400
  %402 = vmatmul.f32.gmra.mxu0 %v381
  %v403 = vpop.f32.mrf.mxu0
  %v404 = vadd.f32 %v369, %v403
  %405 = vdwg.mxu0
  %406 = vmatpush.msra.mxu0 0.0
  %407 = vmatpush.msra.mxu0 %v364
  %408 = vmatpush.msra.mxu0 %v360
  %409 = vmatpush.msra.mxu0 %v356
  %410 = vmatpush.msra.mxu0 %v352
  %411 = vmatpush.msra.mxu0 %v348
  %412 = vmatpush.msra.mxu0 %v344
  %413 = vmatpush.msra.mxu0 %v340
  %414 = vmatpush.msra.mxu0 %v336
  %415 = vmatpush.msra.mxu0 %v332
  %416 = vmatpush.msra.mxu0 %v328
  %417 = vmatpush.msra.mxu0 %v324
  %418 = vmatpush.msra.mxu0 %v320
  %419 = vmatpush.msra.mxu0 %v316
  %420 = vmatpush.msra.mxu0 %v312
  %421 = vmatpush.msra.mxu0 %v308
  %422 = vmatmul.f32.gmra.mxu0 %v378
  %v423 = vpop.f32.mrf.mxu0
  %v424 = vadd.f32 %v370, %v423
  %425 = vmatmul.f32.gmra.mxu0 %v381
  %v426 = vpop.f32.mrf.mxu0
  %v427 = vadd.f32 %v370, %v426
  %428 = vdwg.mxu0
  %429 = vmatpush.msra.mxu0 0.0
  %430 = vmatpush.msra.mxu0 %v365
  %431 = vmatpush.msra.mxu0 %v361
  %432 = vmatpush.msra.mxu0 %v357
  %433 = vmatpush.msra.mxu0 %v353
  %434 = vmatpush.msra.mxu0 %v349
  %435 = vmatpush.msra.mxu0 %v345
  %436 = vmatpush.msra.mxu0 %v341
  %437 = vmatpush.msra.mxu0 %v337
  %438 = vmatpush.msra.mxu0 %v333
  %439 = vmatpush.msra.mxu0 %v329
  %440 = vmatpush.msra.mxu0 %v325
  %441 = vmatpush.msra.mxu0 %v321
  %442 = vmatpush.msra.mxu0 %v317
  %443 = vmatpush.msra.mxu0 %v313
  %444 = vmatpush.msra.mxu0 %v309
  %445 = vmatmul.f32.gmra.mxu0 %v378
  %v446 = vpop.f32.mrf.mxu0
  %v447 = vadd.f32 %v371, %v446
  %448 = vmatmul.f32.gmra.mxu0 %v381
  %v449 = vpop.f32.mrf.mxu0
  %v450 = vadd.f32 %v371, %v449
  %451 = vdwg.mxu0
  %452 = vmatpush.msra.mxu0 0.0
  %453 = vmatpush.msra.mxu0 %v366
  %454 = vmatpush.msra.mxu0 %v362
  %455 = vmatpush.msra.mxu0 %v358
  %456 = vmatpush.msra.mxu0 %v354
  %457 = vmatpush.msra.mxu0 %v350
  %458 = vmatpush.msra.mxu0 %v346
  %459 = vmatpush.msra.mxu0 %v342
  %460 = vmatpush.msra.mxu0 %v338
  %461 = vmatpush.msra.mxu0 %v334
  %462 = vmatpush.msra.mxu0 %v330
  %463 = vmatpush.msra.mxu0 %v326
  %464 = vmatpush.msra.mxu0 %v322
  %465 = vmatpush.msra.mxu0 %v318
  %466 = vmatpush.msra.mxu0 %v314
  %467 = vmatpush.msra.mxu0 %v310
  %468 = vmatmul.f32.gmra.mxu0 %v378
  %v469 = vpop.f32.mrf.mxu0
  %v470 = vadd.f32 %v372, %v469
  %471 = vmatmul.f32.gmra.mxu0 %v381
  %v472 = vpop.f32.mrf.mxu0
  %v473 = vadd.f32 %v372, %v472
  %474 = vdwg.mxu0
  %vm475 = vcmp.ge.f32.partialorder %v401, 0.0
  %vm476 = vcmp.ge.f32.partialorder %v424, 0.0
  %vm477 = vcmp.ge.f32.partialorder %v447, 0.0
  %vm478 = vcmp.ge.f32.partialorder %v470, 0.0
  %vm479 = vcmp.ge.f32.partialorder %v404, 0.0
  %vm480 = vcmp.ge.f32.partialorder %v427, 0.0
  %vm481 = vcmp.ge.f32.partialorder %v450, 0.0
  %vm482 = vcmp.ge.f32.partialorder %v473, 0.0
  %v483 = vmul.f32 %v401, 0.01
  %v484 = vmul.f32 %v424, 0.01
  %v485 = vmul.f32 %v447, 0.01
  %v486 = vmul.f32 %v470, 0.01
  %v487 = vmul.f32 %v404, 0.01
  %v488 = vmul.f32 %v427, 0.01
  %v489 = vmul.f32 %v450, 0.01
  %v490 = vmul.f32 %v473, 0.01
  %v491 = vsel %vm475, %v401, %v483
  %v492 = vsel %vm476, %v424, %v484
  %v493 = vsel %vm477, %v447, %v485
  %v494 = vsel %vm478, %v470, %v486
  %v495 = vsel %vm479, %v404, %v487
  %v496 = vsel %vm480, %v427, %v488
  %v497 = vsel %vm481, %v450, %v489
  %v498 = vsel %vm482, %v473, %v490
  %v499 = vld [vmem:[%s3] sm:$0xf]
  %v501 = vperm.slane %v499, 0
  %v502 = vperm.slane %v499, 1
  %v503 = vperm.slane %v499, 2
  %v504 = vperm.slane %v499, 3
  %v509 = vmul.f32 %v491, %v501
  %v510 = vmul.f32 %v492, %v502
  %v511 = vmul.f32 %v493, %v503
  %v512 = vmul.f32 %v494, %v504
  %v513 = vmul.f32 %v495, %v501
  %v514 = vmul.f32 %v496, %v502
  %v515 = vmul.f32 %v497, %v503
  %v516 = vmul.f32 %v498, %v504
  %v517 = vld [vmem:[%s4] sm:$0xf]
  %v519 = vperm.slane %v517, 0
  %v520 = vperm.slane %v517, 1
  %v521 = vperm.slane %v517, 2
  %v522 = vperm.slane %v517, 3
  %v527 = vadd.f32 %v509, %v519
  %v528 = vadd.f32 %v510, %v520
  %v529 = vadd.f32 %v511, %v521
  %v530 = vadd.f32 %v512, %v522
  %v531 = vadd.f32 %v513, %v519
  %v532 = vadd.f32 %v514, %v520
  %v533 = vadd.f32 %v515, %v521
  %v534 = vadd.f32 %v516, %v522
  %535 = vst [vmem:[#allocation2 + $0x40] sm:$0xff] %v527
  %536 = vst [vmem:[#allocation2 + $0x48] sm:$0xff] %v528
  %537 = vst [vmem:[#allocation2 + $0x50] sm:$0xff] %v529
  %538 = vst [vmem:[#allocation2 + $0x58] sm:$0xff] %v530
  %539 = vst [vmem:[#allocation2 + $0x60] sm:$0x3f] %v531
  %540 = vst [vmem:[#allocation2 + $0x68] sm:$0x3f] %v532
  %541 = vst [vmem:[#allocation2 + $0x70] sm:$0x3f] %v533
  %542 = vst [vmem:[#allocation2 + $0x78] sm:$0x3f] %v534
  %s543 = scalar_lea.vmem [#allocation2], 39
  %v544 = vld [vmem:[%s543] ss:$8 sm:$0x3]
  %v545 = vlaneseq
  %vm546 = vcmp.ge.s32.totalorder %v545, 0
  %vm547 = vcmp.lt.s32.totalorder %v545, 224
  %vm548 = vmand %vm546, %vm547
  %549 = vst.msk [vmem:[#allocation3] ss:$8 sm:$0x3] %vm548, %v544
  %550 = vst.msk [vmem:[#allocation3] ss:$8 sm:$0x0] %vm548, %v544
  %v551 = vld [vmem:[#allocation2] ss:$8 sm:$0x3]
  %s552 = scalar_lea.vmem [#allocation3], 34
  %553 = vst.msk [vmem:[%s552] ss:$8 sm:$0x3] %vm548, %v551
  %554 = vst.msk [vmem:[%s552] ss:$8 sm:$0x0] %vm548, %v551
  %s555 = scalar_lea.vmem [#allocation2], 1
  %v556 = vld [vmem:[%s555] ss:$8 sm:$0x3]
  %s557 = scalar_lea.vmem [#allocation3], 68
  %558 = vst.msk [vmem:[%s557] ss:$8 sm:$0x3] %vm548, %v556
  %559 = vst.msk [vmem:[%s557] ss:$8 sm:$0x0] %vm548, %v556
  %s560 = scalar_lea.vmem [#allocation2], 2
  %v561 = vld [vmem:[%s560] ss:$8 sm:$0x3]
  %s562 = scalar_lea.vmem [#allocation3], 102
  %563 = vst.msk [vmem:[%s562] ss:$8 sm:$0x3] %vm548, %v561
  %564 = vst.msk [vmem:[%s562] ss:$8 sm:$0x0] %vm548, %v561
  %s565 = scalar_lea.vmem [#allocation2], 3
  %v566 = vld [vmem:[%s565] ss:$8 sm:$0x3]
  %s567 = scalar_lea.vmem [#allocation3], 144
  %568 = vst.msk [vmem:[%s567] ss:$8 sm:$0x3] %vm548, %v566
  %569 = vst.msk [vmem:[%s567] ss:$8 sm:$0x0] %vm548, %v566
  %s570 = scalar_lea.vmem [#allocation2], 4
  %v571 = vld [vmem:[%s570] ss:$8 sm:$0x3]
  %s572 = scalar_lea.vmem [#allocation3], 178
  %573 = vst.msk [vmem:[%s572] ss:$8 sm:$0x3] %vm548, %v571
  %574 = vst.msk [vmem:[%s572] ss:$8 sm:$0x0] %vm548, %v571
  %s575 = scalar_lea.vmem [#allocation2], 5
  %v576 = vld [vmem:[%s575] ss:$8 sm:$0x3]
  %s577 = scalar_lea.vmem [#allocation3], 212
  %578 = vst.msk [vmem:[%s577] ss:$8 sm:$0x3] %vm548, %v576
  %579 = vst.msk [vmem:[%s577] ss:$8 sm:$0x0] %vm548, %v576
  %s580 = scalar_lea.vmem [#allocation2], 47
  %v581 = vld [vmem:[%s580] ss:$8 sm:$0x3]
  %s582 = scalar_lea.vmem [#allocation3], 2
  %583 = vst.msk [vmem:[%s582] ss:$8 sm:$0x3] %vm548, %v581
  %584 = vst.msk [vmem:[%s582] ss:$8 sm:$0x0] %vm548, %v581
  %s585 = scalar_lea.vmem [#allocation2], 8
  %v586 = vld [vmem:[%s585] ss:$8 sm:$0x3]
  %s587 = scalar_lea.vmem [#allocation3], 36
  %588 = vst.msk [vmem:[%s587] ss:$8 sm:$0x3] %vm548, %v586
  %589 = vst.msk [vmem:[%s587] ss:$8 sm:$0x0] %vm548, %v586
  %s590 = scalar_lea.vmem [#allocation2], 9
  %v591 = vld [vmem:[%s590] ss:$8 sm:$0x3]
  %s592 = scalar_lea.vmem [#allocation3], 70
  %593 = vst.msk [vmem:[%s592] ss:$8 sm:$0x3] %vm548, %v591
  %594 = vst.msk [vmem:[%s592] ss:$8 sm:$0x0] %vm548, %v591
  %s595 = scalar_lea.vmem [#allocation2], 10
  %v596 = vld [vmem:[%s595] ss:$8 sm:$0x3]
  %s597 = scalar_lea.vmem [#allocation3], 112
  %598 = vst.msk [vmem:[%s597] ss:$8 sm:$0x3] %vm548, %v596
  %599 = vst.msk [vmem:[%s597] ss:$8 sm:$0x0] %vm548, %v596
  %s600 = scalar_lea.vmem [#allocation2], 11
  %v601 = vld [vmem:[%s600] ss:$8 sm:$0x3]
  %s602 = scalar_lea.vmem [#allocation3], 146
  %603 = vst.msk [vmem:[%s602] ss:$8 sm:$0x3] %vm548, %v601
  %604 = vst.msk [vmem:[%s602] ss:$8 sm:$0x0] %vm548, %v601
  %s605 = scalar_lea.vmem [#allocation2], 12
  %v606 = vld [vmem:[%s605] ss:$8 sm:$0x3]
  %s607 = scalar_lea.vmem [#allocation3], 180
  %608 = vst.msk [vmem:[%s607] ss:$8 sm:$0x3] %vm548, %v606
  %609 = vst.msk [vmem:[%s607] ss:$8 sm:$0x0] %vm548, %v606
  %s610 = scalar_lea.vmem [#allocation2], 13
  %v611 = vld [vmem:[%s610] ss:$8 sm:$0x3]
  %s612 = scalar_lea.vmem [#allocation3], 214
  %613 = vst.msk [vmem:[%s612] ss:$8 sm:$0x3] %vm548, %v611
  %614 = vst.msk [vmem:[%s612] ss:$8 sm:$0x0] %vm548, %v611
  %s615 = scalar_lea.vmem [#allocation2], 55
  %v616 = vld [vmem:[%s615] ss:$8 sm:$0x3]
  %s617 = scalar_lea.vmem [#allocation3], 4
  %618 = vst.msk [vmem:[%s617] ss:$8 sm:$0x3] %vm548, %v616
  %619 = vst.msk [vmem:[%s617] ss:$8 sm:$0x0] %vm548, %v616
  %s620 = scalar_lea.vmem [#allocation2], 16
  %v621 = vld [vmem:[%s620] ss:$8 sm:$0x3]
  %s622 = scalar_lea.vmem [#allocation3], 38
  %623 = vst.msk [vmem:[%s622] ss:$8 sm:$0x3] %vm548, %v621
  %624 = vst.msk [vmem:[%s622] ss:$8 sm:$0x0] %vm548, %v621
  %s625 = scalar_lea.vmem [#allocation2], 17
  %v626 = vld [vmem:[%s625] ss:$8 sm:$0x3]
  %s627 = scalar_lea.vmem [#allocation3], 80
  %628 = vst.msk [vmem:[%s627] ss:$8 sm:$0x3] %vm548, %v626
  %629 = vst.msk [vmem:[%s627] ss:$8 sm:$0x0] %vm548, %v626
  %s630 = scalar_lea.vmem [#allocation2], 18
  %v631 = vld [vmem:[%s630] ss:$8 sm:$0x3]
  %s632 = scalar_lea.vmem [#allocation3], 114
  %633 = vst.msk [vmem:[%s632] ss:$8 sm:$0x3] %vm548, %v631
  %634 = vst.msk [vmem:[%s632] ss:$8 sm:$0x0] %vm548, %v631
  %s635 = scalar_lea.vmem [#allocation2], 19
  %v636 = vld [vmem:[%s635] ss:$8 sm:$0x3]
  %s637 = scalar_lea.vmem [#allocation3], 148
  %638 = vst.msk [vmem:[%s637] ss:$8 sm:$0x3] %vm548, %v636
  %639 = vst.msk [vmem:[%s637] ss:$8 sm:$0x0] %vm548, %v636
  %s640 = scalar_lea.vmem [#allocation2], 20
  %v641 = vld [vmem:[%s640] ss:$8 sm:$0x3]
  %s642 = scalar_lea.vmem [#allocation3], 182
  %643 = vst.msk [vmem:[%s642] ss:$8 sm:$0x3] %vm548, %v641
  %644 = vst.msk [vmem:[%s642] ss:$8 sm:$0x0] %vm548, %v641
  %s645 = scalar_lea.vmem [#allocation2], 21
  %v646 = vld [vmem:[%s645] ss:$8 sm:$0x3]
  %s647 = scalar_lea.vmem [#allocation3], 224
  %648 = vst.msk [vmem:[%s647] ss:$8 sm:$0x3] %vm548, %v646
  %649 = vst.msk [vmem:[%s647] ss:$8 sm:$0x0] %vm548, %v646
  %v650 = vld [vmem:[%s565] ss:$8 sm:$0x3]
  %s651 = scalar_lea.vmem [#allocation3], 6
  %652 = vst.msk [vmem:[%s651] ss:$8 sm:$0x3] %vm548, %v650
  %653 = vst.msk [vmem:[%s651] ss:$8 sm:$0x0] %vm548, %v650
  %v654 = vld [vmem:[%s570] ss:$8 sm:$0x3]
  %s655 = scalar_lea.vmem [#allocation3], 48
  %656 = vst.msk [vmem:[%s655] ss:$8 sm:$0x3] %vm548, %v654
  %657 = vst.msk [vmem:[%s655] ss:$8 sm:$0x0] %vm548, %v654
  %v658 = vld [vmem:[%s575] ss:$8 sm:$0x3]
  %s659 = scalar_lea.vmem [#allocation3], 82
  %660 = vst.msk [vmem:[%s659] ss:$8 sm:$0x3] %vm548, %v658
  %661 = vst.msk [vmem:[%s659] ss:$8 sm:$0x0] %vm548, %v658
  %s662 = scalar_lea.vmem [#allocation2], 6
  %v663 = vld [vmem:[%s662] ss:$8 sm:$0x3]
  %s664 = scalar_lea.vmem [#allocation3], 116
  %665 = vst.msk [vmem:[%s664] ss:$8 sm:$0x3] %vm548, %v663
  %666 = vst.msk [vmem:[%s664] ss:$8 sm:$0x0] %vm548, %v663
  %s667 = scalar_lea.vmem [#allocation2], 7
  %v668 = vld [vmem:[%s667] ss:$8 sm:$0x3]
  %s669 = scalar_lea.vmem [#allocation3], 150
  %670 = vst.msk [vmem:[%s669] ss:$8 sm:$0x3] %vm548, %v668
  %671 = vst.msk [vmem:[%s669] ss:$8 sm:$0x0] %vm548, %v668
  %s672 = scalar_lea.vmem [#allocation2], 32
  %v673 = vld [vmem:[%s672] ss:$8 sm:$0x3]
  %s674 = scalar_lea.vmem [#allocation3], 192
  %675 = vst.msk [vmem:[%s674] ss:$8 sm:$0x3] %vm548, %v673
  %676 = vst.msk [vmem:[%s674] ss:$8 sm:$0x0] %vm548, %v673
  %s677 = scalar_lea.vmem [#allocation2], 33
  %v678 = vld [vmem:[%s677] ss:$8 sm:$0x3]
  %s679 = scalar_lea.vmem [#allocation3], 226
  %680 = vst.msk [vmem:[%s679] ss:$8 sm:$0x3] %vm548, %v678
  %681 = vst.msk [vmem:[%s679] ss:$8 sm:$0x0] %vm548, %v678
  %v682 = vld [vmem:[%s600] ss:$8 sm:$0x3]
  %s683 = scalar_lea.vmem [#allocation3], 16
  %684 = vst.msk [vmem:[%s683] ss:$8 sm:$0x3] %vm548, %v682
  %685 = vst.msk [vmem:[%s683] ss:$8 sm:$0x0] %vm548, %v682
  %v686 = vld [vmem:[%s605] ss:$8 sm:$0x3]
  %s687 = scalar_lea.vmem [#allocation3], 50
  %688 = vst.msk [vmem:[%s687] ss:$8 sm:$0x3] %vm548, %v686
  %689 = vst.msk [vmem:[%s687] ss:$8 sm:$0x0] %vm548, %v686
  %v690 = vld [vmem:[%s610] ss:$8 sm:$0x3]
  %s691 = scalar_lea.vmem [#allocation3], 84
  %692 = vst.msk [vmem:[%s691] ss:$8 sm:$0x3] %vm548, %v690
  %693 = vst.msk [vmem:[%s691] ss:$8 sm:$0x0] %vm548, %v690
  %s694 = scalar_lea.vmem [#allocation2], 14
  %v695 = vld [vmem:[%s694] ss:$8 sm:$0x3]
  %s696 = scalar_lea.vmem [#allocation3], 118
  %697 = vst.msk [vmem:[%s696] ss:$8 sm:$0x3] %vm548, %v695
  %698 = vst.msk [vmem:[%s696] ss:$8 sm:$0x0] %vm548, %v695
  %s699 = scalar_lea.vmem [#allocation2], 15
  %v700 = vld [vmem:[%s699] ss:$8 sm:$0x3]
  %s701 = scalar_lea.vmem [#allocation3], 160
  %702 = vst.msk [vmem:[%s701] ss:$8 sm:$0x3] %vm548, %v700
  %703 = vst.msk [vmem:[%s701] ss:$8 sm:$0x0] %vm548, %v700
  %s704 = scalar_lea.vmem [#allocation2], 40
  %v705 = vld [vmem:[%s704] ss:$8 sm:$0x3]
  %s706 = scalar_lea.vmem [#allocation3], 194
  %707 = vst.msk [vmem:[%s706] ss:$8 sm:$0x3] %vm548, %v705
  %708 = vst.msk [vmem:[%s706] ss:$8 sm:$0x0] %vm548, %v705
  %s709 = scalar_lea.vmem [#allocation2], 41
  %v710 = vld [vmem:[%s709] ss:$8 sm:$0x3]
  %s711 = scalar_lea.vmem [#allocation3], 228
  %712 = vst.msk [vmem:[%s711] ss:$8 sm:$0x3] %vm548, %v710
  %713 = vst.msk [vmem:[%s711] ss:$8 sm:$0x0] %vm548, %v710
  %v714 = vld [vmem:[%s635] ss:$8 sm:$0x3]
  %s715 = scalar_lea.vmem [#allocation3], 18
  %716 = vst.msk [vmem:[%s715] ss:$8 sm:$0x3] %vm548, %v714
  %717 = vst.msk [vmem:[%s715] ss:$8 sm:$0x0] %vm548, %v714
  %v718 = vld [vmem:[%s640] ss:$8 sm:$0x3]
  %s719 = scalar_lea.vmem [#allocation3], 52
  %720 = vst.msk [vmem:[%s719] ss:$8 sm:$0x3] %vm548, %v718
  %721 = vst.msk [vmem:[%s719] ss:$8 sm:$0x0] %vm548, %v718
  %v722 = vld [vmem:[%s645] ss:$8 sm:$0x3]
  %s723 = scalar_lea.vmem [#allocation3], 86
  %724 = vst.msk [vmem:[%s723] ss:$8 sm:$0x3] %vm548, %v722
  %725 = vst.msk [vmem:[%s723] ss:$8 sm:$0x0] %vm548, %v722
  %s726 = scalar_lea.vmem [#allocation2], 22
  %v727 = vld [vmem:[%s726] ss:$8 sm:$0x3]
  %s728 = scalar_lea.vmem [#allocation3], 128
  %729 = vst.msk [vmem:[%s728] ss:$8 sm:$0x3] %vm548, %v727
  %730 = vst.msk [vmem:[%s728] ss:$8 sm:$0x0] %vm548, %v727
  %s731 = scalar_lea.vmem [#allocation2], 23
  %v732 = vld [vmem:[%s731] ss:$8 sm:$0x3]
  %s733 = scalar_lea.vmem [#allocation3], 162
  %734 = vst.msk [vmem:[%s733] ss:$8 sm:$0x3] %vm548, %v732
  %735 = vst.msk [vmem:[%s733] ss:$8 sm:$0x0] %vm548, %v732
  %s736 = scalar_lea.vmem [#allocation2], 48
  %v737 = vld [vmem:[%s736] ss:$8 sm:$0x3]
  %s738 = scalar_lea.vmem [#allocation3], 196
  %739 = vst.msk [vmem:[%s738] ss:$8 sm:$0x3] %vm548, %v737
  %740 = vst.msk [vmem:[%s738] ss:$8 sm:$0x0] %vm548, %v737
  %s741 = scalar_lea.vmem [#allocation2], 49
  %v742 = vld [vmem:[%s741] ss:$8 sm:$0x3]
  %s743 = scalar_lea.vmem [#allocation3], 230
  %744 = vst.msk [vmem:[%s743] ss:$8 sm:$0x3] %vm548, %v742
  %745 = vst.msk [vmem:[%s743] ss:$8 sm:$0x0] %vm548, %v742
  %v746 = vld [vmem:[%s667] ss:$8 sm:$0x3]
  %s747 = scalar_lea.vmem [#allocation3], 20
  %748 = vst.msk [vmem:[%s747] ss:$8 sm:$0x3] %vm548, %v746
  %749 = vst.msk [vmem:[%s747] ss:$8 sm:$0x0] %vm548, %v746
  %v750 = vld [vmem:[%s672] ss:$8 sm:$0x3]
  %s751 = scalar_lea.vmem [#allocation3], 54
  %752 = vst.msk [vmem:[%s751] ss:$8 sm:$0x3] %vm548, %v750
  %753 = vst.msk [vmem:[%s751] ss:$8 sm:$0x0] %vm548, %v750
  %v754 = vld [vmem:[%s677] ss:$8 sm:$0x3]
  %s755 = scalar_lea.vmem [#allocation3], 96
  %756 = vst.msk [vmem:[%s755] ss:$8 sm:$0x3] %vm548, %v754
  %757 = vst.msk [vmem:[%s755] ss:$8 sm:$0x0] %vm548, %v754
  %s758 = scalar_lea.vmem [#allocation2], 34
  %v759 = vld [vmem:[%s758] ss:$8 sm:$0x3]
  %s760 = scalar_lea.vmem [#allocation3], 130
  %761 = vst.msk [vmem:[%s760] ss:$8 sm:$0x3] %vm548, %v759
  %762 = vst.msk [vmem:[%s760] ss:$8 sm:$0x0] %vm548, %v759
  %s763 = scalar_lea.vmem [#allocation2], 35
  %v764 = vld [vmem:[%s763] ss:$8 sm:$0x3]
  %s765 = scalar_lea.vmem [#allocation3], 164
  %766 = vst.msk [vmem:[%s765] ss:$8 sm:$0x3] %vm548, %v764
  %767 = vst.msk [vmem:[%s765] ss:$8 sm:$0x0] %vm548, %v764
  %s768 = scalar_lea.vmem [#allocation2], 36
  %v769 = vld [vmem:[%s768] ss:$8 sm:$0x3]
  %s770 = scalar_lea.vmem [#allocation3], 198
  %771 = vst.msk [vmem:[%s770] ss:$8 sm:$0x3] %vm548, %v769
  %772 = vst.msk [vmem:[%s770] ss:$8 sm:$0x0] %vm548, %v769
  %s773 = scalar_lea.vmem [#allocation2], 37
  %v774 = vld [vmem:[%s773] ss:$8 sm:$0x3]
  %s775 = scalar_lea.vmem [#allocation3], 240
  %776 = vst.msk [vmem:[%s775] ss:$8 sm:$0x3] %vm548, %v774
  %777 = vst.msk [vmem:[%s775] ss:$8 sm:$0x0] %vm548, %v774
  %v778 = vld [vmem:[%s699] ss:$8 sm:$0x3]
  %s779 = scalar_lea.vmem [#allocation3], 22
  %780 = vst.msk [vmem:[%s779] ss:$8 sm:$0x3] %vm548, %v778
  %781 = vst.msk [vmem:[%s779] ss:$8 sm:$0x0] %vm548, %v778
  %v782 = vld [vmem:[%s704] ss:$8 sm:$0x3]
  %s783 = scalar_lea.vmem [#allocation3], 64
  %784 = vst.msk [vmem:[%s783] ss:$8 sm:$0x3] %vm548, %v782
  %785 = vst.msk [vmem:[%s783] ss:$8 sm:$0x0] %vm548, %v782
  %v786 = vld [vmem:[%s709] ss:$8 sm:$0x3]
  %s787 = scalar_lea.vmem [#allocation3], 98
  %788 = vst.msk [vmem:[%s787] ss:$8 sm:$0x3] %vm548, %v786
  %789 = vst.msk [vmem:[%s787] ss:$8 sm:$0x0] %vm548, %v786
  %s790 = scalar_lea.vmem [#allocation2], 42
  %v791 = vld [vmem:[%s790] ss:$8 sm:$0x3]
  %s792 = scalar_lea.vmem [#allocation3], 132
  %793 = vst.msk [vmem:[%s792] ss:$8 sm:$0x3] %vm548, %v791
  %794 = vst.msk [vmem:[%s792] ss:$8 sm:$0x0] %vm548, %v791
  %s795 = scalar_lea.vmem [#allocation2], 43
  %v796 = vld [vmem:[%s795] ss:$8 sm:$0x3]
  %s797 = scalar_lea.vmem [#allocation3], 166
  %798 = vst.msk [vmem:[%s797] ss:$8 sm:$0x3] %vm548, %v796
  %799 = vst.msk [vmem:[%s797] ss:$8 sm:$0x0] %vm548, %v796
  %s800 = scalar_lea.vmem [#allocation2], 44
  %v801 = vld [vmem:[%s800] ss:$8 sm:$0x3]
  %s802 = scalar_lea.vmem [#allocation3], 208
  %803 = vst.msk [vmem:[%s802] ss:$8 sm:$0x3] %vm548, %v801
  %804 = vst.msk [vmem:[%s802] ss:$8 sm:$0x0] %vm548, %v801
  %s805 = scalar_lea.vmem [#allocation2], 45
  %v806 = vld [vmem:[%s805] ss:$8 sm:$0x3]
  %s807 = scalar_lea.vmem [#allocation3], 242
  %808 = vst.msk [vmem:[%s807] ss:$8 sm:$0x3] %vm548, %v806
  %809 = vst.msk [vmem:[%s807] ss:$8 sm:$0x0] %vm548, %v806
  %v810 = vld [vmem:[%s731] ss:$8 sm:$0x3]
  %s811 = scalar_lea.vmem [#allocation3], 32
  %812 = vst.msk [vmem:[%s811] ss:$8 sm:$0x3] %vm548, %v810
  %813 = vst.msk [vmem:[%s811] ss:$8 sm:$0x0] %vm548, %v810
  %v814 = vld [vmem:[%s736] ss:$8 sm:$0x3]
  %s815 = scalar_lea.vmem [#allocation3], 66
  %816 = vst.msk [vmem:[%s815] ss:$8 sm:$0x3] %vm548, %v814
  %817 = vst.msk [vmem:[%s815] ss:$8 sm:$0x0] %vm548, %v814
  %v818 = vld [vmem:[%s741] ss:$8 sm:$0x3]
  %s819 = scalar_lea.vmem [#allocation3], 100
  %820 = vst.msk [vmem:[%s819] ss:$8 sm:$0x3] %vm548, %v818
  %821 = vst.msk [vmem:[%s819] ss:$8 sm:$0x0] %vm548, %v818
  %s822 = scalar_lea.vmem [#allocation2], 50
  %v823 = vld [vmem:[%s822] ss:$8 sm:$0x3]
  %s824 = scalar_lea.vmem [#allocation3], 134
  %825 = vst.msk [vmem:[%s824] ss:$8 sm:$0x3] %vm548, %v823
  %826 = vst.msk [vmem:[%s824] ss:$8 sm:$0x0] %vm548, %v823
  %s827 = scalar_lea.vmem [#allocation2], 51
  %v828 = vld [vmem:[%s827] ss:$8 sm:$0x3]
  %s829 = scalar_lea.vmem [#allocation3], 176
  %830 = vst.msk [vmem:[%s829] ss:$8 sm:$0x3] %vm548, %v828
  %831 = vst.msk [vmem:[%s829] ss:$8 sm:$0x0] %vm548, %v828
  %s832 = scalar_lea.vmem [#allocation2], 52
  %v833 = vld [vmem:[%s832] ss:$8 sm:$0x3]
  %s834 = scalar_lea.vmem [#allocation3], 210
  %835 = vst.msk [vmem:[%s834] ss:$8 sm:$0x3] %vm548, %v833
  %836 = vst.msk [vmem:[%s834] ss:$8 sm:$0x0] %vm548, %v833
  %s837 = scalar_lea.vmem [#allocation2], 53
  %v838 = vld [vmem:[%s837] ss:$8 sm:$0x3]
  %s839 = scalar_lea.vmem [#allocation3], 244
  %840 = vst.msk [vmem:[%s839] ss:$8 sm:$0x3] %vm548, %v838
  %841 = vst.msk [vmem:[%s839] ss:$8 sm:$0x0] %vm548, %v838
  %s842 = scalar_lea.vmem [#allocation2], 103
  %v843 = vld [vmem:[%s842] ss:$8 sm:$0x3]
  %s844 = scalar_lea.vmem [#allocation3], 1
  %845 = vst.msk [vmem:[%s844] ss:$8 sm:$0x3] %vm548, %v843
  %846 = vst.msk [vmem:[%s844] ss:$8 sm:$0x0] %vm548, %v843
  %s847 = scalar_lea.vmem [#allocation2], 64
  %v848 = vld [vmem:[%s847] ss:$8 sm:$0x3]
  %s849 = scalar_lea.vmem [#allocation3], 35
  %850 = vst.msk [vmem:[%s849] ss:$8 sm:$0x3] %vm548, %v848
  %851 = vst.msk [vmem:[%s849] ss:$8 sm:$0x0] %vm548, %v848
  %s852 = scalar_lea.vmem [#allocation2], 65
  %v853 = vld [vmem:[%s852] ss:$8 sm:$0x3]
  %s854 = scalar_lea.vmem [#allocation3], 69
  %855 = vst.msk [vmem:[%s854] ss:$8 sm:$0x3] %vm548, %v853
  %856 = vst.msk [vmem:[%s854] ss:$8 sm:$0x0] %vm548, %v853
  %s857 = scalar_lea.vmem [#allocation2], 66
  %v858 = vld [vmem:[%s857] ss:$8 sm:$0x3]
  %s859 = scalar_lea.vmem [#allocation3], 103
  %860 = vst.msk [vmem:[%s859] ss:$8 sm:$0x3] %vm548, %v858
  %861 = vst.msk [vmem:[%s859] ss:$8 sm:$0x0] %vm548, %v858
  %s862 = scalar_lea.vmem [#allocation2], 67
  %v863 = vld [vmem:[%s862] ss:$8 sm:$0x3]
  %s864 = scalar_lea.vmem [#allocation3], 145
  %865 = vst.msk [vmem:[%s864] ss:$8 sm:$0x3] %vm548, %v863
  %866 = vst.msk [vmem:[%s864] ss:$8 sm:$0x0] %vm548, %v863
  %s867 = scalar_lea.vmem [#allocation2], 68
  %v868 = vld [vmem:[%s867] ss:$8 sm:$0x3]
  %s869 = scalar_lea.vmem [#allocation3], 179
  %870 = vst.msk [vmem:[%s869] ss:$8 sm:$0x3] %vm548, %v868
  %871 = vst.msk [vmem:[%s869] ss:$8 sm:$0x0] %vm548, %v868
  %s872 = scalar_lea.vmem [#allocation2], 69
  %v873 = vld [vmem:[%s872] ss:$8 sm:$0x3]
  %s874 = scalar_lea.vmem [#allocation3], 213
  %875 = vst.msk [vmem:[%s874] ss:$8 sm:$0x3] %vm548, %v873
  %876 = vst.msk [vmem:[%s874] ss:$8 sm:$0x0] %vm548, %v873
  %s877 = scalar_lea.vmem [#allocation2], 111
  %v878 = vld [vmem:[%s877] ss:$8 sm:$0x3]
  %s879 = scalar_lea.vmem [#allocation3], 3
  %880 = vst.msk [vmem:[%s879] ss:$8 sm:$0x3] %vm548, %v878
  %881 = vst.msk [vmem:[%s879] ss:$8 sm:$0x0] %vm548, %v878
  %s882 = scalar_lea.vmem [#allocation2], 72
  %v883 = vld [vmem:[%s882] ss:$8 sm:$0x3]
  %s884 = scalar_lea.vmem [#allocation3], 37
  %885 = vst.msk [vmem:[%s884] ss:$8 sm:$0x3] %vm548, %v883
  %886 = vst.msk [vmem:[%s884] ss:$8 sm:$0x0] %vm548, %v883
  %s887 = scalar_lea.vmem [#allocation2], 73
  %v888 = vld [vmem:[%s887] ss:$8 sm:$0x3]
  %s889 = scalar_lea.vmem [#allocation3], 71
  %890 = vst.msk [vmem:[%s889] ss:$8 sm:$0x3] %vm548, %v888
  %891 = vst.msk [vmem:[%s889] ss:$8 sm:$0x0] %vm548, %v888
  %s892 = scalar_lea.vmem [#allocation2], 74
  %v893 = vld [vmem:[%s892] ss:$8 sm:$0x3]
  %s894 = scalar_lea.vmem [#allocation3], 113
  %895 = vst.msk [vmem:[%s894] ss:$8 sm:$0x3] %vm548, %v893
  %896 = vst.msk [vmem:[%s894] ss:$8 sm:$0x0] %vm548, %v893
  %s897 = scalar_lea.vmem [#allocation2], 75
  %v898 = vld [vmem:[%s897] ss:$8 sm:$0x3]
  %s899 = scalar_lea.vmem [#allocation3], 147
  %900 = vst.msk [vmem:[%s899] ss:$8 sm:$0x3] %vm548, %v898
  %901 = vst.msk [vmem:[%s899] ss:$8 sm:$0x0] %vm548, %v898
  %s902 = scalar_lea.vmem [#allocation2], 76
  %v903 = vld [vmem:[%s902] ss:$8 sm:$0x3]
  %s904 = scalar_lea.vmem [#allocation3], 181
  %905 = vst.msk [vmem:[%s904] ss:$8 sm:$0x3] %vm548, %v903
  %906 = vst.msk [vmem:[%s904] ss:$8 sm:$0x0] %vm548, %v903
  %s907 = scalar_lea.vmem [#allocation2], 77
  %v908 = vld [vmem:[%s907] ss:$8 sm:$0x3]
  %s909 = scalar_lea.vmem [#allocation3], 215
  %910 = vst.msk [vmem:[%s909] ss:$8 sm:$0x3] %vm548, %v908
  %911 = vst.msk [vmem:[%s909] ss:$8 sm:$0x0] %vm548, %v908
  %s912 = scalar_lea.vmem [#allocation2], 119
  %v913 = vld [vmem:[%s912] ss:$8 sm:$0x3]
  %s914 = scalar_lea.vmem [#allocation3], 5
  %915 = vst.msk [vmem:[%s914] ss:$8 sm:$0x3] %vm548, %v913
  %916 = vst.msk [vmem:[%s914] ss:$8 sm:$0x0] %vm548, %v913
  %s917 = scalar_lea.vmem [#allocation2], 80
  %v918 = vld [vmem:[%s917] ss:$8 sm:$0x3]
  %s919 = scalar_lea.vmem [#allocation3], 39
  %920 = vst.msk [vmem:[%s919] ss:$8 sm:$0x3] %vm548, %v918
  %921 = vst.msk [vmem:[%s919] ss:$8 sm:$0x0] %vm548, %v918
  %s922 = scalar_lea.vmem [#allocation2], 81
  %v923 = vld [vmem:[%s922] ss:$8 sm:$0x3]
  %s924 = scalar_lea.vmem [#allocation3], 81
  %925 = vst.msk [vmem:[%s924] ss:$8 sm:$0x3] %vm548, %v923
  %926 = vst.msk [vmem:[%s924] ss:$8 sm:$0x0] %vm548, %v923
  %s927 = scalar_lea.vmem [#allocation2], 82
  %v928 = vld [vmem:[%s927] ss:$8 sm:$0x3]
  %s929 = scalar_lea.vmem [#allocation3], 115
  %930 = vst.msk [vmem:[%s929] ss:$8 sm:$0x3] %vm548, %v928
  %931 = vst.msk [vmem:[%s929] ss:$8 sm:$0x0] %vm548, %v928
  %s932 = scalar_lea.vmem [#allocation2], 83
  %v933 = vld [vmem:[%s932] ss:$8 sm:$0x3]
  %s934 = scalar_lea.vmem [#allocation3], 149
  %935 = vst.msk [vmem:[%s934] ss:$8 sm:$0x3] %vm548, %v933
  %936 = vst.msk [vmem:[%s934] ss:$8 sm:$0x0] %vm548, %v933
  %s937 = scalar_lea.vmem [#allocation2], 84
  %v938 = vld [vmem:[%s937] ss:$8 sm:$0x3]
  %s939 = scalar_lea.vmem [#allocation3], 183
  %940 = vst.msk [vmem:[%s939] ss:$8 sm:$0x3] %vm548, %v938
  %941 = vst.msk [vmem:[%s939] ss:$8 sm:$0x0] %vm548, %v938
  %s942 = scalar_lea.vmem [#allocation2], 85
  %v943 = vld [vmem:[%s942] ss:$8 sm:$0x3]
  %s944 = scalar_lea.vmem [#allocation3], 225
  %945 = vst.msk [vmem:[%s944] ss:$8 sm:$0x3] %vm548, %v943
  %946 = vst.msk [vmem:[%s944] ss:$8 sm:$0x0] %vm548, %v943
  %v947 = vld [vmem:[%s862] ss:$8 sm:$0x3]
  %s948 = scalar_lea.vmem [#allocation3], 7
  %949 = vst.msk [vmem:[%s948] ss:$8 sm:$0x3] %vm548, %v947
  %950 = vst.msk [vmem:[%s948] ss:$8 sm:$0x0] %vm548, %v947
  %v951 = vld [vmem:[%s867] ss:$8 sm:$0x3]
  %s952 = scalar_lea.vmem [#allocation3], 49
  %953 = vst.msk [vmem:[%s952] ss:$8 sm:$0x3] %vm548, %v951
  %954 = vst.msk [vmem:[%s952] ss:$8 sm:$0x0] %vm548, %v951
  %v955 = vld [vmem:[%s872] ss:$8 sm:$0x3]
  %s956 = scalar_lea.vmem [#allocation3], 83
  %957 = vst.msk [vmem:[%s956] ss:$8 sm:$0x3] %vm548, %v955
  %958 = vst.msk [vmem:[%s956] ss:$8 sm:$0x0] %vm548, %v955
  %s959 = scalar_lea.vmem [#allocation2], 70
  %v960 = vld [vmem:[%s959] ss:$8 sm:$0x3]
  %s961 = scalar_lea.vmem [#allocation3], 117
  %962 = vst.msk [vmem:[%s961] ss:$8 sm:$0x3] %vm548, %v960
  %963 = vst.msk [vmem:[%s961] ss:$8 sm:$0x0] %vm548, %v960
  %s964 = scalar_lea.vmem [#allocation2], 71
  %v965 = vld [vmem:[%s964] ss:$8 sm:$0x3]
  %s966 = scalar_lea.vmem [#allocation3], 151
  %967 = vst.msk [vmem:[%s966] ss:$8 sm:$0x3] %vm548, %v965
  %968 = vst.msk [vmem:[%s966] ss:$8 sm:$0x0] %vm548, %v965
  %s969 = scalar_lea.vmem [#allocation2], 96
  %v970 = vld [vmem:[%s969] ss:$8 sm:$0x3]
  %s971 = scalar_lea.vmem [#allocation3], 193
  %972 = vst.msk [vmem:[%s971] ss:$8 sm:$0x3] %vm548, %v970
  %973 = vst.msk [vmem:[%s971] ss:$8 sm:$0x0] %vm548, %v970
  %s974 = scalar_lea.vmem [#allocation2], 97
  %v975 = vld [vmem:[%s974] ss:$8 sm:$0x3]
  %s976 = scalar_lea.vmem [#allocation3], 227
  %977 = vst.msk [vmem:[%s976] ss:$8 sm:$0x3] %vm548, %v975
  %978 = vst.msk [vmem:[%s976] ss:$8 sm:$0x0] %vm548, %v975
  %v979 = vld [vmem:[%s897] ss:$8 sm:$0x3]
  %s980 = scalar_lea.vmem [#allocation3], 17
  %981 = vst.msk [vmem:[%s980] ss:$8 sm:$0x3] %vm548, %v979
  %982 = vst.msk [vmem:[%s980] ss:$8 sm:$0x0] %vm548, %v979
  %v983 = vld [vmem:[%s902] ss:$8 sm:$0x3]
  %s984 = scalar_lea.vmem [#allocation3], 51
  %985 = vst.msk [vmem:[%s984] ss:$8 sm:$0x3] %vm548, %v983
  %986 = vst.msk [vmem:[%s984] ss:$8 sm:$0x0] %vm548, %v983
  %v987 = vld [vmem:[%s907] ss:$8 sm:$0x3]
  %s988 = scalar_lea.vmem [#allocation3], 85
  %989 = vst.msk [vmem:[%s988] ss:$8 sm:$0x3] %vm548, %v987
  %990 = vst.msk [vmem:[%s988] ss:$8 sm:$0x0] %vm548, %v987
  %s991 = scalar_lea.vmem [#allocation2], 78
  %v992 = vld [vmem:[%s991] ss:$8 sm:$0x3]
  %s993 = scalar_lea.vmem [#allocation3], 119
  %994 = vst.msk [vmem:[%s993] ss:$8 sm:$0x3] %vm548, %v992
  %995 = vst.msk [vmem:[%s993] ss:$8 sm:$0x0] %vm548, %v992
  %s996 = scalar_lea.vmem [#allocation2], 79
  %v997 = vld [vmem:[%s996] ss:$8 sm:$0x3]
  %s998 = scalar_lea.vmem [#allocation3], 161
  %999 = vst.msk [vmem:[%s998] ss:$8 sm:$0x3] %vm548, %v997
  %1000 = vst.msk [vmem:[%s998] ss:$8 sm:$0x0] %vm548, %v997
  %s1001 = scalar_lea.vmem [#allocation2], 104
  %v1002 = vld [vmem:[%s1001] ss:$8 sm:$0x3]
  %s1003 = scalar_lea.vmem [#allocation3], 195
  %1004 = vst.msk [vmem:[%s1003] ss:$8 sm:$0x3] %vm548, %v1002
  %1005 = vst.msk [vmem:[%s1003] ss:$8 sm:$0x0] %vm548, %v1002
  %s1006 = scalar_lea.vmem [#allocation2], 105
  %v1007 = vld [vmem:[%s1006] ss:$8 sm:$0x3]
  %s1008 = scalar_lea.vmem [#allocation3], 229
  %1009 = vst.msk [vmem:[%s1008] ss:$8 sm:$0x3] %vm548, %v1007
  %1010 = vst.msk [vmem:[%s1008] ss:$8 sm:$0x0] %vm548, %v1007
  %v1011 = vld [vmem:[%s932] ss:$8 sm:$0x3]
  %s1012 = scalar_lea.vmem [#allocation3], 19
  %1013 = vst.msk [vmem:[%s1012] ss:$8 sm:$0x3] %vm548, %v1011
  %1014 = vst.msk [vmem:[%s1012] ss:$8 sm:$0x0] %vm548, %v1011
  %v1015 = vld [vmem:[%s937] ss:$8 sm:$0x3]
  %s1016 = scalar_lea.vmem [#allocation3], 53
  %1017 = vst.msk [vmem:[%s1016] ss:$8 sm:$0x3] %vm548, %v1015
  %1018 = vst.msk [vmem:[%s1016] ss:$8 sm:$0x0] %vm548, %v1015
  %v1019 = vld [vmem:[%s942] ss:$8 sm:$0x3]
  %s1020 = scalar_lea.vmem [#allocation3], 87
  %1021 = vst.msk [vmem:[%s1020] ss:$8 sm:$0x3] %vm548, %v1019
  %1022 = vst.msk [vmem:[%s1020] ss:$8 sm:$0x0] %vm548, %v1019
  %s1023 = scalar_lea.vmem [#allocation2], 86
  %v1024 = vld [vmem:[%s1023] ss:$8 sm:$0x3]
  %s1025 = scalar_lea.vmem [#allocation3], 129
  %1026 = vst.msk [vmem:[%s1025] ss:$8 sm:$0x3] %vm548, %v1024
  %1027 = vst.msk [vmem:[%s1025] ss:$8 sm:$0x0] %vm548, %v1024
  %s1028 = scalar_lea.vmem [#allocation2], 87
  %v1029 = vld [vmem:[%s1028] ss:$8 sm:$0x3]
  %s1030 = scalar_lea.vmem [#allocation3], 163
  %1031 = vst.msk [vmem:[%s1030] ss:$8 sm:$0x3] %vm548, %v1029
  %1032 = vst.msk [vmem:[%s1030] ss:$8 sm:$0x0] %vm548, %v1029
  %s1033 = scalar_lea.vmem [#allocation2], 112
  %v1034 = vld [vmem:[%s1033] ss:$8 sm:$0x3]
  %s1035 = scalar_lea.vmem [#allocation3], 197
  %1036 = vst.msk [vmem:[%s1035] ss:$8 sm:$0x3] %vm548, %v1034
  %1037 = vst.msk [vmem:[%s1035] ss:$8 sm:$0x0] %vm548, %v1034
  %s1038 = scalar_lea.vmem [#allocation2], 113
  %v1039 = vld [vmem:[%s1038] ss:$8 sm:$0x3]
  %s1040 = scalar_lea.vmem [#allocation3], 231
  %1041 = vst.msk [vmem:[%s1040] ss:$8 sm:$0x3] %vm548, %v1039
  %1042 = vst.msk [vmem:[%s1040] ss:$8 sm:$0x0] %vm548, %v1039
  %v1043 = vld [vmem:[%s964] ss:$8 sm:$0x3]
  %s1044 = scalar_lea.vmem [#allocation3], 21
  %1045 = vst.msk [vmem:[%s1044] ss:$8 sm:$0x3] %vm548, %v1043
  %1046 = vst.msk [vmem:[%s1044] ss:$8 sm:$0x0] %vm548, %v1043
  %v1047 = vld [vmem:[%s969] ss:$8 sm:$0x3]
  %s1048 = scalar_lea.vmem [#allocation3], 55
  %1049 = vst.msk [vmem:[%s1048] ss:$8 sm:$0x3] %vm548, %v1047
  %1050 = vst.msk [vmem:[%s1048] ss:$8 sm:$0x0] %vm548, %v1047
  %v1051 = vld [vmem:[%s974] ss:$8 sm:$0x3]
  %s1052 = scalar_lea.vmem [#allocation3], 97
  %1053 = vst.msk [vmem:[%s1052] ss:$8 sm:$0x3] %vm548, %v1051
  %1054 = vst.msk [vmem:[%s1052] ss:$8 sm:$0x0] %vm548, %v1051
  %s1055 = scalar_lea.vmem [#allocation2], 98
  %v1056 = vld [vmem:[%s1055] ss:$8 sm:$0x3]
  %s1057 = scalar_lea.vmem [#allocation3], 131
  %1058 = vst.msk [vmem:[%s1057] ss:$8 sm:$0x3] %vm548, %v1056
  %1059 = vst.msk [vmem:[%s1057] ss:$8 sm:$0x0] %vm548, %v1056
  %s1060 = scalar_lea.vmem [#allocation2], 99
  %v1061 = vld [vmem:[%s1060] ss:$8 sm:$0x3]
  %s1062 = scalar_lea.vmem [#allocation3], 165
  %1063 = vst.msk [vmem:[%s1062] ss:$8 sm:$0x3] %vm548, %v1061
  %1064 = vst.msk [vmem:[%s1062] ss:$8 sm:$0x0] %vm548, %v1061
  %s1065 = scalar_lea.vmem [#allocation2], 100
  %v1066 = vld [vmem:[%s1065] ss:$8 sm:$0x3]
  %s1067 = scalar_lea.vmem [#allocation3], 199
  %1068 = vst.msk [vmem:[%s1067] ss:$8 sm:$0x3] %vm548, %v1066
  %1069 = vst.msk [vmem:[%s1067] ss:$8 sm:$0x0] %vm548, %v1066
  %s1070 = scalar_lea.vmem [#allocation2], 101
  %v1071 = vld [vmem:[%s1070] ss:$8 sm:$0x3]
  %s1072 = scalar_lea.vmem [#allocation3], 241
  %1073 = vst.msk [vmem:[%s1072] ss:$8 sm:$0x3] %vm548, %v1071
  %1074 = vst.msk [vmem:[%s1072] ss:$8 sm:$0x0] %vm548, %v1071
  %v1075 = vld [vmem:[%s996] ss:$8 sm:$0x3]
  %s1076 = scalar_lea.vmem [#allocation3], 23
  %1077 = vst.msk [vmem:[%s1076] ss:$8 sm:$0x3] %vm548, %v1075
  %1078 = vst.msk [vmem:[%s1076] ss:$8 sm:$0x0] %vm548, %v1075
  %v1079 = vld [vmem:[%s1001] ss:$8 sm:$0x3]
  %s1080 = scalar_lea.vmem [#allocation3], 65
  %1081 = vst.msk [vmem:[%s1080] ss:$8 sm:$0x3] %vm548, %v1079
  %1082 = vst.msk [vmem:[%s1080] ss:$8 sm:$0x0] %vm548, %v1079
  %v1083 = vld [vmem:[%s1006] ss:$8 sm:$0x3]
  %s1084 = scalar_lea.vmem [#allocation3], 99
  %1085 = vst.msk [vmem:[%s1084] ss:$8 sm:$0x3] %vm548, %v1083
  %1086 = vst.msk [vmem:[%s1084] ss:$8 sm:$0x0] %vm548, %v1083
  %s1087 = scalar_lea.vmem [#allocation2], 106
  %v1088 = vld [vmem:[%s1087] ss:$8 sm:$0x3]
  %s1089 = scalar_lea.vmem [#allocation3], 133
  %1090 = vst.msk [vmem:[%s1089] ss:$8 sm:$0x3] %vm548, %v1088
  %1091 = vst.msk [vmem:[%s1089] ss:$8 sm:$0x0] %vm548, %v1088
  %s1092 = scalar_lea.vmem [#allocation2], 107
  %v1093 = vld [vmem:[%s1092] ss:$8 sm:$0x3]
  %s1094 = scalar_lea.vmem [#allocation3], 167
  %1095 = vst.msk [vmem:[%s1094] ss:$8 sm:$0x3] %vm548, %v1093
  %1096 = vst.msk [vmem:[%s1094] ss:$8 sm:$0x0] %vm548, %v1093
  %s1097 = scalar_lea.vmem [#allocation2], 108
  %v1098 = vld [vmem:[%s1097] ss:$8 sm:$0x3]
  %s1099 = scalar_lea.vmem [#allocation3], 209
  %1100 = vst.msk [vmem:[%s1099] ss:$8 sm:$0x3] %vm548, %v1098
  %1101 = vst.msk [vmem:[%s1099] ss:$8 sm:$0x0] %vm548, %v1098
  %s1102 = scalar_lea.vmem [#allocation2], 109
  %v1103 = vld [vmem:[%s1102] ss:$8 sm:$0x3]
  %s1104 = scalar_lea.vmem [#allocation3], 243
  %1105 = vst.msk [vmem:[%s1104] ss:$8 sm:$0x3] %vm548, %v1103
  %1106 = vst.msk [vmem:[%s1104] ss:$8 sm:$0x0] %vm548, %v1103
  %v1107 = vld [vmem:[%s1028] ss:$8 sm:$0x3]
  %s1108 = scalar_lea.vmem [#allocation3], 33
  %1109 = vst.msk [vmem:[%s1108] ss:$8 sm:$0x3] %vm548, %v1107
  %1110 = vst.msk [vmem:[%s1108] ss:$8 sm:$0x0] %vm548, %v1107
  %v1111 = vld [vmem:[%s1033] ss:$8 sm:$0x3]
  %s1112 = scalar_lea.vmem [#allocation3], 67
  %1113 = vst.msk [vmem:[%s1112] ss:$8 sm:$0x3] %vm548, %v1111
  %1114 = vst.msk [vmem:[%s1112] ss:$8 sm:$0x0] %vm548, %v1111
  %v1115 = vld [vmem:[%s1038] ss:$8 sm:$0x3]
  %s1116 = scalar_lea.vmem [#allocation3], 101
  %1117 = vst.msk [vmem:[%s1116] ss:$8 sm:$0x3] %vm548, %v1115
  %1118 = vst.msk [vmem:[%s1116] ss:$8 sm:$0x0] %vm548, %v1115
  %s1119 = scalar_lea.vmem [#allocation2], 114
  %v1120 = vld [vmem:[%s1119] ss:$8 sm:$0x3]
  %s1121 = scalar_lea.vmem [#allocation3], 135
  %1122 = vst.msk [vmem:[%s1121] ss:$8 sm:$0x3] %vm548, %v1120
  %1123 = vst.msk [vmem:[%s1121] ss:$8 sm:$0x0] %vm548, %v1120
  %s1124 = scalar_lea.vmem [#allocation2], 115
  %v1125 = vld [vmem:[%s1124] ss:$8 sm:$0x3]
  %s1126 = scalar_lea.vmem [#allocation3], 177
  %1127 = vst.msk [vmem:[%s1126] ss:$8 sm:$0x3] %vm548, %v1125
  %1128 = vst.msk [vmem:[%s1126] ss:$8 sm:$0x0] %vm548, %v1125
  %s1129 = scalar_lea.vmem [#allocation2], 116
  %v1130 = vld [vmem:[%s1129] ss:$8 sm:$0x3]
  %s1131 = scalar_lea.vmem [#allocation3], 211
  %1132 = vst.msk [vmem:[%s1131] ss:$8 sm:$0x3] %vm548, %v1130
  %1133 = vst.msk [vmem:[%s1131] ss:$8 sm:$0x0] %vm548, %v1130
  %s1134 = scalar_lea.vmem [#allocation2], 117
  %v1135 = vld [vmem:[%s1134] ss:$8 sm:$0x3]
  %s1136 = scalar_lea.vmem [#allocation3], 245
  %1137 = vst.msk [vmem:[%s1136] ss:$8 sm:$0x3] %vm548, %v1135
  %1138 = vst.msk [vmem:[%s1136] ss:$8 sm:$0x0] %vm548, %v1135
  %v1139 = vld [vmem:[#allocation3] sm:$0xff]
  %v1140 = vld [vmem:[#allocation3 + $0x8] sm:$0xff]
  %v1141 = vld [vmem:[#allocation3 + $0x10] sm:$0xff]
  %v1142 = vld [vmem:[#allocation3 + $0x18] sm:$0xff]
  %v1143 = vld [vmem:[#allocation3 + $0x20] sm:$0x3]
  %v1144 = vld [vmem:[#allocation3 + $0x28] sm:$0x3]
  %v1145 = vld [vmem:[%s5] sm:$0xff]
  %v1146 = vld [vmem:[%s5 + $0x8] sm:$0xff]
  %v1147 = vld [vmem:[%s5 + $0x10] sm:$0xff]
  %v1148 = vld [vmem:[%s5 + $0x18] sm:$0xff]
  %v1149 = vld [vmem:[%s5 + $0x20] sm:$0xff]
  %v1150 = vld [vmem:[%s5 + $0x28] sm:$0xff]
  %v1151 = vld [vmem:[%s5 + $0x30] sm:$0xff]
  %v1152 = vld [vmem:[%s5 + $0x38] sm:$0xff]
  %v1153 = vld [vmem:[%s5 + $0x40] sm:$0xff]
  %v1154 = vld [vmem:[%s5 + $0x48] sm:$0xff]
  %v1155 = vld [vmem:[%s5 + $0x50] sm:$0xff]
  %v1156 = vld [vmem:[%s5 + $0x58] sm:$0xff]
  %v1157 = vld [vmem:[%s5 + $0x60] sm:$0xff]
  %v1158 = vld [vmem:[%s5 + $0x68] sm:$0xff]
  %v1159 = vld [vmem:[%s5 + $0x70] sm:$0xff]
  %v1160 = vld [vmem:[%s5 + $0x78] sm:$0xff]
  %v1161 = vld [vmem:[%s5 + $0x80] sm:$0xff]
  %v1162 = vld [vmem:[%s5 + $0x88] sm:$0xff]
  %v1163 = vld [vmem:[%s5 + $0x90] sm:$0xff]
  %v1164 = vld [vmem:[%s5 + $0x98] sm:$0xff]
  %v1165 = vld [vmem:[%s5 + $0xa0] sm:$0xff]
  %v1166 = vld [vmem:[%s5 + $0xa8] sm:$0xff]
  %v1167 = vld [vmem:[%s5 + $0xb0] sm:$0xff]
  %v1168 = vld [vmem:[%s5 + $0xb8] sm:$0xff]
  %v1169 = vld [vmem:[%s5 + $0xc0] sm:$0xff]
  %v1170 = vld [vmem:[%s5 + $0xc8] sm:$0xff]
  %v1171 = vld [vmem:[%s5 + $0xd0] sm:$0xff]
  %v1172 = vld [vmem:[%s5 + $0xd8] sm:$0xff]
  %v1173 = vld [vmem:[#allocation3 + $0x20] sm:$0xfc]
  %v1174 = vld [vmem:[#allocation3 + $0x28] sm:$0xfc]
  %v1175 = vld [vmem:[#allocation3 + $0x30] sm:$0xff]
  %v1176 = vld [vmem:[#allocation3 + $0x38] sm:$0xff]
  %v1177 = vld [vmem:[#allocation3 + $0x40] sm:$0xf]
  %v1178 = vld [vmem:[#allocation3 + $0x48] sm:$0xf]
  %v1179 = vld [vmem:[%s5 + $0xe0] sm:$0xff]
  %v1180 = vld [vmem:[%s5 + $0xe8] sm:$0xff]
  %v1181 = vld [vmem:[%s5 + $0xf0] sm:$0xff]
  %v1182 = vld [vmem:[%s5 + $0xf8] sm:$0xff]
  %v1183 = vld [vmem:[%s5 + $0x100] sm:$0xff]
  %v1184 = vld [vmem:[%s5 + $0x108] sm:$0xff]
  %v1185 = vld [vmem:[%s5 + $0x110] sm:$0xff]
  %v1186 = vld [vmem:[%s5 + $0x118] sm:$0xff]
  %v1187 = vld [vmem:[%s5 + $0x120] sm:$0xff]
  %v1188 = vld [vmem:[%s5 + $0x128] sm:$0xff]
  %v1189 = vld [vmem:[%s5 + $0x130] sm:$0xff]
  %v1190 = vld [vmem:[%s5 + $0x138] sm:$0xff]
  %v1191 = vld [vmem:[%s5 + $0x140] sm:$0xff]
  %v1192 = vld [vmem:[%s5 + $0x148] sm:$0xff]
  %v1193 = vld [vmem:[%s5 + $0x150] sm:$0xff]
  %v1194 = vld [vmem:[%s5 + $0x158] sm:$0xff]
  %v1195 = vld [vmem:[%s5 + $0x160] sm:$0xff]
  %v1196 = vld [vmem:[%s5 + $0x168] sm:$0xff]
  %v1197 = vld [vmem:[%s5 + $0x170] sm:$0xff]
  %v1198 = vld [vmem:[%s5 + $0x178] sm:$0xff]
  %v1199 = vld [vmem:[%s5 + $0x180] sm:$0xff]
  %v1200 = vld [vmem:[%s5 + $0x188] sm:$0xff]
  %v1201 = vld [vmem:[%s5 + $0x190] sm:$0xff]
  %v1202 = vld [vmem:[%s5 + $0x198] sm:$0xff]
  %v1203 = vld [vmem:[%s5 + $0x1a0] sm:$0xff]
  %v1204 = vld [vmem:[%s5 + $0x1a8] sm:$0xff]
  %v1205 = vld [vmem:[%s5 + $0x1b0] sm:$0xff]
  %v1206 = vld [vmem:[%s5 + $0x1b8] sm:$0xff]
  %vm1213 = vcmask 1045504
  %v1214 = vrot.slane %v1173, 2
  %v1215 = vrot.slane %v1175, 2
  %v1216 = vsel %vm1213, %v1214, %v1215
  %v1217 = vrot.slane %v1174, 2
  %v1218 = vrot.slane %v1176, 2
  %v1219 = vsel %vm1213, %v1217, %v1218
  %v1220 = vrot.slane %v1177, 2
  %v1221 = vsel %vm1213, %v1215, %v1220
  %v1222 = vrot.slane %v1178, 2
  %v1223 = vsel %vm1213, %v1218, %v1222
  %vm1227 = vcmask 785408
  %v1228 = vsel %vm1227, %v1219, 0
  %v1230 = vsel %vm1227, %v1223, 0
  %v1232 = vsel %vm1227, %v1222, 0
  %1234 = vmatpush.msra.mxu0 %v1194
  %1235 = vmatpush.msra.mxu0 %v1193
  %1236 = vmatpush.msra.mxu0 %v1192
  %1237 = vmatpush.msra.mxu0 %v1191
  %1238 = vmatpush.msra.mxu0 %v1190
  %1239 = vmatpush.msra.mxu0 %v1189
  %1240 = vmatpush.msra.mxu0 %v1188
  %1241 = vmatpush.msra.mxu0 %v1187
  %1242 = vmatpush.msra.mxu0 %v1186
  %1243 = vmatpush.msra.mxu0 %v1185
  %1244 = vmatpush.msra.mxu0 %v1184
  %1245 = vmatpush.msra.mxu0 %v1183
  %1246 = vmatpush.msra.mxu0 %v1182
  %1247 = vmatpush.msra.mxu0 %v1181
  %1248 = vmatpush.msra.mxu0 %v1180
  %1249 = vmatpush.msra.mxu0 %v1179
  %1250 = vmatmul.f32.gmra.mxu0 %v1216
  %v1251 = vpop.f32.mrf.mxu0
  %v1252 = vadd.f32 0.0, %v1251
  %1253 = vmatmul.f32.gmra.mxu0 %v1221
  %v1254 = vpop.f32.mrf.mxu0
  %v1255 = vadd.f32 0.0, %v1254
  %1256 = vmatmul.f32.gmra.mxu0 %v1220
  %v1257 = vpop.f32.mrf.mxu0
  %v1258 = vadd.f32 0.0, %v1257
  %1259 = vdwg.mxu0
  %1260 = vmatpush.msra.mxu0 0.0
  %1261 = vmatpush.msra.mxu0 0.0
  %1262 = vmatpush.msra.mxu0 0.0
  %1263 = vmatpush.msra.mxu0 0.0
  %1264 = vmatpush.msra.mxu0 %v1206
  %1265 = vmatpush.msra.mxu0 %v1205
  %1266 = vmatpush.msra.mxu0 %v1204
  %1267 = vmatpush.msra.mxu0 %v1203
  %1268 = vmatpush.msra.mxu0 %v1202
  %1269 = vmatpush.msra.mxu0 %v1201
  %1270 = vmatpush.msra.mxu0 %v1200
  %1271 = vmatpush.msra.mxu0 %v1199
  %1272 = vmatpush.msra.mxu0 %v1198
  %1273 = vmatpush.msra.mxu0 %v1197
  %1274 = vmatpush.msra.mxu0 %v1196
  %1275 = vmatpush.msra.mxu0 %v1195
  %1276 = vmatmul.f32.gmra.mxu0 %v1228
  %v1277 = vpop.f32.mrf.mxu0
  %v1278 = vadd.f32 %v1252, %v1277
  %1279 = vmatmul.f32.gmra.mxu0 %v1230
  %v1280 = vpop.f32.mrf.mxu0
  %v1281 = vadd.f32 %v1255, %v1280
  %1282 = vmatmul.f32.gmra.mxu0 %v1232
  %v1283 = vpop.f32.mrf.mxu0
  %v1284 = vadd.f32 %v1258, %v1283
  %1285 = vdwg.mxu0
  %v1287 = vsel %vm1227, %v1140, 0
  %v1290 = vsel %vm1227, %v1142, 0
  %v1293 = vsel %vm1227, %v1144, 0
  %1295 = vmatpush.msra.mxu0 %v1160
  %1296 = vmatpush.msra.mxu0 %v1159
  %1297 = vmatpush.msra.mxu0 %v1158
  %1298 = vmatpush.msra.mxu0 %v1157
  %1299 = vmatpush.msra.mxu0 %v1156
  %1300 = vmatpush.msra.mxu0 %v1155
  %1301 = vmatpush.msra.mxu0 %v1154
  %1302 = vmatpush.msra.mxu0 %v1153
  %1303 = vmatpush.msra.mxu0 %v1152
  %1304 = vmatpush.msra.mxu0 %v1151
  %1305 = vmatpush.msra.mxu0 %v1150
  %1306 = vmatpush.msra.mxu0 %v1149
  %1307 = vmatpush.msra.mxu0 %v1148
  %1308 = vmatpush.msra.mxu0 %v1147
  %1309 = vmatpush.msra.mxu0 %v1146
  %1310 = vmatpush.msra.mxu0 %v1145
  %1311 = vmatmul.f32.gmra.mxu0 %v1139
  %v1312 = vpop.f32.mrf.mxu0
  %v1313 = vadd.f32 %v1278, %v1312
  %1314 = vmatmul.f32.gmra.mxu0 %v1141
  %v1315 = vpop.f32.mrf.mxu0
  %v1316 = vadd.f32 %v1281, %v1315
  %1317 = vmatmul.f32.gmra.mxu0 %v1143
  %v1318 = vpop.f32.mrf.mxu0
  %v1319 = vadd.f32 %v1284, %v1318
  %1320 = vdwg.mxu0
  %1321 = vmatpush.msra.mxu0 0.0
  %1322 = vmatpush.msra.mxu0 0.0
  %1323 = vmatpush.msra.mxu0 0.0
  %1324 = vmatpush.msra.mxu0 0.0
  %1325 = vmatpush.msra.mxu0 %v1172
  %1326 = vmatpush.msra.mxu0 %v1171
  %1327 = vmatpush.msra.mxu0 %v1170
  %1328 = vmatpush.msra.mxu0 %v1169
  %1329 = vmatpush.msra.mxu0 %v1168
  %1330 = vmatpush.msra.mxu0 %v1167
  %1331 = vmatpush.msra.mxu0 %v1166
  %1332 = vmatpush.msra.mxu0 %v1165
  %1333 = vmatpush.msra.mxu0 %v1164
  %1334 = vmatpush.msra.mxu0 %v1163
  %1335 = vmatpush.msra.mxu0 %v1162
  %1336 = vmatpush.msra.mxu0 %v1161
  %1337 = vmatmul.f32.gmra.mxu0 %v1287
  %v1338 = vpop.f32.mrf.mxu0
  %v1339 = vadd.f32 %v1313, %v1338
  %1340 = vmatmul.f32.gmra.mxu0 %v1290
  %v1341 = vpop.f32.mrf.mxu0
  %v1342 = vadd.f32 %v1316, %v1341
  %1343 = vmatmul.f32.gmra.mxu0 %v1293
  %v1344 = vpop.f32.mrf.mxu0
  %v1345 = vadd.f32 %v1319, %v1344
  %1346 = vdwg.mxu0
  %v1347 = vld [vmem:[#allocation3 + $0x40] sm:$0xf0]
  %v1348 = vld [vmem:[#allocation3 + $0x48] sm:$0xf0]
  %v1349 = vld [vmem:[#allocation3 + $0x50] sm:$0xff]
  %v1350 = vld [vmem:[#allocation3 + $0x58] sm:$0xff]
  %v1351 = vld [vmem:[#allocation3 + $0x60] sm:$0x3f]
  %v1352 = vld [vmem:[#allocation3 + $0x68] sm:$0x3f]
  %v1353 = vld [vmem:[%s5 + $0x1c0] sm:$0xff]
  %v1354 = vld [vmem:[%s5 + $0x1c8] sm:$0xff]
  %v1355 = vld [vmem:[%s5 + $0x1d0] sm:$0xff]
  %v1356 = vld [vmem:[%s5 + $0x1d8] sm:$0xff]
  %v1357 = vld [vmem:[%s5 + $0x1e0] sm:$0xff]
  %v1358 = vld [vmem:[%s5 + $0x1e8] sm:$0xff]
  %v1359 = vld [vmem:[%s5 + $0x1f0] sm:$0xff]
  %v1360 = vld [vmem:[%s5 + $0x1f8] sm:$0xff]
  %v1361 = vld [vmem:[%s5 + $0x200] sm:$0xff]
  %v1362 = vld [vmem:[%s5 + $0x208] sm:$0xff]
  %v1363 = vld [vmem:[%s5 + $0x210] sm:$0xff]
  %v1364 = vld [vmem:[%s5 + $0x218] sm:$0xff]
  %v1365 = vld [vmem:[%s5 + $0x220] sm:$0xff]
  %v1366 = vld [vmem:[%s5 + $0x228] sm:$0xff]
  %v1367 = vld [vmem:[%s5 + $0x230] sm:$0xff]
  %v1368 = vld [vmem:[%s5 + $0x238] sm:$0xff]
  %v1369 = vld [vmem:[%s5 + $0x240] sm:$0xff]
  %v1370 = vld [vmem:[%s5 + $0x248] sm:$0xff]
  %v1371 = vld [vmem:[%s5 + $0x250] sm:$0xff]
  %v1372 = vld [vmem:[%s5 + $0x258] sm:$0xff]
  %v1373 = vld [vmem:[%s5 + $0x260] sm:$0xff]
  %v1374 = vld [vmem:[%s5 + $0x268] sm:$0xff]
  %v1375 = vld [vmem:[%s5 + $0x270] sm:$0xff]
  %v1376 = vld [vmem:[%s5 + $0x278] sm:$0xff]
  %v1377 = vld [vmem:[%s5 + $0x280] sm:$0xff]
  %v1378 = vld [vmem:[%s5 + $0x288] sm:$0xff]
  %v1379 = vld [vmem:[%s5 + $0x290] sm:$0xff]
  %v1380 = vld [vmem:[%s5 + $0x298] sm:$0xff]
  %vm1387 = vcmask 1043456
  %v1388 = vrot.slane %v1347, 4
  %v1389 = vrot.slane %v1349, 4
  %v1390 = vsel %vm1387, %v1388, %v1389
  %v1391 = vrot.slane %v1348, 4
  %v1392 = vrot.slane %v1350, 4
  %v1393 = vsel %vm1387, %v1391, %v1392
  %v1394 = vrot.slane %v1351, 4
  %v1395 = vsel %vm1387, %v1389, %v1394
  %v1396 = vrot.slane %v1352, 4
  %v1397 = vsel %vm1387, %v1392, %v1396
  %v1401 = vsel %vm1227, %v1393, 0
  %v1403 = vsel %vm1227, %v1397, 0
  %v1405 = vsel %vm1227, %v1396, 0
  %1407 = vmatpush.msra.mxu0 %v1368
  %1408 = vmatpush.msra.mxu0 %v1367
  %1409 = vmatpush.msra.mxu0 %v1366
  %1410 = vmatpush.msra.mxu0 %v1365
  %1411 = vmatpush.msra.mxu0 %v1364
  %1412 = vmatpush.msra.mxu0 %v1363
  %1413 = vmatpush.msra.mxu0 %v1362
  %1414 = vmatpush.msra.mxu0 %v1361
  %1415 = vmatpush.msra.mxu0 %v1360
  %1416 = vmatpush.msra.mxu0 %v1359
  %1417 = vmatpush.msra.mxu0 %v1358
  %1418 = vmatpush.msra.mxu0 %v1357
  %1419 = vmatpush.msra.mxu0 %v1356
  %1420 = vmatpush.msra.mxu0 %v1355
  %1421 = vmatpush.msra.mxu0 %v1354
  %1422 = vmatpush.msra.mxu0 %v1353
  %1423 = vmatmul.f32.gmra.mxu0 %v1390
  %v1424 = vpop.f32.mrf.mxu0
  %v1425 = vadd.f32 0.0, %v1424
  %1426 = vmatmul.f32.gmra.mxu0 %v1395
  %v1427 = vpop.f32.mrf.mxu0
  %v1428 = vadd.f32 0.0, %v1427
  %1429 = vmatmul.f32.gmra.mxu0 %v1394
  %v1430 = vpop.f32.mrf.mxu0
  %v1431 = vadd.f32 0.0, %v1430
  %1432 = vdwg.mxu0
  %1433 = vmatpush.msra.mxu0 0.0
  %1434 = vmatpush.msra.mxu0 0.0
  %1435 = vmatpush.msra.mxu0 0.0
  %1436 = vmatpush.msra.mxu0 0.0
  %1437 = vmatpush.msra.mxu0 %v1380
  %1438 = vmatpush.msra.mxu0 %v1379
  %1439 = vmatpush.msra.mxu0 %v1378
  %1440 = vmatpush.msra.mxu0 %v1377
  %1441 = vmatpush.msra.mxu0 %v1376
  %1442 = vmatpush.msra.mxu0 %v1375
  %1443 = vmatpush.msra.mxu0 %v1374
  %1444 = vmatpush.msra.mxu0 %v1373
  %1445 = vmatpush.msra.mxu0 %v1372
  %1446 = vmatpush.msra.mxu0 %v1371
  %1447 = vmatpush.msra.mxu0 %v1370
  %1448 = vmatpush.msra.mxu0 %v1369
  %1449 = vmatmul.f32.gmra.mxu0 %v1401
  %v1450 = vpop.f32.mrf.mxu0
  %v1451 = vadd.f32 %v1425, %v1450
  %1452 = vmatmul.f32.gmra.mxu0 %v1403
  %v1453 = vpop.f32.mrf.mxu0
  %v1454 = vadd.f32 %v1428, %v1453
  %1455 = vmatmul.f32.gmra.mxu0 %v1405
  %v1456 = vpop.f32.mrf.mxu0
  %v1457 = vadd.f32 %v1431, %v1456
  %1458 = vdwg.mxu0
  %v1459 = vadd.f32 %v1339, %v1451
  %v1460 = vadd.f32 %v1342, %v1454
  %v1461 = vadd.f32 %v1345, %v1457
  %v1462 = vld [vmem:[#allocation3 + $0x60] sm:$0xc0]
  %v1463 = vld [vmem:[#allocation3 + $0x68] sm:$0xc0]
  %v1464 = vld [vmem:[#allocation3 + $0x70] sm:$0xff]
  %v1465 = vld [vmem:[#allocation3 + $0x78] sm:$0xff]
  %v1466 = vld [vmem:[#allocation3 + $0x80] sm:$0xff]
  %v1467 = vld [vmem:[#allocation3 + $0x88] sm:$0xff]
  %v1468 = vld [vmem:[%s5 + $0x2a0] sm:$0xff]
  %v1469 = vld [vmem:[%s5 + $0x2a8] sm:$0xff]
  %v1470 = vld [vmem:[%s5 + $0x2b0] sm:$0xff]
  %v1471 = vld [vmem:[%s5 + $0x2b8] sm:$0xff]
  %v1472 = vld [vmem:[%s5 + $0x2c0] sm:$0xff]
  %v1473 = vld [vmem:[%s5 + $0x2c8] sm:$0xff]
  %v1474 = vld [vmem:[%s5 + $0x2d0] sm:$0xff]
  %v1475 = vld [vmem:[%s5 + $0x2d8] sm:$0xff]
  %v1476 = vld [vmem:[%s5 + $0x2e0] sm:$0xff]
  %v1477 = vld [vmem:[%s5 + $0x2e8] sm:$0xff]
  %v1478 = vld [vmem:[%s5 + $0x2f0] sm:$0xff]
  %v1479 = vld [vmem:[%s5 + $0x2f8] sm:$0xff]
  %v1480 = vld [vmem:[%s5 + $0x300] sm:$0xff]
  %v1481 = vld [vmem:[%s5 + $0x308] sm:$0xff]
  %v1482 = vld [vmem:[%s5 + $0x310] sm:$0xff]
  %v1483 = vld [vmem:[%s5 + $0x318] sm:$0xff]
  %v1484 = vld [vmem:[%s5 + $0x320] sm:$0xff]
  %v1485 = vld [vmem:[%s5 + $0x328] sm:$0xff]
  %v1486 = vld [vmem:[%s5 + $0x330] sm:$0xff]
  %v1487 = vld [vmem:[%s5 + $0x338] sm:$0xff]
  %v1488 = vld [vmem:[%s5 + $0x340] sm:$0xff]
  %v1489 = vld [vmem:[%s5 + $0x348] sm:$0xff]
  %v1490 = vld [vmem:[%s5 + $0x350] sm:$0xff]
  %v1491 = vld [vmem:[%s5 + $0x358] sm:$0xff]
  %v1492 = vld [vmem:[%s5 + $0x360] sm:$0xff]
  %v1493 = vld [vmem:[%s5 + $0x368] sm:$0xff]
  %v1494 = vld [vmem:[%s5 + $0x370] sm:$0xff]
  %v1495 = vld [vmem:[%s5 + $0x378] sm:$0xff]
  %vm1502 = vcmask 1041408
  %v1503 = vrot.slane %v1462, 6
  %v1504 = vrot.slane %v1464, 6
  %v1505 = vsel %vm1502, %v1503, %v1504
  %v1506 = vrot.slane %v1463, 6
  %v1507 = vrot.slane %v1465, 6
  %v1508 = vsel %vm1502, %v1506, %v1507
  %v1509 = vrot.slane %v1466, 6
  %v1510 = vsel %vm1502, %v1504, %v1509
  %v1511 = vrot.slane %v1467, 6
  %v1512 = vsel %vm1502, %v1507, %v1511
  %v1516 = vsel %vm1227, %v1508, 0
  %v1518 = vsel %vm1227, %v1512, 0
  %v1520 = vsel %vm1227, %v1511, 0
  %1522 = vmatpush.msra.mxu0 %v1483
  %1523 = vmatpush.msra.mxu0 %v1482
  %1524 = vmatpush.msra.mxu0 %v1481
  %1525 = vmatpush.msra.mxu0 %v1480
  %1526 = vmatpush.msra.mxu0 %v1479
  %1527 = vmatpush.msra.mxu0 %v1478
  %1528 = vmatpush.msra.mxu0 %v1477
  %1529 = vmatpush.msra.mxu0 %v1476
  %1530 = vmatpush.msra.mxu0 %v1475
  %1531 = vmatpush.msra.mxu0 %v1474
  %1532 = vmatpush.msra.mxu0 %v1473
  %1533 = vmatpush.msra.mxu0 %v1472
  %1534 = vmatpush.msra.mxu0 %v1471
  %1535 = vmatpush.msra.mxu0 %v1470
  %1536 = vmatpush.msra.mxu0 %v1469
  %1537 = vmatpush.msra.mxu0 %v1468
  %1538 = vmatmul.f32.gmra.mxu0 %v1505
  %v1539 = vpop.f32.mrf.mxu0
  %v1540 = vadd.f32 0.0, %v1539
  %1541 = vmatmul.f32.gmra.mxu0 %v1510
  %v1542 = vpop.f32.mrf.mxu0
  %v1543 = vadd.f32 0.0, %v1542
  %1544 = vmatmul.f32.gmra.mxu0 %v1509
  %v1545 = vpop.f32.mrf.mxu0
  %v1546 = vadd.f32 0.0, %v1545
  %1547 = vdwg.mxu0
  %1548 = vmatpush.msra.mxu0 0.0
  %1549 = vmatpush.msra.mxu0 0.0
  %1550 = vmatpush.msra.mxu0 0.0
  %1551 = vmatpush.msra.mxu0 0.0
  %1552 = vmatpush.msra.mxu0 %v1495
  %1553 = vmatpush.msra.mxu0 %v1494
  %1554 = vmatpush.msra.mxu0 %v1493
  %1555 = vmatpush.msra.mxu0 %v1492
  %1556 = vmatpush.msra.mxu0 %v1491
  %1557 = vmatpush.msra.mxu0 %v1490
  %1558 = vmatpush.msra.mxu0 %v1489
  %1559 = vmatpush.msra.mxu0 %v1488
  %1560 = vmatpush.msra.mxu0 %v1487
  %1561 = vmatpush.msra.mxu0 %v1486
  %1562 = vmatpush.msra.mxu0 %v1485
  %1563 = vmatpush.msra.mxu0 %v1484
  %1564 = vmatmul.f32.gmra.mxu0 %v1516
  %v1565 = vpop.f32.mrf.mxu0
  %v1566 = vadd.f32 %v1540, %v1565
  %1567 = vmatmul.f32.gmra.mxu0 %v1518
  %v1568 = vpop.f32.mrf.mxu0
  %v1569 = vadd.f32 %v1543, %v1568
  %1570 = vmatmul.f32.gmra.mxu0 %v1520
  %v1571 = vpop.f32.mrf.mxu0
  %v1572 = vadd.f32 %v1546, %v1571
  %1573 = vdwg.mxu0
  %v1574 = vadd.f32 %v1459, %v1566
  %v1575 = vadd.f32 %v1460, %v1569
  %v1576 = vadd.f32 %v1461, %v1572
  %v1577 = vld [vmem:[#allocation3 + $0x90] sm:$0xff]
  %v1578 = vld [vmem:[#allocation3 + $0x98] sm:$0xff]
  %v1579 = vld [vmem:[#allocation3 + $0xa0] sm:$0xff]
  %v1580 = vld [vmem:[#allocation3 + $0xa8] sm:$0xff]
  %v1581 = vld [vmem:[#allocation3 + $0xb0] sm:$0x3]
  %v1582 = vld [vmem:[#allocation3 + $0xb8] sm:$0x3]
  %v1583 = vld [vmem:[%s5 + $0x380] sm:$0xff]
  %v1584 = vld [vmem:[%s5 + $0x388] sm:$0xff]
  %v1585 = vld [vmem:[%s5 + $0x390] sm:$0xff]
  %v1586 = vld [vmem:[%s5 + $0x398] sm:$0xff]
  %v1587 = vld [vmem:[%s5 + $0x3a0] sm:$0xff]
  %v1588 = vld [vmem:[%s5 + $0x3a8] sm:$0xff]
  %v1589 = vld [vmem:[%s5 + $0x3b0] sm:$0xff]
  %v1590 = vld [vmem:[%s5 + $0x3b8] sm:$0xff]
  %v1591 = vld [vmem:[%s5 + $0x3c0] sm:$0xff]
  %v1592 = vld [vmem:[%s5 + $0x3c8] sm:$0xff]
  %v1593 = vld [vmem:[%s5 + $0x3d0] sm:$0xff]
  %v1594 = vld [vmem:[%s5 + $0x3d8] sm:$0xff]
  %v1595 = vld [vmem:[%s5 + $0x3e0] sm:$0xff]
  %v1596 = vld [vmem:[%s5 + $0x3e8] sm:$0xff]
  %v1597 = vld [vmem:[%s5 + $0x3f0] sm:$0xff]
  %v1598 = vld [vmem:[%s5 + $0x3f8] sm:$0xff]
  %v1599 = vld [vmem:[%s5 + $0x400] sm:$0xff]
  %v1600 = vld [vmem:[%s5 + $0x408] sm:$0xff]
  %v1601 = vld [vmem:[%s5 + $0x410] sm:$0xff]
  %v1602 = vld [vmem:[%s5 + $0x418] sm:$0xff]
  %v1603 = vld [vmem:[%s5 + $0x420] sm:$0xff]
  %v1604 = vld [vmem:[%s5 + $0x428] sm:$0xff]
  %v1605 = vld [vmem:[%s5 + $0x430] sm:$0xff]
  %v1606 = vld [vmem:[%s5 + $0x438] sm:$0xff]
  %v1607 = vld [vmem:[%s5 + $0x440] sm:$0xff]
  %v1608 = vld [vmem:[%s5 + $0x448] sm:$0xff]
  %v1609 = vld [vmem:[%s5 + $0x450] sm:$0xff]
  %v1610 = vld [vmem:[%s5 + $0x458] sm:$0xff]
  %v1612 = vsel %vm1227, %v1578, 0
  %v1615 = vsel %vm1227, %v1580, 0
  %v1618 = vsel %vm1227, %v1582, 0
  %1620 = vmatpush.msra.mxu0 %v1598
  %1621 = vmatpush.msra.mxu0 %v1597
  %1622 = vmatpush.msra.mxu0 %v1596
  %1623 = vmatpush.msra.mxu0 %v1595
  %1624 = vmatpush.msra.mxu0 %v1594
  %1625 = vmatpush.msra.mxu0 %v1593
  %1626 = vmatpush.msra.mxu0 %v1592
  %1627 = vmatpush.msra.mxu0 %v1591
  %1628 = vmatpush.msra.mxu0 %v1590
  %1629 = vmatpush.msra.mxu0 %v1589
  %1630 = vmatpush.msra.mxu0 %v1588
  %1631 = vmatpush.msra.mxu0 %v1587
  %1632 = vmatpush.msra.mxu0 %v1586
  %1633 = vmatpush.msra.mxu0 %v1585
  %1634 = vmatpush.msra.mxu0 %v1584
  %1635 = vmatpush.msra.mxu0 %v1583
  %1636 = vmatmul.f32.gmra.mxu0 %v1577
  %v1637 = vpop.f32.mrf.mxu0
  %v1638 = vadd.f32 0.0, %v1637
  %1639 = vmatmul.f32.gmra.mxu0 %v1579
  %v1640 = vpop.f32.mrf.mxu0
  %v1641 = vadd.f32 0.0, %v1640
  %1642 = vmatmul.f32.gmra.mxu0 %v1581
  %v1643 = vpop.f32.mrf.mxu0
  %v1644 = vadd.f32 0.0, %v1643
  %1645 = vdwg.mxu0
  %1646 = vmatpush.msra.mxu0 0.0
  %1647 = vmatpush.msra.mxu0 0.0
  %1648 = vmatpush.msra.mxu0 0.0
  %1649 = vmatpush.msra.mxu0 0.0
  %1650 = vmatpush.msra.mxu0 %v1610
  %1651 = vmatpush.msra.mxu0 %v1609
  %1652 = vmatpush.msra.mxu0 %v1608
  %1653 = vmatpush.msra.mxu0 %v1607
  %1654 = vmatpush.msra.mxu0 %v1606
  %1655 = vmatpush.msra.mxu0 %v1605
  %1656 = vmatpush.msra.mxu0 %v1604
  %1657 = vmatpush.msra.mxu0 %v1603
  %1658 = vmatpush.msra.mxu0 %v1602
  %1659 = vmatpush.msra.mxu0 %v1601
  %1660 = vmatpush.msra.mxu0 %v1600
  %1661 = vmatpush.msra.mxu0 %v1599
  %1662 = vmatmul.f32.gmra.mxu0 %v1612
  %v1663 = vpop.f32.mrf.mxu0
  %v1664 = vadd.f32 %v1638, %v1663
  %1665 = vmatmul.f32.gmra.mxu0 %v1615
  %v1666 = vpop.f32.mrf.mxu0
  %v1667 = vadd.f32 %v1641, %v1666
  %1668 = vmatmul.f32.gmra.mxu0 %v1618
  %v1669 = vpop.f32.mrf.mxu0
  %v1670 = vadd.f32 %v1644, %v1669
  %1671 = vdwg.mxu0
  %v1672 = vadd.f32 %v1574, %v1664
  %v1673 = vadd.f32 %v1575, %v1667
  %v1674 = vadd.f32 %v1576, %v1670
  %v1675 = vld [vmem:[#allocation3 + $0xb0] sm:$0xfc]
  %v1676 = vld [vmem:[#allocation3 + $0xb8] sm:$0xfc]
  %v1677 = vld [vmem:[#allocation3 + $0xc0] sm:$0xff]
  %v1678 = vld [vmem:[#allocation3 + $0xc8] sm:$0xff]
  %v1679 = vld [vmem:[#allocation3 + $0xd0] sm:$0xf]
  %v1680 = vld [vmem:[#allocation3 + $0xd8] sm:$0xf]
  %v1681 = vld [vmem:[%s5 + $0x460] sm:$0xff]
  %v1682 = vld [vmem:[%s5 + $0x468] sm:$0xff]
  %v1683 = vld [vmem:[%s5 + $0x470] sm:$0xff]
  %v1684 = vld [vmem:[%s5 + $0x478] sm:$0xff]
  %v1685 = vld [vmem:[%s5 + $0x480] sm:$0xff]
  %v1686 = vld [vmem:[%s5 + $0x488] sm:$0xff]
  %v1687 = vld [vmem:[%s5 + $0x490] sm:$0xff]
  %v1688 = vld [vmem:[%s5 + $0x498] sm:$0xff]
  %v1689 = vld [vmem:[%s5 + $0x4a0] sm:$0xff]
  %v1690 = vld [vmem:[%s5 + $0x4a8] sm:$0xff]
  %v1691 = vld [vmem:[%s5 + $0x4b0] sm:$0xff]
  %v1692 = vld [vmem:[%s5 + $0x4b8] sm:$0xff]
  %v1693 = vld [vmem:[%s5 + $0x4c0] sm:$0xff]
  %v1694 = vld [vmem:[%s5 + $0x4c8] sm:$0xff]
  %v1695 = vld [vmem:[%s5 + $0x4d0] sm:$0xff]
  %v1696 = vld [vmem:[%s5 + $0x4d8] sm:$0xff]
  %v1697 = vld [vmem:[%s5 + $0x4e0] sm:$0xff]
  %v1698 = vld [vmem:[%s5 + $0x4e8] sm:$0xff]
  %v1699 = vld [vmem:[%s5 + $0x4f0] sm:$0xff]
  %v1700 = vld [vmem:[%s5 + $0x4f8] sm:$0xff]
  %v1701 = vld [vmem:[%s5 + $0x500] sm:$0xff]
  %v1702 = vld [vmem:[%s5 + $0x508] sm:$0xff]
  %v1703 = vld [vmem:[%s5 + $0x510] sm:$0xff]
  %v1704 = vld [vmem:[%s5 + $0x518] sm:$0xff]
  %v1705 = vld [vmem:[%s5 + $0x520] sm:$0xff]
  %v1706 = vld [vmem:[%s5 + $0x528] sm:$0xff]
  %v1707 = vld [vmem:[%s5 + $0x530] sm:$0xff]
  %v1708 = vld [vmem:[%s5 + $0x538] sm:$0xff]
  %v1715 = vrot.slane %v1675, 2
  %v1716 = vrot.slane %v1677, 2
  %v1717 = vsel %vm1213, %v1715, %v1716
  %v1718 = vrot.slane %v1676, 2
  %v1719 = vrot.slane %v1678, 2
  %v1720 = vsel %vm1213, %v1718, %v1719
  %v1721 = vrot.slane %v1679, 2
  %v1722 = vsel %vm1213, %v1716, %v1721
  %v1723 = vrot.slane %v1680, 2
  %v1724 = vsel %vm1213, %v1719, %v1723
  %v1728 = vsel %vm1227, %v1720, 0
  %v1730 = vsel %vm1227, %v1724, 0
  %v1732 = vsel %vm1227, %v1723, 0
  %1734 = vmatpush.msra.mxu0 %v1696
  %1735 = vmatpush.msra.mxu0 %v1695
  %1736 = vmatpush.msra.mxu0 %v1694
  %1737 = vmatpush.msra.mxu0 %v1693
  %1738 = vmatpush.msra.mxu0 %v1692
  %1739 = vmatpush.msra.mxu0 %v1691
  %1740 = vmatpush.msra.mxu0 %v1690
  %1741 = vmatpush.msra.mxu0 %v1689
  %1742 = vmatpush.msra.mxu0 %v1688
  %1743 = vmatpush.msra.mxu0 %v1687
  %1744 = vmatpush.msra.mxu0 %v1686
  %1745 = vmatpush.msra.mxu0 %v1685
  %1746 = vmatpush.msra.mxu0 %v1684
  %1747 = vmatpush.msra.mxu0 %v1683
  %1748 = vmatpush.msra.mxu0 %v1682
  %1749 = vmatpush.msra.mxu0 %v1681
  %1750 = vmatmul.f32.gmra.mxu0 %v1717
  %v1751 = vpop.f32.mrf.mxu0
  %v1752 = vadd.f32 0.0, %v1751
  %1753 = vmatmul.f32.gmra.mxu0 %v1722
  %v1754 = vpop.f32.mrf.mxu0
  %v1755 = vadd.f32 0.0, %v1754
  %1756 = vmatmul.f32.gmra.mxu0 %v1721
  %v1757 = vpop.f32.mrf.mxu0
  %v1758 = vadd.f32 0.0, %v1757
  %1759 = vdwg.mxu0
  %1760 = vmatpush.msra.mxu0 0.0
  %1761 = vmatpush.msra.mxu0 0.0
  %1762 = vmatpush.msra.mxu0 0.0
  %1763 = vmatpush.msra.mxu0 0.0
  %1764 = vmatpush.msra.mxu0 %v1708
  %1765 = vmatpush.msra.mxu0 %v1707
  %1766 = vmatpush.msra.mxu0 %v1706
  %1767 = vmatpush.msra.mxu0 %v1705
  %1768 = vmatpush.msra.mxu0 %v1704
  %1769 = vmatpush.msra.mxu0 %v1703
  %1770 = vmatpush.msra.mxu0 %v1702
  %1771 = vmatpush.msra.mxu0 %v1701
  %1772 = vmatpush.msra.mxu0 %v1700
  %1773 = vmatpush.msra.mxu0 %v1699
  %1774 = vmatpush.msra.mxu0 %v1698
  %1775 = vmatpush.msra.mxu0 %v1697
  %1776 = vmatmul.f32.gmra.mxu0 %v1728
  %v1777 = vpop.f32.mrf.mxu0
  %v1778 = vadd.f32 %v1752, %v1777
  %1779 = vmatmul.f32.gmra.mxu0 %v1730
  %v1780 = vpop.f32.mrf.mxu0
  %v1781 = vadd.f32 %v1755, %v1780
  %1782 = vmatmul.f32.gmra.mxu0 %v1732
  %v1783 = vpop.f32.mrf.mxu0
  %v1784 = vadd.f32 %v1758, %v1783
  %1785 = vdwg.mxu0
  %v1786 = vadd.f32 %v1672, %v1778
  %v1787 = vadd.f32 %v1673, %v1781
  %v1788 = vadd.f32 %v1674, %v1784
  %v1789 = vld [vmem:[#allocation3 + $0xd0] sm:$0xf0]
  %v1790 = vld [vmem:[#allocation3 + $0xd8] sm:$0xf0]
  %v1791 = vld [vmem:[#allocation3 + $0xe0] sm:$0xff]
  %v1792 = vld [vmem:[#allocation3 + $0xe8] sm:$0xff]
  %v1793 = vld [vmem:[#allocation3 + $0xf0] sm:$0x3f]
  %v1794 = vld [vmem:[#allocation3 + $0xf8] sm:$0x3f]
  %v1795 = vld [vmem:[%s5 + $0x540] sm:$0xff]
  %v1796 = vld [vmem:[%s5 + $0x548] sm:$0xff]
  %v1797 = vld [vmem:[%s5 + $0x550] sm:$0xff]
  %v1798 = vld [vmem:[%s5 + $0x558] sm:$0xff]
  %v1799 = vld [vmem:[%s5 + $0x560] sm:$0xff]
  %v1800 = vld [vmem:[%s5 + $0x568] sm:$0xff]
  %v1801 = vld [vmem:[%s5 + $0x570] sm:$0xff]
  %v1802 = vld [vmem:[%s5 + $0x578] sm:$0xff]
  %v1803 = vld [vmem:[%s5 + $0x580] sm:$0xff]
  %v1804 = vld [vmem:[%s5 + $0x588] sm:$0xff]
  %v1805 = vld [vmem:[%s5 + $0x590] sm:$0xff]
  %v1806 = vld [vmem:[%s5 + $0x598] sm:$0xff]
  %v1807 = vld [vmem:[%s5 + $0x5a0] sm:$0xff]
  %v1808 = vld [vmem:[%s5 + $0x5a8] sm:$0xff]
  %v1809 = vld [vmem:[%s5 + $0x5b0] sm:$0xff]
  %v1810 = vld [vmem:[%s5 + $0x5b8] sm:$0xff]
  %v1811 = vld [vmem:[%s5 + $0x5c0] sm:$0xff]
  %v1812 = vld [vmem:[%s5 + $0x5c8] sm:$0xff]
  %v1813 = vld [vmem:[%s5 + $0x5d0] sm:$0xff]
  %v1814 = vld [vmem:[%s5 + $0x5d8] sm:$0xff]
  %v1815 = vld [vmem:[%s5 + $0x5e0] sm:$0xff]
  %v1816 = vld [vmem:[%s5 + $0x5e8] sm:$0xff]
  %v1817 = vld [vmem:[%s5 + $0x5f0] sm:$0xff]
  %v1818 = vld [vmem:[%s5 + $0x5f8] sm:$0xff]
  %v1819 = vld [vmem:[%s5 + $0x600] sm:$0xff]
  %v1820 = vld [vmem:[%s5 + $0x608] sm:$0xff]
  %v1821 = vld [vmem:[%s5 + $0x610] sm:$0xff]
  %v1822 = vld [vmem:[%s5 + $0x618] sm:$0xff]
  %v1829 = vrot.slane %v1789, 4
  %v1830 = vrot.slane %v1791, 4
  %v1831 = vsel %vm1387, %v1829, %v1830
  %v1832 = vrot.slane %v1790, 4
  %v1833 = vrot.slane %v1792, 4
  %v1834 = vsel %vm1387, %v1832, %v1833
  %v1835 = vrot.slane %v1793, 4
  %v1836 = vsel %vm1387, %v1830, %v1835
  %v1837 = vrot.slane %v1794, 4
  %v1838 = vsel %vm1387, %v1833, %v1837
  %v1842 = vsel %vm1227, %v1834, 0
  %v1844 = vsel %vm1227, %v1838, 0
  %v1846 = vsel %vm1227, %v1837, 0
  %1848 = vmatpush.msra.mxu0 %v1810
  %1849 = vmatpush.msra.mxu0 %v1809
  %1850 = vmatpush.msra.mxu0 %v1808
  %1851 = vmatpush.msra.mxu0 %v1807
  %1852 = vmatpush.msra.mxu0 %v1806
  %1853 = vmatpush.msra.mxu0 %v1805
  %1854 = vmatpush.msra.mxu0 %v1804
  %1855 = vmatpush.msra.mxu0 %v1803
  %1856 = vmatpush.msra.mxu0 %v1802
  %1857 = vmatpush.msra.mxu0 %v1801
  %1858 = vmatpush.msra.mxu0 %v1800
  %1859 = vmatpush.msra.mxu0 %v1799
  %1860 = vmatpush.msra.mxu0 %v1798
  %1861 = vmatpush.msra.mxu0 %v1797
  %1862 = vmatpush.msra.mxu0 %v1796
  %1863 = vmatpush.msra.mxu0 %v1795
  %1864 = vmatmul.f32.gmra.mxu0 %v1831
  %v1865 = vpop.f32.mrf.mxu0
  %v1866 = vadd.f32 0.0, %v1865
  %1867 = vmatmul.f32.gmra.mxu0 %v1836
  %v1868 = vpop.f32.mrf.mxu0
  %v1869 = vadd.f32 0.0, %v1868
  %1870 = vmatmul.f32.gmra.mxu0 %v1835
  %v1871 = vpop.f32.mrf.mxu0
  %v1872 = vadd.f32 0.0, %v1871
  %1873 = vdwg.mxu0
  %1874 = vmatpush.msra.mxu0 0.0
  %1875 = vmatpush.msra.mxu0 0.0
  %1876 = vmatpush.msra.mxu0 0.0
  %1877 = vmatpush.msra.mxu0 0.0
  %1878 = vmatpush.msra.mxu0 %v1822
  %1879 = vmatpush.msra.mxu0 %v1821
  %1880 = vmatpush.msra.mxu0 %v1820
  %1881 = vmatpush.msra.mxu0 %v1819
  %1882 = vmatpush.msra.mxu0 %v1818
  %1883 = vmatpush.msra.mxu0 %v1817
  %1884 = vmatpush.msra.mxu0 %v1816
  %1885 = vmatpush.msra.mxu0 %v1815
  %1886 = vmatpush.msra.mxu0 %v1814
  %1887 = vmatpush.msra.mxu0 %v1813
  %1888 = vmatpush.msra.mxu0 %v1812
  %1889 = vmatpush.msra.mxu0 %v1811
  %1890 = vmatmul.f32.gmra.mxu0 %v1842
  %v1891 = vpop.f32.mrf.mxu0
  %v1892 = vadd.f32 %v1866, %v1891
  %1893 = vmatmul.f32.gmra.mxu0 %v1844
  %v1894 = vpop.f32.mrf.mxu0
  %v1895 = vadd.f32 %v1869, %v1894
  %1896 = vmatmul.f32.gmra.mxu0 %v1846
  %v1897 = vpop.f32.mrf.mxu0
  %v1898 = vadd.f32 %v1872, %v1897
  %1899 = vdwg.mxu0
  %v1900 = vadd.f32 %v1786, %v1892
  %v1901 = vadd.f32 %v1787, %v1895
  %v1902 = vadd.f32 %v1788, %v1898
  %v1903 = vld [vmem:[%s6] sm:$0x1]
  %v1905 = vperm.slane %v1903, 0
  %v1907 = vadd.f32 %v1900, %v1905
  %v1908 = vadd.f32 %v1901, %v1905
  %v1909 = vadd.f32 %v1902, %v1905
  %vm1910 = vcmp.ge.f32.partialorder %v1907, 0.0
  %vm1911 = vcmp.ge.f32.partialorder %v1908, 0.0
  %vm1912 = vcmp.ge.f32.partialorder %v1909, 0.0
  %v1913 = vmul.f32 %v1907, 0.01
  %v1914 = vmul.f32 %v1908, 0.01
  %v1915 = vmul.f32 %v1909, 0.01
  %v1916 = vsel %vm1910, %v1907, %v1913
  %v1917 = vsel %vm1911, %v1908, %v1914
  %v1918 = vsel %vm1912, %v1909, %v1915
  %v1919 = vld [vmem:[%s7] sm:$0x1]
  %v1921 = vperm.slane %v1919, 0
  %v1923 = vmul.f32 %v1916, %v1921
  %v1924 = vmul.f32 %v1917, %v1921
  %v1925 = vmul.f32 %v1918, %v1921
  %v1926 = vld [vmem:[%s8] sm:$0x1]
  %v1928 = vperm.slane %v1926, 0
  %v1930 = vadd.f32 %v1923, %v1928
  %v1931 = vadd.f32 %v1924, %v1928
  %v1932 = vadd.f32 %v1925, %v1928
  %vm1933 = vcmask 261120
  %1934 = vst.msk [vmem:[#allocation4] sm:$0xff] %vm1933, %v1930
  %1935 = vst.msk [vmem:[#allocation4 + $0x8] sm:$0xff] %vm1933, %v1931
  %vm1936 = vcmask 254976
  %1937 = vst.msk [vmem:[#allocation4 + $0x10] sm:$0x3] %vm1936, %v1932
  %v1938 = vld [vmem:[#allocation4] sm:$0x3]
  %v1939 = vld [vmem:[%s9] sm:$0xff]
  %v1940 = vld [vmem:[%s9 + $0x8] sm:$0xff]
  %v1941 = vld [vmem:[%s9 + $0x10] sm:$0xff]
  %v1942 = vld [vmem:[%s9 + $0x18] sm:$0xff]
  %v1943 = vld [vmem:[%s9 + $0x20] sm:$0xff]
  %v1944 = vld [vmem:[%s9 + $0x28] sm:$0xff]
  %v1945 = vld [vmem:[%s9 + $0x30] sm:$0xff]
  %v1946 = vld [vmem:[%s9 + $0x38] sm:$0xff]
  %v1947 = vld [vmem:[%s9 + $0x40] sm:$0xff]
  %v1948 = vld [vmem:[%s9 + $0x48] sm:$0xff]
  %v1949 = vld [vmem:[%s9 + $0x50] sm:$0xff]
  %v1950 = vld [vmem:[%s9 + $0x58] sm:$0xff]
  %v1951 = vld [vmem:[%s9 + $0x60] sm:$0xff]
  %v1952 = vld [vmem:[%s9 + $0x68] sm:$0xff]
  %v1953 = vld [vmem:[%s9 + $0x70] sm:$0xff]
  %v1954 = vld [vmem:[%s9 + $0x78] sm:$0xff]
  %v1955 = vld [vmem:[%s9 + $0x80] sm:$0xff]
  %v1956 = vld [vmem:[%s9 + $0x88] sm:$0xff]
  %v1957 = vld [vmem:[%s9 + $0x90] sm:$0xff]
  %v1958 = vld [vmem:[%s9 + $0x98] sm:$0xff]
  %v1959 = vld [vmem:[%s9 + $0xa0] sm:$0xff]
  %v1960 = vld [vmem:[%s9 + $0xa8] sm:$0xff]
  %v1961 = vld [vmem:[%s9 + $0xb0] sm:$0xff]
  %v1962 = vld [vmem:[%s9 + $0xb8] sm:$0xff]
  %v1963 = vld [vmem:[%s9 + $0xc0] sm:$0xff]
  %v1964 = vld [vmem:[%s9 + $0xc8] sm:$0xff]
  %v1965 = vld [vmem:[%s9 + $0xd0] sm:$0xff]
  %v1966 = vld [vmem:[%s9 + $0xd8] sm:$0xff]
  %v1967 = vld [vmem:[#allocation4 + $0x2] sm:$0x3]
  %v1968 = vld [vmem:[%s9 + $0xe0] sm:$0xff]
  %v1969 = vld [vmem:[%s9 + $0xe8] sm:$0xff]
  %v1970 = vld [vmem:[%s9 + $0xf0] sm:$0xff]
  %v1971 = vld [vmem:[%s9 + $0xf8] sm:$0xff]
  %v1972 = vld [vmem:[%s9 + $0x100] sm:$0xff]
  %v1973 = vld [vmem:[%s9 + $0x108] sm:$0xff]
  %v1974 = vld [vmem:[%s9 + $0x110] sm:$0xff]
  %v1975 = vld [vmem:[%s9 + $0x118] sm:$0xff]
  %v1976 = vld [vmem:[%s9 + $0x120] sm:$0xff]
  %v1977 = vld [vmem:[%s9 + $0x128] sm:$0xff]
  %v1978 = vld [vmem:[%s9 + $0x130] sm:$0xff]
  %v1979 = vld [vmem:[%s9 + $0x138] sm:$0xff]
  %v1980 = vld [vmem:[%s9 + $0x140] sm:$0xff]
  %v1981 = vld [vmem:[%s9 + $0x148] sm:$0xff]
  %v1982 = vld [vmem:[%s9 + $0x150] sm:$0xff]
  %v1983 = vld [vmem:[%s9 + $0x158] sm:$0xff]
  %v1984 = vld [vmem:[%s9 + $0x160] sm:$0xff]
  %v1985 = vld [vmem:[%s9 + $0x168] sm:$0xff]
  %v1986 = vld [vmem:[%s9 + $0x170] sm:$0xff]
  %v1987 = vld [vmem:[%s9 + $0x178] sm:$0xff]
  %v1988 = vld [vmem:[%s9 + $0x180] sm:$0xff]
  %v1989 = vld [vmem:[%s9 + $0x188] sm:$0xff]
  %v1990 = vld [vmem:[%s9 + $0x190] sm:$0xff]
  %v1991 = vld [vmem:[%s9 + $0x198] sm:$0xff]
  %v1992 = vld [vmem:[%s9 + $0x1a0] sm:$0xff]
  %v1993 = vld [vmem:[%s9 + $0x1a8] sm:$0xff]
  %v1994 = vld [vmem:[%s9 + $0x1b0] sm:$0xff]
  %v1995 = vld [vmem:[%s9 + $0x1b8] sm:$0xff]
  %v1997 = vsel %vm1933, %v1967, 0
  %1999 = vmatpush.msra.mxu0 0.0
  %2000 = vmatpush.msra.mxu0 0.0
  %2001 = vmatpush.msra.mxu0 0.0
  %2002 = vmatpush.msra.mxu0 0.0
  %2003 = vmatpush.msra.mxu0 0.0
  %2004 = vmatpush.msra.mxu0 0.0
  %2005 = vmatpush.msra.mxu0 0.0
  %2006 = vmatpush.msra.mxu0 0.0
  %2007 = vmatpush.msra.mxu0 0.0
  %2008 = vmatpush.msra.mxu0 0.0
  %2009 = vmatpush.msra.mxu0 0.0
  %2010 = vmatpush.msra.mxu0 0.0
  %2011 = vmatpush.msra.mxu0 %v1989
  %2012 = vmatpush.msra.mxu0 %v1982
  %2013 = vmatpush.msra.mxu0 %v1975
  %2014 = vmatpush.msra.mxu0 %v1968
  %2015 = vmatmul.f32.gmra.mxu0 %v1997
  %v2016 = vpop.f32.mrf.mxu0
  %v2017 = vadd.f32 0.0, %v2016
  %2018 = vdwg.mxu0
  %2019 = vmatpush.msra.mxu0 0.0
  %2020 = vmatpush.msra.mxu0 0.0
  %2021 = vmatpush.msra.mxu0 0.0
  %2022 = vmatpush.msra.mxu0 0.0
  %2023 = vmatpush.msra.mxu0 0.0
  %2024 = vmatpush.msra.mxu0 0.0
  %2025 = vmatpush.msra.mxu0 0.0
  %2026 = vmatpush.msra.mxu0 0.0
  %2027 = vmatpush.msra.mxu0 0.0
  %2028 = vmatpush.msra.mxu0 0.0
  %2029 = vmatpush.msra.mxu0 0.0
  %2030 = vmatpush.msra.mxu0 0.0
  %2031 = vmatpush.msra.mxu0 %v1990
  %2032 = vmatpush.msra.mxu0 %v1983
  %2033 = vmatpush.msra.mxu0 %v1976
  %2034 = vmatpush.msra.mxu0 %v1969
  %2035 = vmatmul.f32.gmra.mxu0 %v1997
  %v2036 = vpop.f32.mrf.mxu0
  %v2037 = vadd.f32 0.0, %v2036
  %2038 = vdwg.mxu0
  %2039 = vmatpush.msra.mxu0 0.0
  %2040 = vmatpush.msra.mxu0 0.0
  %2041 = vmatpush.msra.mxu0 0.0
  %2042 = vmatpush.msra.mxu0 0.0
  %2043 = vmatpush.msra.mxu0 0.0
  %2044 = vmatpush.msra.mxu0 0.0
  %2045 = vmatpush.msra.mxu0 0.0
  %2046 = vmatpush.msra.mxu0 0.0
  %2047 = vmatpush.msra.mxu0 0.0
  %2048 = vmatpush.msra.mxu0 0.0
  %2049 = vmatpush.msra.mxu0 0.0
  %2050 = vmatpush.msra.mxu0 0.0
  %2051 = vmatpush.msra.mxu0 %v1991
  %2052 = vmatpush.msra.mxu0 %v1984
  %2053 = vmatpush.msra.mxu0 %v1977
  %2054 = vmatpush.msra.mxu0 %v1970
  %2055 = vmatmul.f32.gmra.mxu0 %v1997
  %v2056 = vpop.f32.mrf.mxu0
  %v2057 = vadd.f32 0.0, %v2056
  %2058 = vdwg.mxu0
  %2059 = vmatpush.msra.mxu0 0.0
  %2060 = vmatpush.msra.mxu0 0.0
  %2061 = vmatpush.msra.mxu0 0.0
  %2062 = vmatpush.msra.mxu0 0.0
  %2063 = vmatpush.msra.mxu0 0.0
  %2064 = vmatpush.msra.mxu0 0.0
  %2065 = vmatpush.msra.mxu0 0.0
  %2066 = vmatpush.msra.mxu0 0.0
  %2067 = vmatpush.msra.mxu0 0.0
  %2068 = vmatpush.msra.mxu0 0.0
  %2069 = vmatpush.msra.mxu0 0.0
  %2070 = vmatpush.msra.mxu0 0.0
  %2071 = vmatpush.msra.mxu0 %v1992
  %2072 = vmatpush.msra.mxu0 %v1985
  %2073 = vmatpush.msra.mxu0 %v1978
  %2074 = vmatpush.msra.mxu0 %v1971
  %2075 = vmatmul.f32.gmra.mxu0 %v1997
  %v2076 = vpop.f32.mrf.mxu0
  %v2077 = vadd.f32 0.0, %v2076
  %2078 = vdwg.mxu0
  %2079 = vmatpush.msra.mxu0 0.0
  %2080 = vmatpush.msra.mxu0 0.0
  %2081 = vmatpush.msra.mxu0 0.0
  %2082 = vmatpush.msra.mxu0 0.0
  %2083 = vmatpush.msra.mxu0 0.0
  %2084 = vmatpush.msra.mxu0 0.0
  %2085 = vmatpush.msra.mxu0 0.0
  %2086 = vmatpush.msra.mxu0 0.0
  %2087 = vmatpush.msra.mxu0 0.0
  %2088 = vmatpush.msra.mxu0 0.0
  %2089 = vmatpush.msra.mxu0 0.0
  %2090 = vmatpush.msra.mxu0 0.0
  %2091 = vmatpush.msra.mxu0 %v1993
  %2092 = vmatpush.msra.mxu0 %v1986
  %2093 = vmatpush.msra.mxu0 %v1979
  %2094 = vmatpush.msra.mxu0 %v1972
  %2095 = vmatmul.f32.gmra.mxu0 %v1997
  %v2096 = vpop.f32.mrf.mxu0
  %v2097 = vadd.f32 0.0, %v2096
  %2098 = vdwg.mxu0
  %2099 = vmatpush.msra.mxu0 0.0
  %2100 = vmatpush.msra.mxu0 0.0
  %2101 = vmatpush.msra.mxu0 0.0
  %2102 = vmatpush.msra.mxu0 0.0
  %2103 = vmatpush.msra.mxu0 0.0
  %2104 = vmatpush.msra.mxu0 0.0
  %2105 = vmatpush.msra.mxu0 0.0
  %2106 = vmatpush.msra.mxu0 0.0
  %2107 = vmatpush.msra.mxu0 0.0
  %2108 = vmatpush.msra.mxu0 0.0
  %2109 = vmatpush.msra.mxu0 0.0
  %2110 = vmatpush.msra.mxu0 0.0
  %2111 = vmatpush.msra.mxu0 %v1994
  %2112 = vmatpush.msra.mxu0 %v1987
  %2113 = vmatpush.msra.mxu0 %v1980
  %2114 = vmatpush.msra.mxu0 %v1973
  %2115 = vmatmul.f32.gmra.mxu0 %v1997
  %v2116 = vpop.f32.mrf.mxu0
  %v2117 = vadd.f32 0.0, %v2116
  %2118 = vdwg.mxu0
  %2119 = vmatpush.msra.mxu0 0.0
  %2120 = vmatpush.msra.mxu0 0.0
  %2121 = vmatpush.msra.mxu0 0.0
  %2122 = vmatpush.msra.mxu0 0.0
  %2123 = vmatpush.msra.mxu0 0.0
  %2124 = vmatpush.msra.mxu0 0.0
  %2125 = vmatpush.msra.mxu0 0.0
  %2126 = vmatpush.msra.mxu0 0.0
  %2127 = vmatpush.msra.mxu0 0.0
  %2128 = vmatpush.msra.mxu0 0.0
  %2129 = vmatpush.msra.mxu0 0.0
  %2130 = vmatpush.msra.mxu0 0.0
  %2131 = vmatpush.msra.mxu0 %v1995
  %2132 = vmatpush.msra.mxu0 %v1988
  %2133 = vmatpush.msra.mxu0 %v1981
  %2134 = vmatpush.msra.mxu0 %v1974
  %2135 = vmatmul.f32.gmra.mxu0 %v1997
  %v2136 = vpop.f32.mrf.mxu0
  %v2137 = vadd.f32 0.0, %v2136
  %2138 = vdwg.mxu0
  %v2140 = vsel %vm1933, %v1938, 0
  %2142 = vmatpush.msra.mxu0 0.0
  %2143 = vmatpush.msra.mxu0 0.0
  %2144 = vmatpush.msra.mxu0 0.0
  %2145 = vmatpush.msra.mxu0 0.0
  %2146 = vmatpush.msra.mxu0 0.0
  %2147 = vmatpush.msra.mxu0 0.0
  %2148 = vmatpush.msra.mxu0 0.0
  %2149 = vmatpush.msra.mxu0 0.0
  %2150 = vmatpush.msra.mxu0 0.0
  %2151 = vmatpush.msra.mxu0 0.0
  %2152 = vmatpush.msra.mxu0 0.0
  %2153 = vmatpush.msra.mxu0 0.0
  %2154 = vmatpush.msra.mxu0 %v1960
  %2155 = vmatpush.msra.mxu0 %v1953
  %2156 = vmatpush.msra.mxu0 %v1946
  %2157 = vmatpush.msra.mxu0 %v1939
  %2158 = vmatmul.f32.gmra.mxu0 %v2140
  %v2159 = vpop.f32.mrf.mxu0
  %v2160 = vadd.f32 %v2017, %v2159
  %2161 = vdwg.mxu0
  %2162 = vmatpush.msra.mxu0 0.0
  %2163 = vmatpush.msra.mxu0 0.0
  %2164 = vmatpush.msra.mxu0 0.0
  %2165 = vmatpush.msra.mxu0 0.0
  %2166 = vmatpush.msra.mxu0 0.0
  %2167 = vmatpush.msra.mxu0 0.0
  %2168 = vmatpush.msra.mxu0 0.0
  %2169 = vmatpush.msra.mxu0 0.0
  %2170 = vmatpush.msra.mxu0 0.0
  %2171 = vmatpush.msra.mxu0 0.0
  %2172 = vmatpush.msra.mxu0 0.0
  %2173 = vmatpush.msra.mxu0 0.0
  %2174 = vmatpush.msra.mxu0 %v1961
  %2175 = vmatpush.msra.mxu0 %v1954
  %2176 = vmatpush.msra.mxu0 %v1947
  %2177 = vmatpush.msra.mxu0 %v1940
  %2178 = vmatmul.f32.gmra.mxu0 %v2140
  %v2179 = vpop.f32.mrf.mxu0
  %v2180 = vadd.f32 %v2037, %v2179
  %2181 = vdwg.mxu0
  %2182 = vmatpush.msra.mxu0 0.0
  %2183 = vmatpush.msra.mxu0 0.0
  %2184 = vmatpush.msra.mxu0 0.0
  %2185 = vmatpush.msra.mxu0 0.0
  %2186 = vmatpush.msra.mxu0 0.0
  %2187 = vmatpush.msra.mxu0 0.0
  %2188 = vmatpush.msra.mxu0 0.0
  %2189 = vmatpush.msra.mxu0 0.0
  %2190 = vmatpush.msra.mxu0 0.0
  %2191 = vmatpush.msra.mxu0 0.0
  %2192 = vmatpush.msra.mxu0 0.0
  %2193 = vmatpush.msra.mxu0 0.0
  %2194 = vmatpush.msra.mxu0 %v1962
  %2195 = vmatpush.msra.mxu0 %v1955
  %2196 = vmatpush.msra.mxu0 %v1948
  %2197 = vmatpush.msra.mxu0 %v1941
  %2198 = vmatmul.f32.gmra.mxu0 %v2140
  %v2199 = vpop.f32.mrf.mxu0
  %v2200 = vadd.f32 %v2057, %v2199
  %2201 = vdwg.mxu0
  %2202 = vmatpush.msra.mxu0 0.0
  %2203 = vmatpush.msra.mxu0 0.0
  %2204 = vmatpush.msra.mxu0 0.0
  %2205 = vmatpush.msra.mxu0 0.0
  %2206 = vmatpush.msra.mxu0 0.0
  %2207 = vmatpush.msra.mxu0 0.0
  %2208 = vmatpush.msra.mxu0 0.0
  %2209 = vmatpush.msra.mxu0 0.0
  %2210 = vmatpush.msra.mxu0 0.0
  %2211 = vmatpush.msra.mxu0 0.0
  %2212 = vmatpush.msra.mxu0 0.0
  %2213 = vmatpush.msra.mxu0 0.0
  %2214 = vmatpush.msra.mxu0 %v1963
  %2215 = vmatpush.msra.mxu0 %v1956
  %2216 = vmatpush.msra.mxu0 %v1949
  %2217 = vmatpush.msra.mxu0 %v1942
  %2218 = vmatmul.f32.gmra.mxu0 %v2140
  %v2219 = vpop.f32.mrf.mxu0
  %v2220 = vadd.f32 %v2077, %v2219
  %2221 = vdwg.mxu0
  %2222 = vmatpush.msra.mxu0 0.0
  %2223 = vmatpush.msra.mxu0 0.0
  %2224 = vmatpush.msra.mxu0 0.0
  %2225 = vmatpush.msra.mxu0 0.0
  %2226 = vmatpush.msra.mxu0 0.0
  %2227 = vmatpush.msra.mxu0 0.0
  %2228 = vmatpush.msra.mxu0 0.0
  %2229 = vmatpush.msra.mxu0 0.0
  %2230 = vmatpush.msra.mxu0 0.0
  %2231 = vmatpush.msra.mxu0 0.0
  %2232 = vmatpush.msra.mxu0 0.0
  %2233 = vmatpush.msra.mxu0 0.0
  %2234 = vmatpush.msra.mxu0 %v1964
  %2235 = vmatpush.msra.mxu0 %v1957
  %2236 = vmatpush.msra.mxu0 %v1950
  %2237 = vmatpush.msra.mxu0 %v1943
  %2238 = vmatmul.f32.gmra.mxu0 %v2140
  %v2239 = vpop.f32.mrf.mxu0
  %v2240 = vadd.f32 %v2097, %v2239
  %2241 = vdwg.mxu0
  %2242 = vmatpush.msra.mxu0 0.0
  %2243 = vmatpush.msra.mxu0 0.0
  %2244 = vmatpush.msra.mxu0 0.0
  %2245 = vmatpush.msra.mxu0 0.0
  %2246 = vmatpush.msra.mxu0 0.0
  %2247 = vmatpush.msra.mxu0 0.0
  %2248 = vmatpush.msra.mxu0 0.0
  %2249 = vmatpush.msra.mxu0 0.0
  %2250 = vmatpush.msra.mxu0 0.0
  %2251 = vmatpush.msra.mxu0 0.0
  %2252 = vmatpush.msra.mxu0 0.0
  %2253 = vmatpush.msra.mxu0 0.0
  %2254 = vmatpush.msra.mxu0 %v1965
  %2255 = vmatpush.msra.mxu0 %v1958
  %2256 = vmatpush.msra.mxu0 %v1951
  %2257 = vmatpush.msra.mxu0 %v1944
  %2258 = vmatmul.f32.gmra.mxu0 %v2140
  %v2259 = vpop.f32.mrf.mxu0
  %v2260 = vadd.f32 %v2117, %v2259
  %2261 = vdwg.mxu0
  %2262 = vmatpush.msra.mxu0 0.0
  %2263 = vmatpush.msra.mxu0 0.0
  %2264 = vmatpush.msra.mxu0 0.0
  %2265 = vmatpush.msra.mxu0 0.0
  %2266 = vmatpush.msra.mxu0 0.0
  %2267 = vmatpush.msra.mxu0 0.0
  %2268 = vmatpush.msra.mxu0 0.0
  %2269 = vmatpush.msra.mxu0 0.0
  %2270 = vmatpush.msra.mxu0 0.0
  %2271 = vmatpush.msra.mxu0 0.0
  %2272 = vmatpush.msra.mxu0 0.0
  %2273 = vmatpush.msra.mxu0 0.0
  %2274 = vmatpush.msra.mxu0 %v1966
  %2275 = vmatpush.msra.mxu0 %v1959
  %2276 = vmatpush.msra.mxu0 %v1952
  %2277 = vmatpush.msra.mxu0 %v1945
  %2278 = vmatmul.f32.gmra.mxu0 %v2140
  %v2279 = vpop.f32.mrf.mxu0
  %v2280 = vadd.f32 %v2137, %v2279
  %2281 = vdwg.mxu0
  %v2282 = vld [vmem:[#allocation4 + $0x4] sm:$0x3]
  %v2283 = vld [vmem:[%s9 + $0x1c0] sm:$0xff]
  %v2284 = vld [vmem:[%s9 + $0x1c8] sm:$0xff]
  %v2285 = vld [vmem:[%s9 + $0x1d0] sm:$0xff]
  %v2286 = vld [vmem:[%s9 + $0x1d8] sm:$0xff]
  %v2287 = vld [vmem:[%s9 + $0x1e0] sm:$0xff]
  %v2288 = vld [vmem:[%s9 + $0x1e8] sm:$0xff]
  %v2289 = vld [vmem:[%s9 + $0x1f0] sm:$0xff]
  %v2290 = vld [vmem:[%s9 + $0x1f8] sm:$0xff]
  %v2291 = vld [vmem:[%s9 + $0x200] sm:$0xff]
  %v2292 = vld [vmem:[%s9 + $0x208] sm:$0xff]
  %v2293 = vld [vmem:[%s9 + $0x210] sm:$0xff]
  %v2294 = vld [vmem:[%s9 + $0x218] sm:$0xff]
  %v2295 = vld [vmem:[%s9 + $0x220] sm:$0xff]
  %v2296 = vld [vmem:[%s9 + $0x228] sm:$0xff]
  %v2297 = vld [vmem:[%s9 + $0x230] sm:$0xff]
  %v2298 = vld [vmem:[%s9 + $0x238] sm:$0xff]
  %v2299 = vld [vmem:[%s9 + $0x240] sm:$0xff]
  %v2300 = vld [vmem:[%s9 + $0x248] sm:$0xff]
  %v2301 = vld [vmem:[%s9 + $0x250] sm:$0xff]
  %v2302 = vld [vmem:[%s9 + $0x258] sm:$0xff]
  %v2303 = vld [vmem:[%s9 + $0x260] sm:$0xff]
  %v2304 = vld [vmem:[%s9 + $0x268] sm:$0xff]
  %v2305 = vld [vmem:[%s9 + $0x270] sm:$0xff]
  %v2306 = vld [vmem:[%s9 + $0x278] sm:$0xff]
  %v2307 = vld [vmem:[%s9 + $0x280] sm:$0xff]
  %v2308 = vld [vmem:[%s9 + $0x288] sm:$0xff]
  %v2309 = vld [vmem:[%s9 + $0x290] sm:$0xff]
  %v2310 = vld [vmem:[%s9 + $0x298] sm:$0xff]
  %v2312 = vsel %vm1933, %v2282, 0
  %2314 = vmatpush.msra.mxu0 0.0
  %2315 = vmatpush.msra.mxu0 0.0
  %2316 = vmatpush.msra.mxu0 0.0
  %2317 = vmatpush.msra.mxu0 0.0
  %2318 = vmatpush.msra.mxu0 0.0
  %2319 = vmatpush.msra.mxu0 0.0
  %2320 = vmatpush.msra.mxu0 0.0
  %2321 = vmatpush.msra.mxu0 0.0
  %2322 = vmatpush.msra.mxu0 0.0
  %2323 = vmatpush.msra.mxu0 0.0
  %2324 = vmatpush.msra.mxu0 0.0
  %2325 = vmatpush.msra.mxu0 0.0
  %2326 = vmatpush.msra.mxu0 %v2304
  %2327 = vmatpush.msra.mxu0 %v2297
  %2328 = vmatpush.msra.mxu0 %v2290
  %2329 = vmatpush.msra.mxu0 %v2283
  %2330 = vmatmul.f32.gmra.mxu0 %v2312
  %v2331 = vpop.f32.mrf.mxu0
  %v2332 = vadd.f32 0.0, %v2331
  %2333 = vdwg.mxu0
  %2334 = vmatpush.msra.mxu0 0.0
  %2335 = vmatpush.msra.mxu0 0.0
  %2336 = vmatpush.msra.mxu0 0.0
  %2337 = vmatpush.msra.mxu0 0.0
  %2338 = vmatpush.msra.mxu0 0.0
  %2339 = vmatpush.msra.mxu0 0.0
  %2340 = vmatpush.msra.mxu0 0.0
  %2341 = vmatpush.msra.mxu0 0.0
  %2342 = vmatpush.msra.mxu0 0.0
  %2343 = vmatpush.msra.mxu0 0.0
  %2344 = vmatpush.msra.mxu0 0.0
  %2345 = vmatpush.msra.mxu0 0.0
  %2346 = vmatpush.msra.mxu0 %v2305
  %2347 = vmatpush.msra.mxu0 %v2298
  %2348 = vmatpush.msra.mxu0 %v2291
  %2349 = vmatpush.msra.mxu0 %v2284
  %2350 = vmatmul.f32.gmra.mxu0 %v2312
  %v2351 = vpop.f32.mrf.mxu0
  %v2352 = vadd.f32 0.0, %v2351
  %2353 = vdwg.mxu0
  %2354 = vmatpush.msra.mxu0 0.0
  %2355 = vmatpush.msra.mxu0 0.0
  %2356 = vmatpush.msra.mxu0 0.0
  %2357 = vmatpush.msra.mxu0 0.0
  %2358 = vmatpush.msra.mxu0 0.0
  %2359 = vmatpush.msra.mxu0 0.0
  %2360 = vmatpush.msra.mxu0 0.0
  %2361 = vmatpush.msra.mxu0 0.0
  %2362 = vmatpush.msra.mxu0 0.0
  %2363 = vmatpush.msra.mxu0 0.0
  %2364 = vmatpush.msra.mxu0 0.0
  %2365 = vmatpush.msra.mxu0 0.0
  %2366 = vmatpush.msra.mxu0 %v2306
  %2367 = vmatpush.msra.mxu0 %v2299
  %2368 = vmatpush.msra.mxu0 %v2292
  %2369 = vmatpush.msra.mxu0 %v2285
  %2370 = vmatmul.f32.gmra.mxu0 %v2312
  %v2371 = vpop.f32.mrf.mxu0
  %v2372 = vadd.f32 0.0, %v2371
  %2373 = vdwg.mxu0
  %2374 = vmatpush.msra.mxu0 0.0
  %2375 = vmatpush.msra.mxu0 0.0
  %2376 = vmatpush.msra.mxu0 0.0
  %2377 = vmatpush.msra.mxu0 0.0
  %2378 = vmatpush.msra.mxu0 0.0
  %2379 = vmatpush.msra.mxu0 0.0
  %2380 = vmatpush.msra.mxu0 0.0
  %2381 = vmatpush.msra.mxu0 0.0
  %2382 = vmatpush.msra.mxu0 0.0
  %2383 = vmatpush.msra.mxu0 0.0
  %2384 = vmatpush.msra.mxu0 0.0
  %2385 = vmatpush.msra.mxu0 0.0
  %2386 = vmatpush.msra.mxu0 %v2307
  %2387 = vmatpush.msra.mxu0 %v2300
  %2388 = vmatpush.msra.mxu0 %v2293
  %2389 = vmatpush.msra.mxu0 %v2286
  %2390 = vmatmul.f32.gmra.mxu0 %v2312
  %v2391 = vpop.f32.mrf.mxu0
  %v2392 = vadd.f32 0.0, %v2391
  %2393 = vdwg.mxu0
  %2394 = vmatpush.msra.mxu0 0.0
  %2395 = vmatpush.msra.mxu0 0.0
  %2396 = vmatpush.msra.mxu0 0.0
  %2397 = vmatpush.msra.mxu0 0.0
  %2398 = vmatpush.msra.mxu0 0.0
  %2399 = vmatpush.msra.mxu0 0.0
  %2400 = vmatpush.msra.mxu0 0.0
  %2401 = vmatpush.msra.mxu0 0.0
  %2402 = vmatpush.msra.mxu0 0.0
  %2403 = vmatpush.msra.mxu0 0.0
  %2404 = vmatpush.msra.mxu0 0.0
  %2405 = vmatpush.msra.mxu0 0.0
  %2406 = vmatpush.msra.mxu0 %v2308
  %2407 = vmatpush.msra.mxu0 %v2301
  %2408 = vmatpush.msra.mxu0 %v2294
  %2409 = vmatpush.msra.mxu0 %v2287
  %2410 = vmatmul.f32.gmra.mxu0 %v2312
  %v2411 = vpop.f32.mrf.mxu0
  %v2412 = vadd.f32 0.0, %v2411
  %2413 = vdwg.mxu0
  %2414 = vmatpush.msra.mxu0 0.0
  %2415 = vmatpush.msra.mxu0 0.0
  %2416 = vmatpush.msra.mxu0 0.0
  %2417 = vmatpush.msra.mxu0 0.0
  %2418 = vmatpush.msra.mxu0 0.0
  %2419 = vmatpush.msra.mxu0 0.0
  %2420 = vmatpush.msra.mxu0 0.0
  %2421 = vmatpush.msra.mxu0 0.0
  %2422 = vmatpush.msra.mxu0 0.0
  %2423 = vmatpush.msra.mxu0 0.0
  %2424 = vmatpush.msra.mxu0 0.0
  %2425 = vmatpush.msra.mxu0 0.0
  %2426 = vmatpush.msra.mxu0 %v2309
  %2427 = vmatpush.msra.mxu0 %v2302
  %2428 = vmatpush.msra.mxu0 %v2295
  %2429 = vmatpush.msra.mxu0 %v2288
  %2430 = vmatmul.f32.gmra.mxu0 %v2312
  %v2431 = vpop.f32.mrf.mxu0
  %v2432 = vadd.f32 0.0, %v2431
  %2433 = vdwg.mxu0
  %2434 = vmatpush.msra.mxu0 0.0
  %2435 = vmatpush.msra.mxu0 0.0
  %2436 = vmatpush.msra.mxu0 0.0
  %2437 = vmatpush.msra.mxu0 0.0
  %2438 = vmatpush.msra.mxu0 0.0
  %2439 = vmatpush.msra.mxu0 0.0
  %2440 = vmatpush.msra.mxu0 0.0
  %2441 = vmatpush.msra.mxu0 0.0
  %2442 = vmatpush.msra.mxu0 0.0
  %2443 = vmatpush.msra.mxu0 0.0
  %2444 = vmatpush.msra.mxu0 0.0
  %2445 = vmatpush.msra.mxu0 0.0
  %2446 = vmatpush.msra.mxu0 %v2310
  %2447 = vmatpush.msra.mxu0 %v2303
  %2448 = vmatpush.msra.mxu0 %v2296
  %2449 = vmatpush.msra.mxu0 %v2289
  %2450 = vmatmul.f32.gmra.mxu0 %v2312
  %v2451 = vpop.f32.mrf.mxu0
  %v2452 = vadd.f32 0.0, %v2451
  %2453 = vdwg.mxu0
  %v2454 = vadd.f32 %v2160, %v2332
  %v2455 = vadd.f32 %v2180, %v2352
  %v2456 = vadd.f32 %v2200, %v2372
  %v2457 = vadd.f32 %v2220, %v2392
  %v2458 = vadd.f32 %v2240, %v2412
  %v2459 = vadd.f32 %v2260, %v2432
  %v2460 = vadd.f32 %v2280, %v2452
  %v2461 = vld [vmem:[#allocation4 + $0x6] sm:$0x3]
  %v2462 = vld [vmem:[%s9 + $0x2a0] sm:$0xff]
  %v2463 = vld [vmem:[%s9 + $0x2a8] sm:$0xff]
  %v2464 = vld [vmem:[%s9 + $0x2b0] sm:$0xff]
  %v2465 = vld [vmem:[%s9 + $0x2b8] sm:$0xff]
  %v2466 = vld [vmem:[%s9 + $0x2c0] sm:$0xff]
  %v2467 = vld [vmem:[%s9 + $0x2c8] sm:$0xff]
  %v2468 = vld [vmem:[%s9 + $0x2d0] sm:$0xff]
  %v2469 = vld [vmem:[%s9 + $0x2d8] sm:$0xff]
  %v2470 = vld [vmem:[%s9 + $0x2e0] sm:$0xff]
  %v2471 = vld [vmem:[%s9 + $0x2e8] sm:$0xff]
  %v2472 = vld [vmem:[%s9 + $0x2f0] sm:$0xff]
  %v2473 = vld [vmem:[%s9 + $0x2f8] sm:$0xff]
  %v2474 = vld [vmem:[%s9 + $0x300] sm:$0xff]
  %v2475 = vld [vmem:[%s9 + $0x308] sm:$0xff]
  %v2476 = vld [vmem:[%s9 + $0x310] sm:$0xff]
  %v2477 = vld [vmem:[%s9 + $0x318] sm:$0xff]
  %v2478 = vld [vmem:[%s9 + $0x320] sm:$0xff]
  %v2479 = vld [vmem:[%s9 + $0x328] sm:$0xff]
  %v2480 = vld [vmem:[%s9 + $0x330] sm:$0xff]
  %v2481 = vld [vmem:[%s9 + $0x338] sm:$0xff]
  %v2482 = vld [vmem:[%s9 + $0x340] sm:$0xff]
  %v2483 = vld [vmem:[%s9 + $0x348] sm:$0xff]
  %v2484 = vld [vmem:[%s9 + $0x350] sm:$0xff]
  %v2485 = vld [vmem:[%s9 + $0x358] sm:$0xff]
  %v2486 = vld [vmem:[%s9 + $0x360] sm:$0xff]
  %v2487 = vld [vmem:[%s9 + $0x368] sm:$0xff]
  %v2488 = vld [vmem:[%s9 + $0x370] sm:$0xff]
  %v2489 = vld [vmem:[%s9 + $0x378] sm:$0xff]
  %v2491 = vsel %vm1933, %v2461, 0
  %2493 = vmatpush.msra.mxu0 0.0
  %2494 = vmatpush.msra.mxu0 0.0
  %2495 = vmatpush.msra.mxu0 0.0
  %2496 = vmatpush.msra.mxu0 0.0
  %2497 = vmatpush.msra.mxu0 0.0
  %2498 = vmatpush.msra.mxu0 0.0
  %2499 = vmatpush.msra.mxu0 0.0
  %2500 = vmatpush.msra.mxu0 0.0
  %2501 = vmatpush.msra.mxu0 0.0
  %2502 = vmatpush.msra.mxu0 0.0
  %2503 = vmatpush.msra.mxu0 0.0
  %2504 = vmatpush.msra.mxu0 0.0
  %2505 = vmatpush.msra.mxu0 %v2483
  %2506 = vmatpush.msra.mxu0 %v2476
  %2507 = vmatpush.msra.mxu0 %v2469
  %2508 = vmatpush.msra.mxu0 %v2462
  %2509 = vmatmul.f32.gmra.mxu0 %v2491
  %v2510 = vpop.f32.mrf.mxu0
  %v2511 = vadd.f32 0.0, %v2510
  %2512 = vdwg.mxu0
  %2513 = vmatpush.msra.mxu0 0.0
  %2514 = vmatpush.msra.mxu0 0.0
  %2515 = vmatpush.msra.mxu0 0.0
  %2516 = vmatpush.msra.mxu0 0.0
  %2517 = vmatpush.msra.mxu0 0.0
  %2518 = vmatpush.msra.mxu0 0.0
  %2519 = vmatpush.msra.mxu0 0.0
  %2520 = vmatpush.msra.mxu0 0.0
  %2521 = vmatpush.msra.mxu0 0.0
  %2522 = vmatpush.msra.mxu0 0.0
  %2523 = vmatpush.msra.mxu0 0.0
  %2524 = vmatpush.msra.mxu0 0.0
  %2525 = vmatpush.msra.mxu0 %v2484
  %2526 = vmatpush.msra.mxu0 %v2477
  %2527 = vmatpush.msra.mxu0 %v2470
  %2528 = vmatpush.msra.mxu0 %v2463
  %2529 = vmatmul.f32.gmra.mxu0 %v2491
  %v2530 = vpop.f32.mrf.mxu0
  %v2531 = vadd.f32 0.0, %v2530
  %2532 = vdwg.mxu0
  %2533 = vmatpush.msra.mxu0 0.0
  %2534 = vmatpush.msra.mxu0 0.0
  %2535 = vmatpush.msra.mxu0 0.0
  %2536 = vmatpush.msra.mxu0 0.0
  %2537 = vmatpush.msra.mxu0 0.0
  %2538 = vmatpush.msra.mxu0 0.0
  %2539 = vmatpush.msra.mxu0 0.0
  %2540 = vmatpush.msra.mxu0 0.0
  %2541 = vmatpush.msra.mxu0 0.0
  %2542 = vmatpush.msra.mxu0 0.0
  %2543 = vmatpush.msra.mxu0 0.0
  %2544 = vmatpush.msra.mxu0 0.0
  %2545 = vmatpush.msra.mxu0 %v2485
  %2546 = vmatpush.msra.mxu0 %v2478
  %2547 = vmatpush.msra.mxu0 %v2471
  %2548 = vmatpush.msra.mxu0 %v2464
  %2549 = vmatmul.f32.gmra.mxu0 %v2491
  %v2550 = vpop.f32.mrf.mxu0
  %v2551 = vadd.f32 0.0, %v2550
  %2552 = vdwg.mxu0
  %2553 = vmatpush.msra.mxu0 0.0
  %2554 = vmatpush.msra.mxu0 0.0
  %2555 = vmatpush.msra.mxu0 0.0
  %2556 = vmatpush.msra.mxu0 0.0
  %2557 = vmatpush.msra.mxu0 0.0
  %2558 = vmatpush.msra.mxu0 0.0
  %2559 = vmatpush.msra.mxu0 0.0
  %2560 = vmatpush.msra.mxu0 0.0
  %2561 = vmatpush.msra.mxu0 0.0
  %2562 = vmatpush.msra.mxu0 0.0
  %2563 = vmatpush.msra.mxu0 0.0
  %2564 = vmatpush.msra.mxu0 0.0
  %2565 = vmatpush.msra.mxu0 %v2486
  %2566 = vmatpush.msra.mxu0 %v2479
  %2567 = vmatpush.msra.mxu0 %v2472
  %2568 = vmatpush.msra.mxu0 %v2465
  %2569 = vmatmul.f32.gmra.mxu0 %v2491
  %v2570 = vpop.f32.mrf.mxu0
  %v2571 = vadd.f32 0.0, %v2570
  %2572 = vdwg.mxu0
  %2573 = vmatpush.msra.mxu0 0.0
  %2574 = vmatpush.msra.mxu0 0.0
  %2575 = vmatpush.msra.mxu0 0.0
  %2576 = vmatpush.msra.mxu0 0.0
  %2577 = vmatpush.msra.mxu0 0.0
  %2578 = vmatpush.msra.mxu0 0.0
  %2579 = vmatpush.msra.mxu0 0.0
  %2580 = vmatpush.msra.mxu0 0.0
  %2581 = vmatpush.msra.mxu0 0.0
  %2582 = vmatpush.msra.mxu0 0.0
  %2583 = vmatpush.msra.mxu0 0.0
  %2584 = vmatpush.msra.mxu0 0.0
  %2585 = vmatpush.msra.mxu0 %v2487
  %2586 = vmatpush.msra.mxu0 %v2480
  %2587 = vmatpush.msra.mxu0 %v2473
  %2588 = vmatpush.msra.mxu0 %v2466
  %2589 = vmatmul.f32.gmra.mxu0 %v2491
  %v2590 = vpop.f32.mrf.mxu0
  %v2591 = vadd.f32 0.0, %v2590
  %2592 = vdwg.mxu0
  %2593 = vmatpush.msra.mxu0 0.0
  %2594 = vmatpush.msra.mxu0 0.0
  %2595 = vmatpush.msra.mxu0 0.0
  %2596 = vmatpush.msra.mxu0 0.0
  %2597 = vmatpush.msra.mxu0 0.0
  %2598 = vmatpush.msra.mxu0 0.0
  %2599 = vmatpush.msra.mxu0 0.0
  %2600 = vmatpush.msra.mxu0 0.0
  %2601 = vmatpush.msra.mxu0 0.0
  %2602 = vmatpush.msra.mxu0 0.0
  %2603 = vmatpush.msra.mxu0 0.0
  %2604 = vmatpush.msra.mxu0 0.0
  %2605 = vmatpush.msra.mxu0 %v2488
  %2606 = vmatpush.msra.mxu0 %v2481
  %2607 = vmatpush.msra.mxu0 %v2474
  %2608 = vmatpush.msra.mxu0 %v2467
  %2609 = vmatmul.f32.gmra.mxu0 %v2491
  %v2610 = vpop.f32.mrf.mxu0
  %v2611 = vadd.f32 0.0, %v2610
  %2612 = vdwg.mxu0
  %2613 = vmatpush.msra.mxu0 0.0
  %2614 = vmatpush.msra.mxu0 0.0
  %2615 = vmatpush.msra.mxu0 0.0
  %2616 = vmatpush.msra.mxu0 0.0
  %2617 = vmatpush.msra.mxu0 0.0
  %2618 = vmatpush.msra.mxu0 0.0
  %2619 = vmatpush.msra.mxu0 0.0
  %2620 = vmatpush.msra.mxu0 0.0
  %2621 = vmatpush.msra.mxu0 0.0
  %2622 = vmatpush.msra.mxu0 0.0
  %2623 = vmatpush.msra.mxu0 0.0
  %2624 = vmatpush.msra.mxu0 0.0
  %2625 = vmatpush.msra.mxu0 %v2489
  %2626 = vmatpush.msra.mxu0 %v2482
  %2627 = vmatpush.msra.mxu0 %v2475
  %2628 = vmatpush.msra.mxu0 %v2468
  %2629 = vmatmul.f32.gmra.mxu0 %v2491
  %v2630 = vpop.f32.mrf.mxu0
  %v2631 = vadd.f32 0.0, %v2630
  %2632 = vdwg.mxu0
  %v2633 = vadd.f32 %v2454, %v2511
  %v2634 = vadd.f32 %v2455, %v2531
  %v2635 = vadd.f32 %v2456, %v2551
  %v2636 = vadd.f32 %v2457, %v2571
  %v2637 = vadd.f32 %v2458, %v2591
  %v2638 = vadd.f32 %v2459, %v2611
  %v2639 = vadd.f32 %v2460, %v2631
  %v2640 = vld [vmem:[#allocation4 + $0x8] sm:$0x3]
  %v2641 = vld [vmem:[%s9 + $0x380] sm:$0xff]
  %v2642 = vld [vmem:[%s9 + $0x388] sm:$0xff]
  %v2643 = vld [vmem:[%s9 + $0x390] sm:$0xff]
  %v2644 = vld [vmem:[%s9 + $0x398] sm:$0xff]
  %v2645 = vld [vmem:[%s9 + $0x3a0] sm:$0xff]
  %v2646 = vld [vmem:[%s9 + $0x3a8] sm:$0xff]
  %v2647 = vld [vmem:[%s9 + $0x3b0] sm:$0xff]
  %v2648 = vld [vmem:[%s9 + $0x3b8] sm:$0xff]
  %v2649 = vld [vmem:[%s9 + $0x3c0] sm:$0xff]
  %v2650 = vld [vmem:[%s9 + $0x3c8] sm:$0xff]
  %v2651 = vld [vmem:[%s9 + $0x3d0] sm:$0xff]
  %v2652 = vld [vmem:[%s9 + $0x3d8] sm:$0xff]
  %v2653 = vld [vmem:[%s9 + $0x3e0] sm:$0xff]
  %v2654 = vld [vmem:[%s9 + $0x3e8] sm:$0xff]
  %v2655 = vld [vmem:[%s9 + $0x3f0] sm:$0xff]
  %v2656 = vld [vmem:[%s9 + $0x3f8] sm:$0xff]
  %v2657 = vld [vmem:[%s9 + $0x400] sm:$0xff]
  %v2658 = vld [vmem:[%s9 + $0x408] sm:$0xff]
  %v2659 = vld [vmem:[%s9 + $0x410] sm:$0xff]
  %v2660 = vld [vmem:[%s9 + $0x418] sm:$0xff]
  %v2661 = vld [vmem:[%s9 + $0x420] sm:$0xff]
  %v2662 = vld [vmem:[%s9 + $0x428] sm:$0xff]
  %v2663 = vld [vmem:[%s9 + $0x430] sm:$0xff]
  %v2664 = vld [vmem:[%s9 + $0x438] sm:$0xff]
  %v2665 = vld [vmem:[%s9 + $0x440] sm:$0xff]
  %v2666 = vld [vmem:[%s9 + $0x448] sm:$0xff]
  %v2667 = vld [vmem:[%s9 + $0x450] sm:$0xff]
  %v2668 = vld [vmem:[%s9 + $0x458] sm:$0xff]
  %v2670 = vsel %vm1933, %v2640, 0
  %2672 = vmatpush.msra.mxu0 0.0
  %2673 = vmatpush.msra.mxu0 0.0
  %2674 = vmatpush.msra.mxu0 0.0
  %2675 = vmatpush.msra.mxu0 0.0
  %2676 = vmatpush.msra.mxu0 0.0
  %2677 = vmatpush.msra.mxu0 0.0
  %2678 = vmatpush.msra.mxu0 0.0
  %2679 = vmatpush.msra.mxu0 0.0
  %2680 = vmatpush.msra.mxu0 0.0
  %2681 = vmatpush.msra.mxu0 0.0
  %2682 = vmatpush.msra.mxu0 0.0
  %2683 = vmatpush.msra.mxu0 0.0
  %2684 = vmatpush.msra.mxu0 %v2662
  %2685 = vmatpush.msra.mxu0 %v2655
  %2686 = vmatpush.msra.mxu0 %v2648
  %2687 = vmatpush.msra.mxu0 %v2641
  %2688 = vmatmul.f32.gmra.mxu0 %v2670
  %v2689 = vpop.f32.mrf.mxu0
  %v2690 = vadd.f32 0.0, %v2689
  %2691 = vdwg.mxu0
  %2692 = vmatpush.msra.mxu0 0.0
  %2693 = vmatpush.msra.mxu0 0.0
  %2694 = vmatpush.msra.mxu0 0.0
  %2695 = vmatpush.msra.mxu0 0.0
  %2696 = vmatpush.msra.mxu0 0.0
  %2697 = vmatpush.msra.mxu0 0.0
  %2698 = vmatpush.msra.mxu0 0.0
  %2699 = vmatpush.msra.mxu0 0.0
  %2700 = vmatpush.msra.mxu0 0.0
  %2701 = vmatpush.msra.mxu0 0.0
  %2702 = vmatpush.msra.mxu0 0.0
  %2703 = vmatpush.msra.mxu0 0.0
  %2704 = vmatpush.msra.mxu0 %v2663
  %2705 = vmatpush.msra.mxu0 %v2656
  %2706 = vmatpush.msra.mxu0 %v2649
  %2707 = vmatpush.msra.mxu0 %v2642
  %2708 = vmatmul.f32.gmra.mxu0 %v2670
  %v2709 = vpop.f32.mrf.mxu0
  %v2710 = vadd.f32 0.0, %v2709
  %2711 = vdwg.mxu0
  %2712 = vmatpush.msra.mxu0 0.0
  %2713 = vmatpush.msra.mxu0 0.0
  %2714 = vmatpush.msra.mxu0 0.0
  %2715 = vmatpush.msra.mxu0 0.0
  %2716 = vmatpush.msra.mxu0 0.0
  %2717 = vmatpush.msra.mxu0 0.0
  %2718 = vmatpush.msra.mxu0 0.0
  %2719 = vmatpush.msra.mxu0 0.0
  %2720 = vmatpush.msra.mxu0 0.0
  %2721 = vmatpush.msra.mxu0 0.0
  %2722 = vmatpush.msra.mxu0 0.0
  %2723 = vmatpush.msra.mxu0 0.0
  %2724 = vmatpush.msra.mxu0 %v2664
  %2725 = vmatpush.msra.mxu0 %v2657
  %2726 = vmatpush.msra.mxu0 %v2650
  %2727 = vmatpush.msra.mxu0 %v2643
  %2728 = vmatmul.f32.gmra.mxu0 %v2670
  %v2729 = vpop.f32.mrf.mxu0
  %v2730 = vadd.f32 0.0, %v2729
  %2731 = vdwg.mxu0
  %2732 = vmatpush.msra.mxu0 0.0
  %2733 = vmatpush.msra.mxu0 0.0
  %2734 = vmatpush.msra.mxu0 0.0
  %2735 = vmatpush.msra.mxu0 0.0
  %2736 = vmatpush.msra.mxu0 0.0
  %2737 = vmatpush.msra.mxu0 0.0
  %2738 = vmatpush.msra.mxu0 0.0
  %2739 = vmatpush.msra.mxu0 0.0
  %2740 = vmatpush.msra.mxu0 0.0
  %2741 = vmatpush.msra.mxu0 0.0
  %2742 = vmatpush.msra.mxu0 0.0
  %2743 = vmatpush.msra.mxu0 0.0
  %2744 = vmatpush.msra.mxu0 %v2665
  %2745 = vmatpush.msra.mxu0 %v2658
  %2746 = vmatpush.msra.mxu0 %v2651
  %2747 = vmatpush.msra.mxu0 %v2644
  %2748 = vmatmul.f32.gmra.mxu0 %v2670
  %v2749 = vpop.f32.mrf.mxu0
  %v2750 = vadd.f32 0.0, %v2749
  %2751 = vdwg.mxu0
  %2752 = vmatpush.msra.mxu0 0.0
  %2753 = vmatpush.msra.mxu0 0.0
  %2754 = vmatpush.msra.mxu0 0.0
  %2755 = vmatpush.msra.mxu0 0.0
  %2756 = vmatpush.msra.mxu0 0.0
  %2757 = vmatpush.msra.mxu0 0.0
  %2758 = vmatpush.msra.mxu0 0.0
  %2759 = vmatpush.msra.mxu0 0.0
  %2760 = vmatpush.msra.mxu0 0.0
  %2761 = vmatpush.msra.mxu0 0.0
  %2762 = vmatpush.msra.mxu0 0.0
  %2763 = vmatpush.msra.mxu0 0.0
  %2764 = vmatpush.msra.mxu0 %v2666
  %2765 = vmatpush.msra.mxu0 %v2659
  %2766 = vmatpush.msra.mxu0 %v2652
  %2767 = vmatpush.msra.mxu0 %v2645
  %2768 = vmatmul.f32.gmra.mxu0 %v2670
  %v2769 = vpop.f32.mrf.mxu0
  %v2770 = vadd.f32 0.0, %v2769
  %2771 = vdwg.mxu0
  %2772 = vmatpush.msra.mxu0 0.0
  %2773 = vmatpush.msra.mxu0 0.0
  %2774 = vmatpush.msra.mxu0 0.0
  %2775 = vmatpush.msra.mxu0 0.0
  %2776 = vmatpush.msra.mxu0 0.0
  %2777 = vmatpush.msra.mxu0 0.0
  %2778 = vmatpush.msra.mxu0 0.0
  %2779 = vmatpush.msra.mxu0 0.0
  %2780 = vmatpush.msra.mxu0 0.0
  %2781 = vmatpush.msra.mxu0 0.0
  %2782 = vmatpush.msra.mxu0 0.0
  %2783 = vmatpush.msra.mxu0 0.0
  %2784 = vmatpush.msra.mxu0 %v2667
  %2785 = vmatpush.msra.mxu0 %v2660
  %2786 = vmatpush.msra.mxu0 %v2653
  %2787 = vmatpush.msra.mxu0 %v2646
  %2788 = vmatmul.f32.gmra.mxu0 %v2670
  %v2789 = vpop.f32.mrf.mxu0
  %v2790 = vadd.f32 0.0, %v2789
  %2791 = vdwg.mxu0
  %2792 = vmatpush.msra.mxu0 0.0
  %2793 = vmatpush.msra.mxu0 0.0
  %2794 = vmatpush.msra.mxu0 0.0
  %2795 = vmatpush.msra.mxu0 0.0
  %2796 = vmatpush.msra.mxu0 0.0
  %2797 = vmatpush.msra.mxu0 0.0
  %2798 = vmatpush.msra.mxu0 0.0
  %2799 = vmatpush.msra.mxu0 0.0
  %2800 = vmatpush.msra.mxu0 0.0
  %2801 = vmatpush.msra.mxu0 0.0
  %2802 = vmatpush.msra.mxu0 0.0
  %2803 = vmatpush.msra.mxu0 0.0
  %2804 = vmatpush.msra.mxu0 %v2668
  %2805 = vmatpush.msra.mxu0 %v2661
  %2806 = vmatpush.msra.mxu0 %v2654
  %2807 = vmatpush.msra.mxu0 %v2647
  %2808 = vmatmul.f32.gmra.mxu0 %v2670
  %v2809 = vpop.f32.mrf.mxu0
  %v2810 = vadd.f32 0.0, %v2809
  %2811 = vdwg.mxu0
  %v2812 = vadd.f32 %v2633, %v2690
  %v2813 = vadd.f32 %v2634, %v2710
  %v2814 = vadd.f32 %v2635, %v2730
  %v2815 = vadd.f32 %v2636, %v2750
  %v2816 = vadd.f32 %v2637, %v2770
  %v2817 = vadd.f32 %v2638, %v2790
  %v2818 = vadd.f32 %v2639, %v2810
  %v2819 = vld [vmem:[#allocation4 + $0xa] sm:$0x3]
  %v2820 = vld [vmem:[%s9 + $0x460] sm:$0xff]
  %v2821 = vld [vmem:[%s9 + $0x468] sm:$0xff]
  %v2822 = vld [vmem:[%s9 + $0x470] sm:$0xff]
  %v2823 = vld [vmem:[%s9 + $0x478] sm:$0xff]
  %v2824 = vld [vmem:[%s9 + $0x480] sm:$0xff]
  %v2825 = vld [vmem:[%s9 + $0x488] sm:$0xff]
  %v2826 = vld [vmem:[%s9 + $0x490] sm:$0xff]
  %v2827 = vld [vmem:[%s9 + $0x498] sm:$0xff]
  %v2828 = vld [vmem:[%s9 + $0x4a0] sm:$0xff]
  %v2829 = vld [vmem:[%s9 + $0x4a8] sm:$0xff]
  %v2830 = vld [vmem:[%s9 + $0x4b0] sm:$0xff]
  %v2831 = vld [vmem:[%s9 + $0x4b8] sm:$0xff]
  %v2832 = vld [vmem:[%s9 + $0x4c0] sm:$0xff]
  %v2833 = vld [vmem:[%s9 + $0x4c8] sm:$0xff]
  %v2834 = vld [vmem:[%s9 + $0x4d0] sm:$0xff]
  %v2835 = vld [vmem:[%s9 + $0x4d8] sm:$0xff]
  %v2836 = vld [vmem:[%s9 + $0x4e0] sm:$0xff]
  %v2837 = vld [vmem:[%s9 + $0x4e8] sm:$0xff]
  %v2838 = vld [vmem:[%s9 + $0x4f0] sm:$0xff]
  %v2839 = vld [vmem:[%s9 + $0x4f8] sm:$0xff]
  %v2840 = vld [vmem:[%s9 + $0x500] sm:$0xff]
  %v2841 = vld [vmem:[%s9 + $0x508] sm:$0xff]
  %v2842 = vld [vmem:[%s9 + $0x510] sm:$0xff]
  %v2843 = vld [vmem:[%s9 + $0x518] sm:$0xff]
  %v2844 = vld [vmem:[%s9 + $0x520] sm:$0xff]
  %v2845 = vld [vmem:[%s9 + $0x528] sm:$0xff]
  %v2846 = vld [vmem:[%s9 + $0x530] sm:$0xff]
  %v2847 = vld [vmem:[%s9 + $0x538] sm:$0xff]
  %v2849 = vsel %vm1933, %v2819, 0
  %2851 = vmatpush.msra.mxu0 0.0
  %2852 = vmatpush.msra.mxu0 0.0
  %2853 = vmatpush.msra.mxu0 0.0
  %2854 = vmatpush.msra.mxu0 0.0
  %2855 = vmatpush.msra.mxu0 0.0
  %2856 = vmatpush.msra.mxu0 0.0
  %2857 = vmatpush.msra.mxu0 0.0
  %2858 = vmatpush.msra.mxu0 0.0
  %2859 = vmatpush.msra.mxu0 0.0
  %2860 = vmatpush.msra.mxu0 0.0
  %2861 = vmatpush.msra.mxu0 0.0
  %2862 = vmatpush.msra.mxu0 0.0
  %2863 = vmatpush.msra.mxu0 %v2841
  %2864 = vmatpush.msra.mxu0 %v2834
  %2865 = vmatpush.msra.mxu0 %v2827
  %2866 = vmatpush.msra.mxu0 %v2820
  %2867 = vmatmul.f32.gmra.mxu0 %v2849
  %v2868 = vpop.f32.mrf.mxu0
  %v2869 = vadd.f32 0.0, %v2868
  %2870 = vdwg.mxu0
  %2871 = vmatpush.msra.mxu0 0.0
  %2872 = vmatpush.msra.mxu0 0.0
  %2873 = vmatpush.msra.mxu0 0.0
  %2874 = vmatpush.msra.mxu0 0.0
  %2875 = vmatpush.msra.mxu0 0.0
  %2876 = vmatpush.msra.mxu0 0.0
  %2877 = vmatpush.msra.mxu0 0.0
  %2878 = vmatpush.msra.mxu0 0.0
  %2879 = vmatpush.msra.mxu0 0.0
  %2880 = vmatpush.msra.mxu0 0.0
  %2881 = vmatpush.msra.mxu0 0.0
  %2882 = vmatpush.msra.mxu0 0.0
  %2883 = vmatpush.msra.mxu0 %v2842
  %2884 = vmatpush.msra.mxu0 %v2835
  %2885 = vmatpush.msra.mxu0 %v2828
  %2886 = vmatpush.msra.mxu0 %v2821
  %2887 = vmatmul.f32.gmra.mxu0 %v2849
  %v2888 = vpop.f32.mrf.mxu0
  %v2889 = vadd.f32 0.0, %v2888
  %2890 = vdwg.mxu0
  %2891 = vmatpush.msra.mxu0 0.0
  %2892 = vmatpush.msra.mxu0 0.0
  %2893 = vmatpush.msra.mxu0 0.0
  %2894 = vmatpush.msra.mxu0 0.0
  %2895 = vmatpush.msra.mxu0 0.0
  %2896 = vmatpush.msra.mxu0 0.0
  %2897 = vmatpush.msra.mxu0 0.0
  %2898 = vmatpush.msra.mxu0 0.0
  %2899 = vmatpush.msra.mxu0 0.0
  %2900 = vmatpush.msra.mxu0 0.0
  %2901 = vmatpush.msra.mxu0 0.0
  %2902 = vmatpush.msra.mxu0 0.0
  %2903 = vmatpush.msra.mxu0 %v2843
  %2904 = vmatpush.msra.mxu0 %v2836
  %2905 = vmatpush.msra.mxu0 %v2829
  %2906 = vmatpush.msra.mxu0 %v2822
  %2907 = vmatmul.f32.gmra.mxu0 %v2849
  %v2908 = vpop.f32.mrf.mxu0
  %v2909 = vadd.f32 0.0, %v2908
  %2910 = vdwg.mxu0
  %2911 = vmatpush.msra.mxu0 0.0
  %2912 = vmatpush.msra.mxu0 0.0
  %2913 = vmatpush.msra.mxu0 0.0
  %2914 = vmatpush.msra.mxu0 0.0
  %2915 = vmatpush.msra.mxu0 0.0
  %2916 = vmatpush.msra.mxu0 0.0
  %2917 = vmatpush.msra.mxu0 0.0
  %2918 = vmatpush.msra.mxu0 0.0
  %2919 = vmatpush.msra.mxu0 0.0
  %2920 = vmatpush.msra.mxu0 0.0
  %2921 = vmatpush.msra.mxu0 0.0
  %2922 = vmatpush.msra.mxu0 0.0
  %2923 = vmatpush.msra.mxu0 %v2844
  %2924 = vmatpush.msra.mxu0 %v2837
  %2925 = vmatpush.msra.mxu0 %v2830
  %2926 = vmatpush.msra.mxu0 %v2823
  %2927 = vmatmul.f32.gmra.mxu0 %v2849
  %v2928 = vpop.f32.mrf.mxu0
  %v2929 = vadd.f32 0.0, %v2928
  %2930 = vdwg.mxu0
  %2931 = vmatpush.msra.mxu0 0.0
  %2932 = vmatpush.msra.mxu0 0.0
  %2933 = vmatpush.msra.mxu0 0.0
  %2934 = vmatpush.msra.mxu0 0.0
  %2935 = vmatpush.msra.mxu0 0.0
  %2936 = vmatpush.msra.mxu0 0.0
  %2937 = vmatpush.msra.mxu0 0.0
  %2938 = vmatpush.msra.mxu0 0.0
  %2939 = vmatpush.msra.mxu0 0.0
  %2940 = vmatpush.msra.mxu0 0.0
  %2941 = vmatpush.msra.mxu0 0.0
  %2942 = vmatpush.msra.mxu0 0.0
  %2943 = vmatpush.msra.mxu0 %v2845
  %2944 = vmatpush.msra.mxu0 %v2838
  %2945 = vmatpush.msra.mxu0 %v2831
  %2946 = vmatpush.msra.mxu0 %v2824
  %2947 = vmatmul.f32.gmra.mxu0 %v2849
  %v2948 = vpop.f32.mrf.mxu0
  %v2949 = vadd.f32 0.0, %v2948
  %2950 = vdwg.mxu0
  %2951 = vmatpush.msra.mxu0 0.0
  %2952 = vmatpush.msra.mxu0 0.0
  %2953 = vmatpush.msra.mxu0 0.0
  %2954 = vmatpush.msra.mxu0 0.0
  %2955 = vmatpush.msra.mxu0 0.0
  %2956 = vmatpush.msra.mxu0 0.0
  %2957 = vmatpush.msra.mxu0 0.0
  %2958 = vmatpush.msra.mxu0 0.0
  %2959 = vmatpush.msra.mxu0 0.0
  %2960 = vmatpush.msra.mxu0 0.0
  %2961 = vmatpush.msra.mxu0 0.0
  %2962 = vmatpush.msra.mxu0 0.0
  %2963 = vmatpush.msra.mxu0 %v2846
  %2964 = vmatpush.msra.mxu0 %v2839
  %2965 = vmatpush.msra.mxu0 %v2832
  %2966 = vmatpush.msra.mxu0 %v2825
  %2967 = vmatmul.f32.gmra.mxu0 %v2849
  %v2968 = vpop.f32.mrf.mxu0
  %v2969 = vadd.f32 0.0, %v2968
  %2970 = vdwg.mxu0
  %2971 = vmatpush.msra.mxu0 0.0
  %2972 = vmatpush.msra.mxu0 0.0
  %2973 = vmatpush.msra.mxu0 0.0
  %2974 = vmatpush.msra.mxu0 0.0
  %2975 = vmatpush.msra.mxu0 0.0
  %2976 = vmatpush.msra.mxu0 0.0
  %2977 = vmatpush.msra.mxu0 0.0
  %2978 = vmatpush.msra.mxu0 0.0
  %2979 = vmatpush.msra.mxu0 0.0
  %2980 = vmatpush.msra.mxu0 0.0
  %2981 = vmatpush.msra.mxu0 0.0
  %2982 = vmatpush.msra.mxu0 0.0
  %2983 = vmatpush.msra.mxu0 %v2847
  %2984 = vmatpush.msra.mxu0 %v2840
  %2985 = vmatpush.msra.mxu0 %v2833
  %2986 = vmatpush.msra.mxu0 %v2826
  %2987 = vmatmul.f32.gmra.mxu0 %v2849
  %v2988 = vpop.f32.mrf.mxu0
  %v2989 = vadd.f32 0.0, %v2988
  %2990 = vdwg.mxu0
  %v2991 = vadd.f32 %v2812, %v2869
  %v2992 = vadd.f32 %v2813, %v2889
  %v2993 = vadd.f32 %v2814, %v2909
  %v2994 = vadd.f32 %v2815, %v2929
  %v2995 = vadd.f32 %v2816, %v2949
  %v2996 = vadd.f32 %v2817, %v2969
  %v2997 = vadd.f32 %v2818, %v2989
  %v2998 = vld [vmem:[#allocation4 + $0xc] sm:$0x3]
  %v2999 = vld [vmem:[%s9 + $0x540] sm:$0xff]
  %v3000 = vld [vmem:[%s9 + $0x548] sm:$0xff]
  %v3001 = vld [vmem:[%s9 + $0x550] sm:$0xff]
  %v3002 = vld [vmem:[%s9 + $0x558] sm:$0xff]
  %v3003 = vld [vmem:[%s9 + $0x560] sm:$0xff]
  %v3004 = vld [vmem:[%s9 + $0x568] sm:$0xff]
  %v3005 = vld [vmem:[%s9 + $0x570] sm:$0xff]
  %v3006 = vld [vmem:[%s9 + $0x578] sm:$0xff]
  %v3007 = vld [vmem:[%s9 + $0x580] sm:$0xff]
  %v3008 = vld [vmem:[%s9 + $0x588] sm:$0xff]
  %v3009 = vld [vmem:[%s9 + $0x590] sm:$0xff]
  %v3010 = vld [vmem:[%s9 + $0x598] sm:$0xff]
  %v3011 = vld [vmem:[%s9 + $0x5a0] sm:$0xff]
  %v3012 = vld [vmem:[%s9 + $0x5a8] sm:$0xff]
  %v3013 = vld [vmem:[%s9 + $0x5b0] sm:$0xff]
  %v3014 = vld [vmem:[%s9 + $0x5b8] sm:$0xff]
  %v3015 = vld [vmem:[%s9 + $0x5c0] sm:$0xff]
  %v3016 = vld [vmem:[%s9 + $0x5c8] sm:$0xff]
  %v3017 = vld [vmem:[%s9 + $0x5d0] sm:$0xff]
  %v3018 = vld [vmem:[%s9 + $0x5d8] sm:$0xff]
  %v3019 = vld [vmem:[%s9 + $0x5e0] sm:$0xff]
  %v3020 = vld [vmem:[%s9 + $0x5e8] sm:$0xff]
  %v3021 = vld [vmem:[%s9 + $0x5f0] sm:$0xff]
  %v3022 = vld [vmem:[%s9 + $0x5f8] sm:$0xff]
  %v3023 = vld [vmem:[%s9 + $0x600] sm:$0xff]
  %v3024 = vld [vmem:[%s9 + $0x608] sm:$0xff]
  %v3025 = vld [vmem:[%s9 + $0x610] sm:$0xff]
  %v3026 = vld [vmem:[%s9 + $0x618] sm:$0xff]
  %v3028 = vsel %vm1933, %v2998, 0
  %3030 = vmatpush.msra.mxu0 0.0
  %3031 = vmatpush.msra.mxu0 0.0
  %3032 = vmatpush.msra.mxu0 0.0
  %3033 = vmatpush.msra.mxu0 0.0
  %3034 = vmatpush.msra.mxu0 0.0
  %3035 = vmatpush.msra.mxu0 0.0
  %3036 = vmatpush.msra.mxu0 0.0
  %3037 = vmatpush.msra.mxu0 0.0
  %3038 = vmatpush.msra.mxu0 0.0
  %3039 = vmatpush.msra.mxu0 0.0
  %3040 = vmatpush.msra.mxu0 0.0
  %3041 = vmatpush.msra.mxu0 0.0
  %3042 = vmatpush.msra.mxu0 %v3020
  %3043 = vmatpush.msra.mxu0 %v3013
  %3044 = vmatpush.msra.mxu0 %v3006
  %3045 = vmatpush.msra.mxu0 %v2999
  %3046 = vmatmul.f32.gmra.mxu0 %v3028
  %v3047 = vpop.f32.mrf.mxu0
  %v3048 = vadd.f32 0.0, %v3047
  %3049 = vdwg.mxu0
  %3050 = vmatpush.msra.mxu0 0.0
  %3051 = vmatpush.msra.mxu0 0.0
  %3052 = vmatpush.msra.mxu0 0.0
  %3053 = vmatpush.msra.mxu0 0.0
  %3054 = vmatpush.msra.mxu0 0.0
  %3055 = vmatpush.msra.mxu0 0.0
  %3056 = vmatpush.msra.mxu0 0.0
  %3057 = vmatpush.msra.mxu0 0.0
  %3058 = vmatpush.msra.mxu0 0.0
  %3059 = vmatpush.msra.mxu0 0.0
  %3060 = vmatpush.msra.mxu0 0.0
  %3061 = vmatpush.msra.mxu0 0.0
  %3062 = vmatpush.msra.mxu0 %v3021
  %3063 = vmatpush.msra.mxu0 %v3014
  %3064 = vmatpush.msra.mxu0 %v3007
  %3065 = vmatpush.msra.mxu0 %v3000
  %3066 = vmatmul.f32.gmra.mxu0 %v3028
  %v3067 = vpop.f32.mrf.mxu0
  %v3068 = vadd.f32 0.0, %v3067
  %3069 = vdwg.mxu0
  %3070 = vmatpush.msra.mxu0 0.0
  %3071 = vmatpush.msra.mxu0 0.0
  %3072 = vmatpush.msra.mxu0 0.0
  %3073 = vmatpush.msra.mxu0 0.0
  %3074 = vmatpush.msra.mxu0 0.0
  %3075 = vmatpush.msra.mxu0 0.0
  %3076 = vmatpush.msra.mxu0 0.0
  %3077 = vmatpush.msra.mxu0 0.0
  %3078 = vmatpush.msra.mxu0 0.0
  %3079 = vmatpush.msra.mxu0 0.0
  %3080 = vmatpush.msra.mxu0 0.0
  %3081 = vmatpush.msra.mxu0 0.0
  %3082 = vmatpush.msra.mxu0 %v3022
  %3083 = vmatpush.msra.mxu0 %v3015
  %3084 = vmatpush.msra.mxu0 %v3008
  %3085 = vmatpush.msra.mxu0 %v3001
  %3086 = vmatmul.f32.gmra.mxu0 %v3028
  %v3087 = vpop.f32.mrf.mxu0
  %v3088 = vadd.f32 0.0, %v3087
  %3089 = vdwg.mxu0
  %3090 = vmatpush.msra.mxu0 0.0
  %3091 = vmatpush.msra.mxu0 0.0
  %3092 = vmatpush.msra.mxu0 0.0
  %3093 = vmatpush.msra.mxu0 0.0
  %3094 = vmatpush.msra.mxu0 0.0
  %3095 = vmatpush.msra.mxu0 0.0
  %3096 = vmatpush.msra.mxu0 0.0
  %3097 = vmatpush.msra.mxu0 0.0
  %3098 = vmatpush.msra.mxu0 0.0
  %3099 = vmatpush.msra.mxu0 0.0
  %3100 = vmatpush.msra.mxu0 0.0
  %3101 = vmatpush.msra.mxu0 0.0
  %3102 = vmatpush.msra.mxu0 %v3023
  %3103 = vmatpush.msra.mxu0 %v3016
  %3104 = vmatpush.msra.mxu0 %v3009
  %3105 = vmatpush.msra.mxu0 %v3002
  %3106 = vmatmul.f32.gmra.mxu0 %v3028
  %v3107 = vpop.f32.mrf.mxu0
  %v3108 = vadd.f32 0.0, %v3107
  %3109 = vdwg.mxu0
  %3110 = vmatpush.msra.mxu0 0.0
  %3111 = vmatpush.msra.mxu0 0.0
  %3112 = vmatpush.msra.mxu0 0.0
  %3113 = vmatpush.msra.mxu0 0.0
  %3114 = vmatpush.msra.mxu0 0.0
  %3115 = vmatpush.msra.mxu0 0.0
  %3116 = vmatpush.msra.mxu0 0.0
  %3117 = vmatpush.msra.mxu0 0.0
  %3118 = vmatpush.msra.mxu0 0.0
  %3119 = vmatpush.msra.mxu0 0.0
  %3120 = vmatpush.msra.mxu0 0.0
  %3121 = vmatpush.msra.mxu0 0.0
  %3122 = vmatpush.msra.mxu0 %v3024
  %3123 = vmatpush.msra.mxu0 %v3017
  %3124 = vmatpush.msra.mxu0 %v3010
  %3125 = vmatpush.msra.mxu0 %v3003
  %3126 = vmatmul.f32.gmra.mxu0 %v3028
  %v3127 = vpop.f32.mrf.mxu0
  %v3128 = vadd.f32 0.0, %v3127
  %3129 = vdwg.mxu0
  %3130 = vmatpush.msra.mxu0 0.0
  %3131 = vmatpush.msra.mxu0 0.0
  %3132 = vmatpush.msra.mxu0 0.0
  %3133 = vmatpush.msra.mxu0 0.0
  %3134 = vmatpush.msra.mxu0 0.0
  %3135 = vmatpush.msra.mxu0 0.0
  %3136 = vmatpush.msra.mxu0 0.0
  %3137 = vmatpush.msra.mxu0 0.0
  %3138 = vmatpush.msra.mxu0 0.0
  %3139 = vmatpush.msra.mxu0 0.0
  %3140 = vmatpush.msra.mxu0 0.0
  %3141 = vmatpush.msra.mxu0 0.0
  %3142 = vmatpush.msra.mxu0 %v3025
  %3143 = vmatpush.msra.mxu0 %v3018
  %3144 = vmatpush.msra.mxu0 %v3011
  %3145 = vmatpush.msra.mxu0 %v3004
  %3146 = vmatmul.f32.gmra.mxu0 %v3028
  %v3147 = vpop.f32.mrf.mxu0
  %v3148 = vadd.f32 0.0, %v3147
  %3149 = vdwg.mxu0
  %3150 = vmatpush.msra.mxu0 0.0
  %3151 = vmatpush.msra.mxu0 0.0
  %3152 = vmatpush.msra.mxu0 0.0
  %3153 = vmatpush.msra.mxu0 0.0
  %3154 = vmatpush.msra.mxu0 0.0
  %3155 = vmatpush.msra.mxu0 0.0
  %3156 = vmatpush.msra.mxu0 0.0
  %3157 = vmatpush.msra.mxu0 0.0
  %3158 = vmatpush.msra.mxu0 0.0
  %3159 = vmatpush.msra.mxu0 0.0
  %3160 = vmatpush.msra.mxu0 0.0
  %3161 = vmatpush.msra.mxu0 0.0
  %3162 = vmatpush.msra.mxu0 %v3026
  %3163 = vmatpush.msra.mxu0 %v3019
  %3164 = vmatpush.msra.mxu0 %v3012
  %3165 = vmatpush.msra.mxu0 %v3005
  %3166 = vmatmul.f32.gmra.mxu0 %v3028
  %v3167 = vpop.f32.mrf.mxu0
  %v3168 = vadd.f32 0.0, %v3167
  %3169 = vdwg.mxu0
  %v3170 = vadd.f32 %v2991, %v3048
  %v3171 = vadd.f32 %v2992, %v3068
  %v3172 = vadd.f32 %v2993, %v3088
  %v3173 = vadd.f32 %v2994, %v3108
  %v3174 = vadd.f32 %v2995, %v3128
  %v3175 = vadd.f32 %v2996, %v3148
  %v3176 = vadd.f32 %v2997, %v3168
  %v3177 = vld [vmem:[#allocation4 + $0xe] sm:$0x3]
  %v3178 = vld [vmem:[%s9 + $0x620] sm:$0xff]
  %v3179 = vld [vmem:[%s9 + $0x628] sm:$0xff]
  %v3180 = vld [vmem:[%s9 + $0x630] sm:$0xff]
  %v3181 = vld [vmem:[%s9 + $0x638] sm:$0xff]
  %v3182 = vld [vmem:[%s9 + $0x640] sm:$0xff]
  %v3183 = vld [vmem:[%s9 + $0x648] sm:$0xff]
  %v3184 = vld [vmem:[%s9 + $0x650] sm:$0xff]
  %v3185 = vld [vmem:[%s9 + $0x658] sm:$0xff]
  %v3186 = vld [vmem:[%s9 + $0x660] sm:$0xff]
  %v3187 = vld [vmem:[%s9 + $0x668] sm:$0xff]
  %v3188 = vld [vmem:[%s9 + $0x670] sm:$0xff]
  %v3189 = vld [vmem:[%s9 + $0x678] sm:$0xff]
  %v3190 = vld [vmem:[%s9 + $0x680] sm:$0xff]
  %v3191 = vld [vmem:[%s9 + $0x688] sm:$0xff]
  %v3192 = vld [vmem:[%s9 + $0x690] sm:$0xff]
  %v3193 = vld [vmem:[%s9 + $0x698] sm:$0xff]
  %v3194 = vld [vmem:[%s9 + $0x6a0] sm:$0xff]
  %v3195 = vld [vmem:[%s9 + $0x6a8] sm:$0xff]
  %v3196 = vld [vmem:[%s9 + $0x6b0] sm:$0xff]
  %v3197 = vld [vmem:[%s9 + $0x6b8] sm:$0xff]
  %v3198 = vld [vmem:[%s9 + $0x6c0] sm:$0xff]
  %v3199 = vld [vmem:[%s9 + $0x6c8] sm:$0xff]
  %v3200 = vld [vmem:[%s9 + $0x6d0] sm:$0xff]
  %v3201 = vld [vmem:[%s9 + $0x6d8] sm:$0xff]
  %v3202 = vld [vmem:[%s9 + $0x6e0] sm:$0xff]
  %v3203 = vld [vmem:[%s9 + $0x6e8] sm:$0xff]
  %v3204 = vld [vmem:[%s9 + $0x6f0] sm:$0xff]
  %v3205 = vld [vmem:[%s9 + $0x6f8] sm:$0xff]
  %v3207 = vsel %vm1933, %v3177, 0
  %3209 = vmatpush.msra.mxu0 0.0
  %3210 = vmatpush.msra.mxu0 0.0
  %3211 = vmatpush.msra.mxu0 0.0
  %3212 = vmatpush.msra.mxu0 0.0
  %3213 = vmatpush.msra.mxu0 0.0
  %3214 = vmatpush.msra.mxu0 0.0
  %3215 = vmatpush.msra.mxu0 0.0
  %3216 = vmatpush.msra.mxu0 0.0
  %3217 = vmatpush.msra.mxu0 0.0
  %3218 = vmatpush.msra.mxu0 0.0
  %3219 = vmatpush.msra.mxu0 0.0
  %3220 = vmatpush.msra.mxu0 0.0
  %3221 = vmatpush.msra.mxu0 %v3199
  %3222 = vmatpush.msra.mxu0 %v3192
  %3223 = vmatpush.msra.mxu0 %v3185
  %3224 = vmatpush.msra.mxu0 %v3178
  %3225 = vmatmul.f32.gmra.mxu0 %v3207
  %v3226 = vpop.f32.mrf.mxu0
  %v3227 = vadd.f32 0.0, %v3226
  %3228 = vdwg.mxu0
  %3229 = vmatpush.msra.mxu0 0.0
  %3230 = vmatpush.msra.mxu0 0.0
  %3231 = vmatpush.msra.mxu0 0.0
  %3232 = vmatpush.msra.mxu0 0.0
  %3233 = vmatpush.msra.mxu0 0.0
  %3234 = vmatpush.msra.mxu0 0.0
  %3235 = vmatpush.msra.mxu0 0.0
  %3236 = vmatpush.msra.mxu0 0.0
  %3237 = vmatpush.msra.mxu0 0.0
  %3238 = vmatpush.msra.mxu0 0.0
  %3239 = vmatpush.msra.mxu0 0.0
  %3240 = vmatpush.msra.mxu0 0.0
  %3241 = vmatpush.msra.mxu0 %v3200
  %3242 = vmatpush.msra.mxu0 %v3193
  %3243 = vmatpush.msra.mxu0 %v3186
  %3244 = vmatpush.msra.mxu0 %v3179
  %3245 = vmatmul.f32.gmra.mxu0 %v3207
  %v3246 = vpop.f32.mrf.mxu0
  %v3247 = vadd.f32 0.0, %v3246
  %3248 = vdwg.mxu0
  %3249 = vmatpush.msra.mxu0 0.0
  %3250 = vmatpush.msra.mxu0 0.0
  %3251 = vmatpush.msra.mxu0 0.0
  %3252 = vmatpush.msra.mxu0 0.0
  %3253 = vmatpush.msra.mxu0 0.0
  %3254 = vmatpush.msra.mxu0 0.0
  %3255 = vmatpush.msra.mxu0 0.0
  %3256 = vmatpush.msra.mxu0 0.0
  %3257 = vmatpush.msra.mxu0 0.0
  %3258 = vmatpush.msra.mxu0 0.0
  %3259 = vmatpush.msra.mxu0 0.0
  %3260 = vmatpush.msra.mxu0 0.0
  %3261 = vmatpush.msra.mxu0 %v3201
  %3262 = vmatpush.msra.mxu0 %v3194
  %3263 = vmatpush.msra.mxu0 %v3187
  %3264 = vmatpush.msra.mxu0 %v3180
  %3265 = vmatmul.f32.gmra.mxu0 %v3207
  %v3266 = vpop.f32.mrf.mxu0
  %v3267 = vadd.f32 0.0, %v3266
  %3268 = vdwg.mxu0
  %3269 = vmatpush.msra.mxu0 0.0
  %3270 = vmatpush.msra.mxu0 0.0
  %3271 = vmatpush.msra.mxu0 0.0
  %3272 = vmatpush.msra.mxu0 0.0
  %3273 = vmatpush.msra.mxu0 0.0
  %3274 = vmatpush.msra.mxu0 0.0
  %3275 = vmatpush.msra.mxu0 0.0
  %3276 = vmatpush.msra.mxu0 0.0
  %3277 = vmatpush.msra.mxu0 0.0
  %3278 = vmatpush.msra.mxu0 0.0
  %3279 = vmatpush.msra.mxu0 0.0
  %3280 = vmatpush.msra.mxu0 0.0
  %3281 = vmatpush.msra.mxu0 %v3202
  %3282 = vmatpush.msra.mxu0 %v3195
  %3283 = vmatpush.msra.mxu0 %v3188
  %3284 = vmatpush.msra.mxu0 %v3181
  %3285 = vmatmul.f32.gmra.mxu0 %v3207
  %v3286 = vpop.f32.mrf.mxu0
  %v3287 = vadd.f32 0.0, %v3286
  %3288 = vdwg.mxu0
  %3289 = vmatpush.msra.mxu0 0.0
  %3290 = vmatpush.msra.mxu0 0.0
  %3291 = vmatpush.msra.mxu0 0.0
  %3292 = vmatpush.msra.mxu0 0.0
  %3293 = vmatpush.msra.mxu0 0.0
  %3294 = vmatpush.msra.mxu0 0.0
  %3295 = vmatpush.msra.mxu0 0.0
  %3296 = vmatpush.msra.mxu0 0.0
  %3297 = vmatpush.msra.mxu0 0.0
  %3298 = vmatpush.msra.mxu0 0.0
  %3299 = vmatpush.msra.mxu0 0.0
  %3300 = vmatpush.msra.mxu0 0.0
  %3301 = vmatpush.msra.mxu0 %v3203
  %3302 = vmatpush.msra.mxu0 %v3196
  %3303 = vmatpush.msra.mxu0 %v3189
  %3304 = vmatpush.msra.mxu0 %v3182
  %3305 = vmatmul.f32.gmra.mxu0 %v3207
  %v3306 = vpop.f32.mrf.mxu0
  %v3307 = vadd.f32 0.0, %v3306
  %3308 = vdwg.mxu0
  %3309 = vmatpush.msra.mxu0 0.0
  %3310 = vmatpush.msra.mxu0 0.0
  %3311 = vmatpush.msra.mxu0 0.0
  %3312 = vmatpush.msra.mxu0 0.0
  %3313 = vmatpush.msra.mxu0 0.0
  %3314 = vmatpush.msra.mxu0 0.0
  %3315 = vmatpush.msra.mxu0 0.0
  %3316 = vmatpush.msra.mxu0 0.0
  %3317 = vmatpush.msra.mxu0 0.0
  %3318 = vmatpush.msra.mxu0 0.0
  %3319 = vmatpush.msra.mxu0 0.0
  %3320 = vmatpush.msra.mxu0 0.0
  %3321 = vmatpush.msra.mxu0 %v3204
  %3322 = vmatpush.msra.mxu0 %v3197
  %3323 = vmatpush.msra.mxu0 %v3190
  %3324 = vmatpush.msra.mxu0 %v3183
  %3325 = vmatmul.f32.gmra.mxu0 %v3207
  %v3326 = vpop.f32.mrf.mxu0
  %v3327 = vadd.f32 0.0, %v3326
  %3328 = vdwg.mxu0
  %3329 = vmatpush.msra.mxu0 0.0
  %3330 = vmatpush.msra.mxu0 0.0
  %3331 = vmatpush.msra.mxu0 0.0
  %3332 = vmatpush.msra.mxu0 0.0
  %3333 = vmatpush.msra.mxu0 0.0
  %3334 = vmatpush.msra.mxu0 0.0
  %3335 = vmatpush.msra.mxu0 0.0
  %3336 = vmatpush.msra.mxu0 0.0
  %3337 = vmatpush.msra.mxu0 0.0
  %3338 = vmatpush.msra.mxu0 0.0
  %3339 = vmatpush.msra.mxu0 0.0
  %3340 = vmatpush.msra.mxu0 0.0
  %3341 = vmatpush.msra.mxu0 %v3205
  %3342 = vmatpush.msra.mxu0 %v3198
  %3343 = vmatpush.msra.mxu0 %v3191
  %3344 = vmatpush.msra.mxu0 %v3184
  %3345 = vmatmul.f32.gmra.mxu0 %v3207
  %v3346 = vpop.f32.mrf.mxu0
  %v3347 = vadd.f32 0.0, %v3346
  %3348 = vdwg.mxu0
  %v3349 = vadd.f32 %v3170, %v3227
  %v3350 = vadd.f32 %v3171, %v3247
  %v3351 = vadd.f32 %v3172, %v3267
  %v3352 = vadd.f32 %v3173, %v3287
  %v3353 = vadd.f32 %v3174, %v3307
  %v3354 = vadd.f32 %v3175, %v3327
  %v3355 = vadd.f32 %v3176, %v3347
  %v3356 = vld [vmem:[#allocation4 + $0x10] sm:$0x3]
  %v3357 = vld [vmem:[%s9 + $0x700] sm:$0xff]
  %v3358 = vld [vmem:[%s9 + $0x708] sm:$0xff]
  %v3359 = vld [vmem:[%s9 + $0x710] sm:$0xff]
  %v3360 = vld [vmem:[%s9 + $0x718] sm:$0xff]
  %v3361 = vld [vmem:[%s9 + $0x720] sm:$0xff]
  %v3362 = vld [vmem:[%s9 + $0x728] sm:$0xff]
  %v3363 = vld [vmem:[%s9 + $0x730] sm:$0xff]
  %v3364 = vld [vmem:[%s9 + $0x738] sm:$0xff]
  %v3365 = vld [vmem:[%s9 + $0x740] sm:$0xff]
  %v3366 = vld [vmem:[%s9 + $0x748] sm:$0xff]
  %v3367 = vld [vmem:[%s9 + $0x750] sm:$0xff]
  %v3368 = vld [vmem:[%s9 + $0x758] sm:$0xff]
  %v3369 = vld [vmem:[%s9 + $0x760] sm:$0xff]
  %v3370 = vld [vmem:[%s9 + $0x768] sm:$0xff]
  %v3371 = vld [vmem:[%s9 + $0x770] sm:$0xff]
  %v3372 = vld [vmem:[%s9 + $0x778] sm:$0xff]
  %v3373 = vld [vmem:[%s9 + $0x780] sm:$0xff]
  %v3374 = vld [vmem:[%s9 + $0x788] sm:$0xff]
  %v3375 = vld [vmem:[%s9 + $0x790] sm:$0xff]
  %v3376 = vld [vmem:[%s9 + $0x798] sm:$0xff]
  %v3377 = vld [vmem:[%s9 + $0x7a0] sm:$0xff]
  %v3378 = vld [vmem:[%s9 + $0x7a8] sm:$0xff]
  %v3379 = vld [vmem:[%s9 + $0x7b0] sm:$0xff]
  %v3380 = vld [vmem:[%s9 + $0x7b8] sm:$0xff]
  %v3381 = vld [vmem:[%s9 + $0x7c0] sm:$0xff]
  %v3382 = vld [vmem:[%s9 + $0x7c8] sm:$0xff]
  %v3383 = vld [vmem:[%s9 + $0x7d0] sm:$0xff]
  %v3384 = vld [vmem:[%s9 + $0x7d8] sm:$0xff]
  %v3386 = vsel %vm1933, %v3356, 0
  %3388 = vmatpush.msra.mxu0 0.0
  %3389 = vmatpush.msra.mxu0 0.0
  %3390 = vmatpush.msra.mxu0 0.0
  %3391 = vmatpush.msra.mxu0 0.0
  %3392 = vmatpush.msra.mxu0 0.0
  %3393 = vmatpush.msra.mxu0 0.0
  %3394 = vmatpush.msra.mxu0 0.0
  %3395 = vmatpush.msra.mxu0 0.0
  %3396 = vmatpush.msra.mxu0 0.0
  %3397 = vmatpush.msra.mxu0 0.0
  %3398 = vmatpush.msra.mxu0 0.0
  %3399 = vmatpush.msra.mxu0 0.0
  %3400 = vmatpush.msra.mxu0 %v3378
  %3401 = vmatpush.msra.mxu0 %v3371
  %3402 = vmatpush.msra.mxu0 %v3364
  %3403 = vmatpush.msra.mxu0 %v3357
  %3404 = vmatmul.f32.gmra.mxu0 %v3386
  %v3405 = vpop.f32.mrf.mxu0
  %v3406 = vadd.f32 0.0, %v3405
  %3407 = vdwg.mxu0
  %3408 = vmatpush.msra.mxu0 0.0
  %3409 = vmatpush.msra.mxu0 0.0
  %3410 = vmatpush.msra.mxu0 0.0
  %3411 = vmatpush.msra.mxu0 0.0
  %3412 = vmatpush.msra.mxu0 0.0
  %3413 = vmatpush.msra.mxu0 0.0
  %3414 = vmatpush.msra.mxu0 0.0
  %3415 = vmatpush.msra.mxu0 0.0
  %3416 = vmatpush.msra.mxu0 0.0
  %3417 = vmatpush.msra.mxu0 0.0
  %3418 = vmatpush.msra.mxu0 0.0
  %3419 = vmatpush.msra.mxu0 0.0
  %3420 = vmatpush.msra.mxu0 %v3379
  %3421 = vmatpush.msra.mxu0 %v3372
  %3422 = vmatpush.msra.mxu0 %v3365
  %3423 = vmatpush.msra.mxu0 %v3358
  %3424 = vmatmul.f32.gmra.mxu0 %v3386
  %v3425 = vpop.f32.mrf.mxu0
  %v3426 = vadd.f32 0.0, %v3425
  %3427 = vdwg.mxu0
  %3428 = vmatpush.msra.mxu0 0.0
  %3429 = vmatpush.msra.mxu0 0.0
  %3430 = vmatpush.msra.mxu0 0.0
  %3431 = vmatpush.msra.mxu0 0.0
  %3432 = vmatpush.msra.mxu0 0.0
  %3433 = vmatpush.msra.mxu0 0.0
  %3434 = vmatpush.msra.mxu0 0.0
  %3435 = vmatpush.msra.mxu0 0.0
  %3436 = vmatpush.msra.mxu0 0.0
  %3437 = vmatpush.msra.mxu0 0.0
  %3438 = vmatpush.msra.mxu0 0.0
  %3439 = vmatpush.msra.mxu0 0.0
  %3440 = vmatpush.msra.mxu0 %v3380
  %3441 = vmatpush.msra.mxu0 %v3373
  %3442 = vmatpush.msra.mxu0 %v3366
  %3443 = vmatpush.msra.mxu0 %v3359
  %3444 = vmatmul.f32.gmra.mxu0 %v3386
  %v3445 = vpop.f32.mrf.mxu0
  %v3446 = vadd.f32 0.0, %v3445
  %3447 = vdwg.mxu0
  %3448 = vmatpush.msra.mxu0 0.0
  %3449 = vmatpush.msra.mxu0 0.0
  %3450 = vmatpush.msra.mxu0 0.0
  %3451 = vmatpush.msra.mxu0 0.0
  %3452 = vmatpush.msra.mxu0 0.0
  %3453 = vmatpush.msra.mxu0 0.0
  %3454 = vmatpush.msra.mxu0 0.0
  %3455 = vmatpush.msra.mxu0 0.0
  %3456 = vmatpush.msra.mxu0 0.0
  %3457 = vmatpush.msra.mxu0 0.0
  %3458 = vmatpush.msra.mxu0 0.0
  %3459 = vmatpush.msra.mxu0 0.0
  %3460 = vmatpush.msra.mxu0 %v3381
  %3461 = vmatpush.msra.mxu0 %v3374
  %3462 = vmatpush.msra.mxu0 %v3367
  %3463 = vmatpush.msra.mxu0 %v3360
  %3464 = vmatmul.f32.gmra.mxu0 %v3386
  %v3465 = vpop.f32.mrf.mxu0
  %v3466 = vadd.f32 0.0, %v3465
  %3467 = vdwg.mxu0
  %3468 = vmatpush.msra.mxu0 0.0
  %3469 = vmatpush.msra.mxu0 0.0
  %3470 = vmatpush.msra.mxu0 0.0
  %3471 = vmatpush.msra.mxu0 0.0
  %3472 = vmatpush.msra.mxu0 0.0
  %3473 = vmatpush.msra.mxu0 0.0
  %3474 = vmatpush.msra.mxu0 0.0
  %3475 = vmatpush.msra.mxu0 0.0
  %3476 = vmatpush.msra.mxu0 0.0
  %3477 = vmatpush.msra.mxu0 0.0
  %3478 = vmatpush.msra.mxu0 0.0
  %3479 = vmatpush.msra.mxu0 0.0
  %3480 = vmatpush.msra.mxu0 %v3382
  %3481 = vmatpush.msra.mxu0 %v3375
  %3482 = vmatpush.msra.mxu0 %v3368
  %3483 = vmatpush.msra.mxu0 %v3361
  %3484 = vmatmul.f32.gmra.mxu0 %v3386
  %v3485 = vpop.f32.mrf.mxu0
  %v3486 = vadd.f32 0.0, %v3485
  %3487 = vdwg.mxu0
  %3488 = vmatpush.msra.mxu0 0.0
  %3489 = vmatpush.msra.mxu0 0.0
  %3490 = vmatpush.msra.mxu0 0.0
  %3491 = vmatpush.msra.mxu0 0.0
  %3492 = vmatpush.msra.mxu0 0.0
  %3493 = vmatpush.msra.mxu0 0.0
  %3494 = vmatpush.msra.mxu0 0.0
  %3495 = vmatpush.msra.mxu0 0.0
  %3496 = vmatpush.msra.mxu0 0.0
  %3497 = vmatpush.msra.mxu0 0.0
  %3498 = vmatpush.msra.mxu0 0.0
  %3499 = vmatpush.msra.mxu0 0.0
  %3500 = vmatpush.msra.mxu0 %v3383
  %3501 = vmatpush.msra.mxu0 %v3376
  %3502 = vmatpush.msra.mxu0 %v3369
  %3503 = vmatpush.msra.mxu0 %v3362
  %3504 = vmatmul.f32.gmra.mxu0 %v3386
  %v3505 = vpop.f32.mrf.mxu0
  %v3506 = vadd.f32 0.0, %v3505
  %3507 = vdwg.mxu0
  %3508 = vmatpush.msra.mxu0 0.0
  %3509 = vmatpush.msra.mxu0 0.0
  %3510 = vmatpush.msra.mxu0 0.0
  %3511 = vmatpush.msra.mxu0 0.0
  %3512 = vmatpush.msra.mxu0 0.0
  %3513 = vmatpush.msra.mxu0 0.0
  %3514 = vmatpush.msra.mxu0 0.0
  %3515 = vmatpush.msra.mxu0 0.0
  %3516 = vmatpush.msra.mxu0 0.0
  %3517 = vmatpush.msra.mxu0 0.0
  %3518 = vmatpush.msra.mxu0 0.0
  %3519 = vmatpush.msra.mxu0 0.0
  %3520 = vmatpush.msra.mxu0 %v3384
  %3521 = vmatpush.msra.mxu0 %v3377
  %3522 = vmatpush.msra.mxu0 %v3370
  %3523 = vmatpush.msra.mxu0 %v3363
  %3524 = vmatmul.f32.gmra.mxu0 %v3386
  %v3525 = vpop.f32.mrf.mxu0
  %v3526 = vadd.f32 0.0, %v3525
  %3527 = vdwg.mxu0
  %v3528 = vadd.f32 %v3349, %v3406
  %v3529 = vadd.f32 %v3350, %v3426
  %v3530 = vadd.f32 %v3351, %v3446
  %v3531 = vadd.f32 %v3352, %v3466
  %v3532 = vadd.f32 %v3353, %v3486
  %v3533 = vadd.f32 %v3354, %v3506
  %v3534 = vadd.f32 %v3355, %v3526
  %v3535 = vld [vmem:[%s10] sm:$0x7f]
  %v3537 = vperm.slane %v3535, 0
  %v3538 = vperm.slane %v3535, 1
  %v3539 = vperm.slane %v3535, 2
  %v3540 = vperm.slane %v3535, 3
  %v3541 = vperm.slane %v3535, 4
  %v3542 = vperm.slane %v3535, 5
  %v3543 = vperm.slane %v3535, 6
  %v3551 = vadd.f32 %v3528, %v3537
  %v3552 = vadd.f32 %v3529, %v3538
  %v3553 = vadd.f32 %v3530, %v3539
  %v3554 = vadd.f32 %v3531, %v3540
  %v3555 = vadd.f32 %v3532, %v3541
  %v3556 = vadd.f32 %v3533, %v3542
  %v3557 = vadd.f32 %v3534, %v3543
  %vm3558 = vcmp.ge.f32.partialorder %v3551, 0.0
  %vm3559 = vcmp.ge.f32.partialorder %v3552, 0.0
  %vm3560 = vcmp.ge.f32.partialorder %v3553, 0.0
  %vm3561 = vcmp.ge.f32.partialorder %v3554, 0.0
  %vm3562 = vcmp.ge.f32.partialorder %v3555, 0.0
  %vm3563 = vcmp.ge.f32.partialorder %v3556, 0.0
  %vm3564 = vcmp.ge.f32.partialorder %v3557, 0.0
  %v3565 = vmul.f32 %v3551, 0.01
  %v3566 = vmul.f32 %v3552, 0.01
  %v3567 = vmul.f32 %v3553, 0.01
  %v3568 = vmul.f32 %v3554, 0.01
  %v3569 = vmul.f32 %v3555, 0.01
  %v3570 = vmul.f32 %v3556, 0.01
  %v3571 = vmul.f32 %v3557, 0.01
  %v3572 = vsel %vm3558, %v3551, %v3565
  %v3573 = vsel %vm3559, %v3552, %v3566
  %v3574 = vsel %vm3560, %v3553, %v3567
  %v3575 = vsel %vm3561, %v3554, %v3568
  %v3576 = vsel %vm3562, %v3555, %v3569
  %v3577 = vsel %vm3563, %v3556, %v3570
  %v3578 = vsel %vm3564, %v3557, %v3571
  %v3579 = vld [vmem:[%s11] sm:$0x7f]
  %v3581 = vperm.slane %v3579, 0
  %v3582 = vperm.slane %v3579, 1
  %v3583 = vperm.slane %v3579, 2
  %v3584 = vperm.slane %v3579, 3
  %v3585 = vperm.slane %v3579, 4
  %v3586 = vperm.slane %v3579, 5
  %v3587 = vperm.slane %v3579, 6
  %v3595 = vmul.f32 %v3572, %v3581
  %v3596 = vmul.f32 %v3573, %v3582
  %v3597 = vmul.f32 %v3574, %v3583
  %v3598 = vmul.f32 %v3575, %v3584
  %v3599 = vmul.f32 %v3576, %v3585
  %v3600 = vmul.f32 %v3577, %v3586
  %v3601 = vmul.f32 %v3578, %v3587
  %v3602 = vld [vmem:[%s12] sm:$0x7f]
  %v3604 = vperm.slane %v3602, 0
  %v3605 = vperm.slane %v3602, 1
  %v3606 = vperm.slane %v3602, 2
  %v3607 = vperm.slane %v3602, 3
  %v3608 = vperm.slane %v3602, 4
  %v3609 = vperm.slane %v3602, 5
  %v3610 = vperm.slane %v3602, 6
  %v3618 = vadd.f32 %v3595, %v3604
  %v3619 = vadd.f32 %v3596, %v3605
  %v3620 = vadd.f32 %v3597, %v3606
  %v3621 = vadd.f32 %v3598, %v3607
  %v3622 = vadd.f32 %v3599, %v3608
  %v3623 = vadd.f32 %v3600, %v3609
  %v3624 = vadd.f32 %v3601, %v3610
  %v3625 = vld [vmem:[%s13] sm:$0xff]
  %v3626 = vld [vmem:[%s13 + $0x8] sm:$0xff]
  %v3627 = vld [vmem:[%s13 + $0x10] sm:$0xff]
  %v3628 = vld [vmem:[%s13 + $0x18] sm:$0xff]
  %v3629 = vld [vmem:[%s13 + $0x20] sm:$0xff]
  %v3630 = vld [vmem:[%s13 + $0x28] sm:$0xff]
  %v3631 = vld [vmem:[%s13 + $0x30] sm:$0xff]
  %v3632 = vld [vmem:[%s13 + $0x38] sm:$0xff]
  %v3633 = vld [vmem:[%s13 + $0x40] sm:$0xff]
  %v3634 = vld [vmem:[%s13 + $0x48] sm:$0xff]
  %v3635 = vld [vmem:[%s13 + $0x50] sm:$0xff]
  %v3636 = vld [vmem:[%s13 + $0x58] sm:$0xff]
  %v3637 = vld [vmem:[%s13 + $0x60] sm:$0xff]
  %v3638 = vld [vmem:[%s13 + $0x68] sm:$0xff]
  %v3639 = vld [vmem:[%s13 + $0x70] sm:$0xff]
  %v3640 = vld [vmem:[%s13 + $0x78] sm:$0xff]
  %v3641 = vld [vmem:[%s13 + $0x80] sm:$0xff]
  %v3642 = vld [vmem:[%s13 + $0x88] sm:$0xff]
  %v3643 = vld [vmem:[%s13 + $0x90] sm:$0xff]
  %v3644 = vld [vmem:[%s13 + $0x98] sm:$0xff]
  %v3645 = vld [vmem:[%s13 + $0xa0] sm:$0xff]
  %v3646 = vld [vmem:[%s13 + $0xa8] sm:$0xff]
  %v3647 = vld [vmem:[%s13 + $0xb0] sm:$0xff]
  %v3648 = vld [vmem:[%s13 + $0xb8] sm:$0xff]
  %v3649 = vld [vmem:[%s13 + $0xc0] sm:$0xff]
  %v3650 = vld [vmem:[%s13 + $0xc8] sm:$0xff]
  %v3651 = vld [vmem:[%s13 + $0xd0] sm:$0xff]
  %v3652 = vld [vmem:[%s13 + $0xd8] sm:$0xff]
  %v3653 = vld [vmem:[%s13 + $0xe0] sm:$0xff]
  %v3654 = vld [vmem:[%s13 + $0xe8] sm:$0xff]
  %v3655 = vld [vmem:[%s13 + $0xf0] sm:$0xff]
  %v3656 = vld [vmem:[%s13 + $0xf8] sm:$0xff]
  %v3657 = vld [vmem:[%s13 + $0x100] sm:$0xff]
  %v3658 = vld [vmem:[%s13 + $0x108] sm:$0xff]
  %v3659 = vld [vmem:[%s13 + $0x110] sm:$0xff]
  %v3660 = vld [vmem:[%s13 + $0x118] sm:$0xff]
  %v3661 = vld [vmem:[%s13 + $0x120] sm:$0xff]
  %v3662 = vld [vmem:[%s13 + $0x128] sm:$0xff]
  %v3663 = vld [vmem:[%s13 + $0x130] sm:$0xff]
  %v3664 = vld [vmem:[%s13 + $0x138] sm:$0xff]
  %v3665 = vld [vmem:[%s13 + $0x140] sm:$0xff]
  %v3666 = vld [vmem:[%s13 + $0x148] sm:$0xff]
  %v3667 = vld [vmem:[%s13 + $0x150] sm:$0xff]
  %v3668 = vld [vmem:[%s13 + $0x158] sm:$0xff]
  %v3669 = vld [vmem:[%s13 + $0x160] sm:$0xff]
  %v3670 = vld [vmem:[%s13 + $0x168] sm:$0xff]
  %v3671 = vld [vmem:[%s13 + $0x170] sm:$0xff]
  %v3672 = vld [vmem:[%s13 + $0x178] sm:$0xff]
  %v3673 = vld [vmem:[%s13 + $0x180] sm:$0xff]
  %v3674 = vld [vmem:[%s13 + $0x188] sm:$0xff]
  %v3675 = vld [vmem:[%s13 + $0x190] sm:$0xff]
  %v3676 = vld [vmem:[%s13 + $0x198] sm:$0xff]
  %v3677 = vld [vmem:[%s13 + $0x1a0] sm:$0xff]
  %v3678 = vld [vmem:[%s13 + $0x1a8] sm:$0xff]
  %v3679 = vld [vmem:[%s13 + $0x1b0] sm:$0xff]
  %v3680 = vld [vmem:[%s13 + $0x1b8] sm:$0xff]
  %v3681 = vld [vmem:[%s13 + $0x1c0] sm:$0xff]
  %v3682 = vld [vmem:[%s13 + $0x1c8] sm:$0xff]
  %v3683 = vld [vmem:[%s13 + $0x1d0] sm:$0xff]
  %v3684 = vld [vmem:[%s13 + $0x1d8] sm:$0xff]
  %v3685 = vld [vmem:[%s13 + $0x1e0] sm:$0xff]
  %v3686 = vld [vmem:[%s13 + $0x1e8] sm:$0xff]
  %v3687 = vld [vmem:[%s13 + $0x1f0] sm:$0xff]
  %v3688 = vld [vmem:[%s13 + $0x1f8] sm:$0xff]
  %3689 = vmatpush.msra.mxu0 %v3672
  %3690 = vmatpush.msra.mxu0 %v3671
  %3691 = vmatpush.msra.mxu0 %v3670
  %3692 = vmatpush.msra.mxu0 %v3669
  %3693 = vmatpush.msra.mxu0 %v3668
  %3694 = vmatpush.msra.mxu0 %v3667
  %3695 = vmatpush.msra.mxu0 %v3666
  %3696 = vmatpush.msra.mxu0 %v3665
  %3697 = vmatpush.msra.mxu0 %v3664
  %3698 = vmatpush.msra.mxu0 %v3663
  %3699 = vmatpush.msra.mxu0 %v3662
  %3700 = vmatpush.msra.mxu0 %v3661
  %3701 = vmatpush.msra.mxu0 %v3660
  %3702 = vmatpush.msra.mxu0 %v3659
  %3703 = vmatpush.msra.mxu0 %v3658
  %3704 = vmatpush.msra.mxu0 %v3657
  %3705 = vmatmul.f32.gmra.mxu0 %v3620
  %v3706 = vpop.f32.mrf.mxu0
  %v3707 = vadd.f32 0.0, %v3706
  %3708 = vdwg.mxu0
  %3709 = vmatpush.msra.mxu0 %v3688
  %3710 = vmatpush.msra.mxu0 %v3687
  %3711 = vmatpush.msra.mxu0 %v3686
  %3712 = vmatpush.msra.mxu0 %v3685
  %3713 = vmatpush.msra.mxu0 %v3684
  %3714 = vmatpush.msra.mxu0 %v3683
  %3715 = vmatpush.msra.mxu0 %v3682
  %3716 = vmatpush.msra.mxu0 %v3681
  %3717 = vmatpush.msra.mxu0 %v3680
  %3718 = vmatpush.msra.mxu0 %v3679
  %3719 = vmatpush.msra.mxu0 %v3678
  %3720 = vmatpush.msra.mxu0 %v3677
  %3721 = vmatpush.msra.mxu0 %v3676
  %3722 = vmatpush.msra.mxu0 %v3675
  %3723 = vmatpush.msra.mxu0 %v3674
  %3724 = vmatpush.msra.mxu0 %v3673
  %3725 = vmatmul.f32.gmra.mxu0 %v3621
  %v3726 = vpop.f32.mrf.mxu0
  %v3727 = vadd.f32 %v3707, %v3726
  %3728 = vdwg.mxu0
  %3729 = vmatpush.msra.mxu0 %v3640
  %3730 = vmatpush.msra.mxu0 %v3639
  %3731 = vmatpush.msra.mxu0 %v3638
  %3732 = vmatpush.msra.mxu0 %v3637
  %3733 = vmatpush.msra.mxu0 %v3636
  %3734 = vmatpush.msra.mxu0 %v3635
  %3735 = vmatpush.msra.mxu0 %v3634
  %3736 = vmatpush.msra.mxu0 %v3633
  %3737 = vmatpush.msra.mxu0 %v3632
  %3738 = vmatpush.msra.mxu0 %v3631
  %3739 = vmatpush.msra.mxu0 %v3630
  %3740 = vmatpush.msra.mxu0 %v3629
  %3741 = vmatpush.msra.mxu0 %v3628
  %3742 = vmatpush.msra.mxu0 %v3627
  %3743 = vmatpush.msra.mxu0 %v3626
  %3744 = vmatpush.msra.mxu0 %v3625
  %3745 = vmatmul.f32.gmra.mxu0 %v3618
  %v3746 = vpop.f32.mrf.mxu0
  %v3747 = vadd.f32 %v3727, %v3746
  %3748 = vdwg.mxu0
  %3749 = vmatpush.msra.mxu0 %v3656
  %3750 = vmatpush.msra.mxu0 %v3655
  %3751 = vmatpush.msra.mxu0 %v3654
  %3752 = vmatpush.msra.mxu0 %v3653
  %3753 = vmatpush.msra.mxu0 %v3652
  %3754 = vmatpush.msra.mxu0 %v3651
  %3755 = vmatpush.msra.mxu0 %v3650
  %3756 = vmatpush.msra.mxu0 %v3649
  %3757 = vmatpush.msra.mxu0 %v3648
  %3758 = vmatpush.msra.mxu0 %v3647
  %3759 = vmatpush.msra.mxu0 %v3646
  %3760 = vmatpush.msra.mxu0 %v3645
  %3761 = vmatpush.msra.mxu0 %v3644
  %3762 = vmatpush.msra.mxu0 %v3643
  %3763 = vmatpush.msra.mxu0 %v3642
  %3764 = vmatpush.msra.mxu0 %v3641
  %3765 = vmatmul.f32.gmra.mxu0 %v3619
  %v3766 = vpop.f32.mrf.mxu0
  %v3767 = vadd.f32 %v3747, %v3766
  %3768 = vdwg.mxu0
  %v3769 = vld [vmem:[%s13 + $0x200] sm:$0xff]
  %v3770 = vld [vmem:[%s13 + $0x208] sm:$0xff]
  %v3771 = vld [vmem:[%s13 + $0x210] sm:$0xff]
  %v3772 = vld [vmem:[%s13 + $0x218] sm:$0xff]
  %v3773 = vld [vmem:[%s13 + $0x220] sm:$0xff]
  %v3774 = vld [vmem:[%s13 + $0x228] sm:$0xff]
  %v3775 = vld [vmem:[%s13 + $0x230] sm:$0xff]
  %v3776 = vld [vmem:[%s13 + $0x238] sm:$0xff]
  %v3777 = vld [vmem:[%s13 + $0x240] sm:$0xff]
  %v3778 = vld [vmem:[%s13 + $0x248] sm:$0xff]
  %v3779 = vld [vmem:[%s13 + $0x250] sm:$0xff]
  %v3780 = vld [vmem:[%s13 + $0x258] sm:$0xff]
  %v3781 = vld [vmem:[%s13 + $0x260] sm:$0xff]
  %v3782 = vld [vmem:[%s13 + $0x268] sm:$0xff]
  %v3783 = vld [vmem:[%s13 + $0x270] sm:$0xff]
  %v3784 = vld [vmem:[%s13 + $0x278] sm:$0xff]
  %v3785 = vld [vmem:[%s13 + $0x280] sm:$0xff]
  %v3786 = vld [vmem:[%s13 + $0x288] sm:$0xff]
  %v3787 = vld [vmem:[%s13 + $0x290] sm:$0xff]
  %v3788 = vld [vmem:[%s13 + $0x298] sm:$0xff]
  %v3789 = vld [vmem:[%s13 + $0x2a0] sm:$0xff]
  %v3790 = vld [vmem:[%s13 + $0x2a8] sm:$0xff]
  %v3791 = vld [vmem:[%s13 + $0x2b0] sm:$0xff]
  %v3792 = vld [vmem:[%s13 + $0x2b8] sm:$0xff]
  %v3793 = vld [vmem:[%s13 + $0x2c0] sm:$0xff]
  %v3794 = vld [vmem:[%s13 + $0x2c8] sm:$0xff]
  %v3795 = vld [vmem:[%s13 + $0x2d0] sm:$0xff]
  %v3796 = vld [vmem:[%s13 + $0x2d8] sm:$0xff]
  %v3797 = vld [vmem:[%s13 + $0x2e0] sm:$0xff]
  %v3798 = vld [vmem:[%s13 + $0x2e8] sm:$0xff]
  %v3799 = vld [vmem:[%s13 + $0x2f0] sm:$0xff]
  %v3800 = vld [vmem:[%s13 + $0x2f8] sm:$0xff]
  %3801 = vmatpush.msra.mxu0 %v3784
  %3802 = vmatpush.msra.mxu0 %v3783
  %3803 = vmatpush.msra.mxu0 %v3782
  %3804 = vmatpush.msra.mxu0 %v3781
  %3805 = vmatpush.msra.mxu0 %v3780
  %3806 = vmatpush.msra.mxu0 %v3779
  %3807 = vmatpush.msra.mxu0 %v3778
  %3808 = vmatpush.msra.mxu0 %v3777
  %3809 = vmatpush.msra.mxu0 %v3776
  %3810 = vmatpush.msra.mxu0 %v3775
  %3811 = vmatpush.msra.mxu0 %v3774
  %3812 = vmatpush.msra.mxu0 %v3773
  %3813 = vmatpush.msra.mxu0 %v3772
  %3814 = vmatpush.msra.mxu0 %v3771
  %3815 = vmatpush.msra.mxu0 %v3770
  %3816 = vmatpush.msra.mxu0 %v3769
  %3817 = vmatmul.f32.gmra.mxu0 %v3622
  %v3818 = vpop.f32.mrf.mxu0
  %v3819 = vadd.f32 0.0, %v3818
  %3820 = vdwg.mxu0
  %3821 = vmatpush.msra.mxu0 %v3800
  %3822 = vmatpush.msra.mxu0 %v3799
  %3823 = vmatpush.msra.mxu0 %v3798
  %3824 = vmatpush.msra.mxu0 %v3797
  %3825 = vmatpush.msra.mxu0 %v3796
  %3826 = vmatpush.msra.mxu0 %v3795
  %3827 = vmatpush.msra.mxu0 %v3794
  %3828 = vmatpush.msra.mxu0 %v3793
  %3829 = vmatpush.msra.mxu0 %v3792
  %3830 = vmatpush.msra.mxu0 %v3791
  %3831 = vmatpush.msra.mxu0 %v3790
  %3832 = vmatpush.msra.mxu0 %v3789
  %3833 = vmatpush.msra.mxu0 %v3788
  %3834 = vmatpush.msra.mxu0 %v3787
  %3835 = vmatpush.msra.mxu0 %v3786
  %3836 = vmatpush.msra.mxu0 %v3785
  %3837 = vmatmul.f32.gmra.mxu0 %v3623
  %v3838 = vpop.f32.mrf.mxu0
  %v3839 = vadd.f32 %v3819, %v3838
  %3840 = vdwg.mxu0
  %v3841 = vadd.f32 %v3767, %v3839
  %v3842 = vld [vmem:[%s13 + $0x300] sm:$0xff]
  %v3843 = vld [vmem:[%s13 + $0x308] sm:$0xff]
  %v3844 = vld [vmem:[%s13 + $0x310] sm:$0xff]
  %v3845 = vld [vmem:[%s13 + $0x318] sm:$0xff]
  %v3847 = vsel %vm1933, %v3624, 0
  %3849 = vmatpush.msra.mxu0 0.0
  %3850 = vmatpush.msra.mxu0 0.0
  %3851 = vmatpush.msra.mxu0 0.0
  %3852 = vmatpush.msra.mxu0 0.0
  %3853 = vmatpush.msra.mxu0 0.0
  %3854 = vmatpush.msra.mxu0 0.0
  %3855 = vmatpush.msra.mxu0 0.0
  %3856 = vmatpush.msra.mxu0 0.0
  %3857 = vmatpush.msra.mxu0 0.0
  %3858 = vmatpush.msra.mxu0 0.0
  %3859 = vmatpush.msra.mxu0 0.0
  %3860 = vmatpush.msra.mxu0 0.0
  %3861 = vmatpush.msra.mxu0 %v3845
  %3862 = vmatpush.msra.mxu0 %v3844
  %3863 = vmatpush.msra.mxu0 %v3843
  %3864 = vmatpush.msra.mxu0 %v3842
  %3865 = vmatmul.f32.gmra.mxu0 %v3847
  %v3866 = vpop.f32.mrf.mxu0
  %v3867 = vadd.f32 0.0, %v3866
  %3868 = vdwg.mxu0
  %v3869 = vadd.f32 %v3841, %v3867
  %v3870 = vld [vmem:[%s14] sm:$0x1]
  %v3872 = vperm.slane %v3870, 0
  %v3874 = vadd.f32 %v3869, %v3872
  %3875 = vst.msk [vmem:[%s15] sm:$0x3] %vm1936, %v3874
  // Predicated region
  $region62: #{encoder_forward.1} parent=0 // pred_check
    _
  $region63: #{encoder_forward.1} parent=0 // pred_check_branch
    %3877 = sbr.rel (0) target = $region65
  $region64: #{encoder_forward.1} parent=0 // pred_region
    _
  $region65: #{encoder_forward.1} parent=0 // pred_fallthru
    _
  // Predicated region
  $region66: #{encoder_forward.1} parent=0 // pred_check
    _
  $region67: #{encoder_forward.1} parent=0 // pred_check_branch
    %3879 = sbr.rel (0) target = $region69
  $region68: #{encoder_forward.1} parent=0 // pred_region
    _
  $region69: #{encoder_forward.1} parent=0 // pred_fallthru
    _

</llo_original>
